<compile_context>
chip_gen: v5e
topology: v5e:2x2
jax: 0.10.0
libtpu: 0.0.40
codegen_flags: <defaults>
</compile_context>

<pallas_src>
import functools

import jax
import jax.numpy as jnp
from jax.experimental import pallas as pl
from jax.experimental.pallas import tpu as pltpu


def _round_up(x, m):
    return ((x + m - 1) // m) * m


# --------------------------------------------------------------------------
# GAT layer kernel (one GATConv per grid step; edge transform + self-loop
# attrs + attention softmax + aggregation + ReLU + node gather, all fused).
# --------------------------------------------------------------------------
def _gat_layer_kernel(nf_ref, ea_ref, ei_ref, eit_ref, ni_ref,
                      w_ea_ref, b_ea_ref, w_lin_ref, w_edge_ref,
                      a_src_ref, a_dst_ref, a_edge_ref, bias_ref,
                      rep_ref, pool_ref, o_ref, *, heads, out_ch):
    del out_ch  # implied by pool_ref
    nf = nf_ref[...]                                    # [N,F]
    n = nf.shape[0]
    e = ea_ref.shape[0]
    b = ni_ref.shape[0]

    # One-hot operands built in-kernel from int32 indices (no HBM one-hots).
    iota_en = jax.lax.broadcasted_iota(jnp.int32, (e, n), 1)
    src_oh = (eit_ref[:, 0:1] == iota_en).astype(jnp.float32)       # [E,N]
    dst_oh = (eit_ref[:, 1:2] == iota_en).astype(jnp.float32)       # [E,N]
    iota_ne = jax.lax.broadcasted_iota(jnp.int32, (n, e), 0)
    mask = (iota_ne == ei_ref[1:2, :]).astype(jnp.float32)          # [N,E]
    mask_b = mask > 0.0
    iota_bn = jax.lax.broadcasted_iota(jnp.int32, (b, n), 1)
    node_oh = (ni_ref[...] == iota_bn).astype(jnp.float32)          # [B,N]

    rep = rep_ref[...]                                  # [H, H*C]  (head replicate)
    pool = pool_ref[...]                                # [H*C, C]  (head sum/pool)

    # edge_attr_transform (nn.Linear)
    tea = jnp.dot(ea_ref[...], w_ea_ref[...],
                  preferred_element_type=jnp.float32) + b_ea_ref[...]       # [E,C]

    # PyG add_self_loops(fill_value='mean'): mean of incoming edge attrs.
    cnt = jnp.sum(mask, axis=-1, keepdims=True)                             # [N,1]
    loop_attr = jnp.dot(mask, tea, preferred_element_type=jnp.float32) \
        / jnp.maximum(cnt, 1.0)                                             # [N,C]

    w_lin = w_lin_ref[0]                                # [F,H*C]
    w_edge = w_edge_ref[0]                              # [C,H*C]
    xh = jnp.dot(nf, w_lin, preferred_element_type=jnp.float32)             # [N,H*C]
    eh = jnp.dot(tea, w_edge, preferred_element_type=jnp.float32)           # [E,H*C]
    el = jnp.dot(loop_attr, w_edge, preferred_element_type=jnp.float32)     # [N,H*C]

    # attention scalars via MXU dots against block matrices -> [*, H]
    a_src = jnp.dot(xh, a_src_ref[0], preferred_element_type=jnp.float32)   # [N,H]
    a_dst = jnp.dot(xh, a_dst_ref[0], preferred_element_type=jnp.float32)   # [N,H]
    a_edge = jnp.dot(eh, a_edge_ref[0], preferred_element_type=jnp.float32)  # [E,H]
    a_eloop = jnp.dot(el, a_edge_ref[0], preferred_element_type=jnp.float32)  # [N,H]

    # per-edge terms gathered via MXU one-hot dots
    a_src_e = jnp.dot(src_oh, a_src, preferred_element_type=jnp.float32)    # [E,H]
    a_dst_e = jnp.dot(dst_oh, a_dst, preferred_element_type=jnp.float32)    # [E,H]
    logit_e = a_src_e + a_dst_e + a_edge
    logit_e = jnp.where(logit_e > 0, logit_e, 0.2 * logit_e)    # leaky_relu(0.2)
    logit_l = a_src + a_dst + a_eloop                           # self-loop n->n
    logit_l = jnp.where(logit_l > 0, logit_l, 0.2 * logit_l)    # [N,H]

    # per-destination max: one masked [N,E] max pass per head (cheap), then
    # everything else is batched over all heads at once.
    m_cols = [
        jnp.max(jnp.where(mask_b, logit_e[:, h:h + 1].T, -1e30),
                axis=-1, keepdims=True)                                     # [N,1]
        for h in range(heads)
    ]
    m = jnp.maximum(jnp.concatenate(m_cols, axis=-1), logit_l)              # [N,H]

    m_e = jnp.dot(dst_oh, m, preferred_element_type=jnp.float32)            # [E,H]
    w_e = jnp.exp(logit_e - m_e)                                            # [E,H]
    wl = jnp.exp(logit_l - m)                                               # [N,H]

    # source-node features per edge (all heads), scaled by attention weights
    xe = jnp.dot(src_oh, xh, preferred_element_type=jnp.float32)            # [E,H*C]
    xe_w = xe * jnp.dot(w_e, rep, preferred_element_type=jnp.float32)       # [E,H*C]

    den = jnp.dot(mask, w_e, preferred_element_type=jnp.float32) + wl       # [N,H]
    inv = pl.reciprocal(den, approx=True)                                   # EUP slot
    num = jnp.dot(mask, xe_w, preferred_element_type=jnp.float32) \
        + jnp.dot(wl, rep, preferred_element_type=jnp.float32) * xh         # [N,H*C]
    weighted = num * jnp.dot(inv, rep, preferred_element_type=jnp.float32)  # [N,H*C]

    # concat=False -> head mean, then bias, ReLU (Dropout = identity in eval)
    out = jnp.dot(weighted, pool,
                  preferred_element_type=jnp.float32) * (1.0 / heads) + bias_ref[0]
    out = jnp.maximum(out, 0.0)                                             # [N,C]

    # gather by node_indices as one-hot matmul; single store per grid step
    o_ref[0] = jnp.dot(node_oh, out, preferred_element_type=jnp.float32)    # [B,C]


# --------------------------------------------------------------------------
# Transformer encoder layer + fused last-step linear head (batch-blocked,
# lane-padded feature dim, masked LayerNorm statistics).
# --------------------------------------------------------------------------
def _encoder_kernel(x_ref, pos_ref, lm_ref, wqkv_ref, bqkv_ref, wo_ref, bo_ref,
                    g1_ref, be1_ref, w1_ref, bf1_ref, w2_ref, bf2_ref,
                    g2_ref, be2_ref, wout_ref, bout_ref, o_ref, *,
                    nhead, hd_true, hd_pad, d_true):
    xb = x_ref[...] + pos_ref[...]                      # [Bblk,T,Dp]
    bblk, t, dp = xb.shape
    r = bblk * t
    x2 = xb.reshape(r, dp)                              # flatten batch*time rows
    lm = lm_ref[...]                                    # [1,Dp] lane mask (true D)

    # Fused QKV projection: one [R,Dp]x[Dp,3*H*hd_p] matmul, head-padded cols.
    qkv = jnp.dot(x2, wqkv_ref[...],
                  preferred_element_type=jnp.float32) + bqkv_ref[...]
    scale = 1.0 / float(hd_true) ** 0.5

    attn = jnp.zeros((r, dp), jnp.float32)
    for h in range(nhead):                              # static head loop
        q = qkv[:, h * hd_pad:(h + 1) * hd_pad].reshape(bblk, t, hd_pad)
        k = qkv[:, (nhead + h) * hd_pad:(nhead + h + 1) * hd_pad].reshape(bblk, t, hd_pad)
        v = qkv[:, (2 * nhead + h) * hd_pad:(2 * nhead + h + 1) * hd_pad].reshape(bblk, t, hd_pad)
        s = jnp.einsum('bqd,bkd->bqk', q, k,
                       preferred_element_type=jnp.float32) * scale          # [Bblk,T,T]
        s = s - jnp.max(s, axis=-1, keepdims=True)
        p = jnp.exp(s)
        p = p * pl.reciprocal(jnp.sum(p, axis=-1, keepdims=True), approx=True)
        oh = jnp.einsum('bqk,bkd->bqd', p, v,
                        preferred_element_type=jnp.float32)                 # [Bblk,T,hd_p]
        # concat(heads) @ Wo == sum_h oh @ Wo[h]; Wo indexed on leading axis.
        attn = attn + jnp.dot(oh.reshape(r, hd_pad), wo_ref[h],
                              preferred_element_type=jnp.float32)
    a2 = attn + bo_ref[...]

    def _ln(u, g, bb):
        # Padded lanes of u are exactly zero; mean over the true width is the
        # plain sum / d_true.  Variance must be masked to the true lanes.
        mu = jnp.sum(u, axis=-1, keepdims=True) * (1.0 / d_true)
        diff = (u - mu) * lm
        var = jnp.sum(diff * diff, axis=-1, keepdims=True) * (1.0 / d_true)
        return (u - mu) * jax.lax.rsqrt(var + 1e-5) * g + bb

    y = _ln(x2 + a2, g1_ref[...], be1_ref[...])
    f = jnp.maximum(
        jnp.dot(y, w1_ref[...], preferred_element_type=jnp.float32) + bf1_ref[...], 0.0)
    f = jnp.dot(f, w2_ref[...], preferred_element_type=jnp.float32) + bf2_ref[...]
    z = _ln(y + f, g2_ref[...], be2_ref[...])

    # fused last-timestep linear head
    last = z.reshape(bblk, t, dp)[:, t - 1, :]                              # [Bblk,Dp]
    o_ref[...] = jnp.dot(last, wout_ref[...],
                         preferred_element_type=jnp.float32) + bout_ref[...]


# --------------------------------------------------------------------------
# Wrappers (glue)
# --------------------------------------------------------------------------
def gat_branch(node_features, edge_attr, edge_index, node_indices, params,
               heads, out_ch):
    n, f = node_features.shape
    e, ed = edge_attr.shape
    b = node_indices.shape[0]
    H, C = heads, out_ch
    hc = H * C
    eye_h = jnp.eye(H, dtype=jnp.float32)

    def pack_att(att):                      # [H,C] -> block matrix [H*C,H]
        return (att[:, :, None] * eye_h[:, None, :]).reshape(hc, H)

    def stack(name, fn=lambda a: a):
        return jnp.stack([fn(params["gat1"][name]), fn(params["gat2"][name])])

    w_lin2 = stack("w_lin")
    w_edge2 = stack("w_edge")
    a_src2 = stack("att_src", pack_att)
    a_dst2 = stack("att_dst", pack_att)
    a_edge2 = stack("att_edge", pack_att)
    bias2 = stack("bias", lambda x: x.reshape(1, C))

    # tiny constant helper matrices: head-replicate [H,H*C], head-pool [H*C,C]
    rep = (jnp.arange(H)[:, None] == (jnp.arange(hc)[None, :] // C)).astype(jnp.float32)
    pool = ((jnp.arange(hc)[:, None] % C) == jnp.arange(C)[None, :]).astype(jnp.float32)

    ei = edge_index.astype(jnp.int32)                       # [2,E]
    eit = ei.T                                              # [E,2]
    ni = node_indices.astype(jnp.int32).reshape(b, 1)       # [B,1]

    def const(shape):
        nd = len(shape)
        return pl.BlockSpec(shape, lambda l, _nd=nd: (0,) * _nd)

    def perlayer(shape):
        nd = len(shape)
        return pl.BlockSpec(shape, lambda l, _nd=nd: (l,) + (0,) * (_nd - 1))

    in_specs = [
        const((n, f)), const((e, ed)), const((2, e)), const((e, 2)), const((b, 1)),
        const((ed, C)), const((1, C)),
        perlayer((1, f, hc)), perlayer((1, C, hc)),
        perlayer((1, hc, H)), perlayer((1, hc, H)), perlayer((1, hc, H)),
        perlayer((1, 1, C)),
        const((H, hc)), const((hc, C)),
    ]

    # rough cost / VMEM sizing hints for the scheduler / Mosaic
    flops = 4 * (n * f * hc + e * C * hc + n * C * hc + 3 * (n + e) * hc * H
                 + 2 * e * n * H + e * n * hc + n * e * (H + hc) + n * hc * C
                 + b * n * C) + 2 * (e * ed * C + n * e * C)
    trans = 2 * (e * H + n * H)
    bytes_acc = 4 * (n * f + e * ed + 4 * e + b + ed * C + C
                     + 2 * (f * hc + C * hc + 3 * hc * H + C)
                     + H * hc + hc * C + 2 * b * C)
    work_bytes = 4 * (5 * e * n + 4 * e * hc + 8 * n * hc + n * e + e * ed
                      + n * f + 2 * (f * hc + C * hc) + b * n)
    vmem_limit = int(min(64 * 1024 * 1024, max(32 * 1024 * 1024, 4 * work_bytes)))

    out = pl.pallas_call(
        functools.partial(_gat_layer_kernel, heads=H, out_ch=C),
        out_shape=jax.ShapeDtypeStruct((2, b, C), jnp.float32),
        grid=(2,),                                          # one GATConv per step
        in_specs=in_specs,
        out_specs=pl.BlockSpec((1, b, C), lambda l: (l, 0, 0)),
        compiler_params=pltpu.CompilerParams(
            dimension_semantics=("parallel",),              # layers independent
            vmem_limit_bytes=vmem_limit),
        cost_estimate=pl.CostEstimate(flops=int(flops), transcendentals=int(trans),
                                      bytes_accessed=int(bytes_acc)),
    )(node_features, edge_attr, ei, eit, ni,
      params["w_ea"], params["b_ea"].reshape(1, C),
      w_lin2, w_edge2, a_src2, a_dst2, a_edge2, bias2, rep, pool)

    # [2, B, C] -> [B, 2C]  (== concat(gat1_out, gat2_out))
    return out.transpose(1, 0, 2).reshape(b, 2 * C)


def _pick_bblk(b, t):
    target = max(1, 256 // max(t, 1))
    if b <= target:
        return b
    for cand in range(min(b, target), 0, -1):
        if b % cand == 0 and (cand % 8 == 0 or cand == b):
            return cand
    return b


def transformer_head(x_pad, tr, nhead, d_true):
    b, t, dp = x_pad.shape
    d = d_true
    hd = d // nhead
    hd_p = _round_up(hd, 8)
    dff = tr["w_ff1"].shape[1]
    dff_p = _round_up(dff, 128)
    bblk = _pick_bblk(b, t)

    def pad2(w, rp, cp):
        return jnp.zeros((rp, cp), jnp.float32).at[:w.shape[0], :w.shape[1]].set(w)

    def pad_row(v, cp):
        return pad2(v.reshape(1, -1), 1, cp)

    # Fused, head-padded QKV: columns [(kind*nhead + h)*hd_p : +hd] hold the
    # true weights; everything else is zero (padded lanes stay exactly zero).
    wqkv = jnp.zeros((dp, 3 * nhead * hd_p), jnp.float32)
    bqkv = jnp.zeros((1, 3 * nhead * hd_p), jnp.float32)
    for kind, (w, bias) in enumerate(((tr["wq"], tr["bq"]),
                                      (tr["wk"], tr["bk"]),
                                      (tr["wv"], tr["bv"]))):
        for h in range(nhead):
            c0 = (kind * nhead + h) * hd_p
            wqkv = wqkv.at[:d, c0:c0 + hd].set(w[:, h * hd:(h + 1) * hd])
            bqkv = bqkv.at[0, c0:c0 + hd].set(bias[h * hd:(h + 1) * hd])

    wo = jnp.zeros((nhead, hd_p, dp), jnp.float32)          # leading-axis head index
    for h in range(nhead):
        wo = wo.at[h, :hd, :d].set(tr["wo"][h * hd:(h + 1) * hd, :])

    pos_p = pad2(tr["pos"], t, dp)
    lanemask = pad_row(jnp.ones((d,), jnp.float32), dp)
    bo_p = pad_row(tr["bo"], dp)
    g1_p, be1_p = pad_row(tr["g1"], dp), pad_row(tr["be1"], dp)
    g2_p, be2_p = pad_row(tr["g2"], dp), pad_row(tr["be2"], dp)
    w1_p = pad2(tr["w_ff1"], dp, dff_p)
    b1_p = pad_row(tr["b_ff1"], dff_p)
    w2_p = pad2(tr["w_ff2"], dff_p, dp)
    b2_p = pad_row(tr["b_ff2"], dp)
    wout_p = pad2(tr["w_out"], dp, 1)
    bout_p = tr["b_out"].reshape(1, 1)

    def const(shape):
        nd = len(shape)
        return pl.BlockSpec(shape, lambda i, _nd=nd: (0,) * _nd)

    in_specs = [
        pl.BlockSpec((bblk, t, dp), lambda i: (i, 0, 0)),   # x (batch block)
        const((t, dp)), const((1, dp)),                     # pos, lane mask
        const((dp, 3 * nhead * hd_p)), const((1, 3 * nhead * hd_p)),
        const((nhead, hd_p, dp)), const((1, dp)),           # wo, bo
        const((1, dp)), const((1, dp)),                     # ln1
        const((dp, dff_p)), const((1, dff_p)),              # ffn1
        const((dff_p, dp)), const((1, dp)),                 # ffn2
        const((1, dp)), const((1, dp)),                     # ln2
        const((dp, 1)), const((1, 1)),                      # output head
    ]
    out = pl.pallas_call(
        functools.partial(_encoder_kernel, nhead=nhead, hd_true=hd,
                          hd_pad=hd_p, d_true=d),
        out_shape=jax.ShapeDtypeStruct((b, 1), jnp.float32),
        grid=(b // bblk,),
        in_specs=in_specs,
        out_specs=pl.BlockSpec((bblk, 1), lambda i: (i, 0)),
        compiler_params=pltpu.CompilerParams(dimension_semantics=("parallel",)),
    )(x_pad, pos_p, lanemask, wqkv, bqkv, wo, bo_p,
      g1_p, be1_p, w1_p, b1_p, w2_p, b2_p, g2_p, be2_p, wout_p, bout_p)
    return out


@functools.partial(jax.jit, static_argnames=("heads", "out_ch", "nhead"))
def gat_transformer_forward(params, sequences, edge_index, edge_attr,
                            node_features, node_indices, *, heads, out_ch, nhead):
    # 1+2) edge transform + both GAT layers (+ReLU) + node gather: ONE launch,
    #      size-2 "parallel" grid over the two (independent) GATConv layers.
    gcat = gat_branch(node_features, edge_attr, edge_index, node_indices,
                      params, heads, out_ch)                      # [B, 2C]

    b, t, sf = sequences.shape
    d_true = sf + 2 * out_ch
    dp = _round_up(d_true, 128)
    gcat_rep = jnp.broadcast_to(gcat[:, None, :], (b, t, 2 * out_ch))
    padzeros = jnp.zeros((b, t, dp - d_true), jnp.float32)
    combined = jnp.concatenate([sequences, gcat_rep, padzeros], axis=-1)  # [B,T,Dp]

    # 3) TimeSeriesTransformer
    # TODO(synk): TimeSeriesTransformer class is not provided in the reference;
    # implemented as pos-emb + single post-LN encoder layer + last-step head.
    return transformer_head(combined, params["tr"], nhead, d_true)   # [B, 1]


# --------------------------------------------------------------------------
# Deterministic parameter init
# --------------------------------------------------------------------------
def init_params(key, node_f, gat_out, gat_heads, edge_dim, seq_len, d_model):
    ks = iter(jax.random.split(key, 40))

    def w(shape, s=0.1):
        return jax.random.normal(next(ks), shape, jnp.float32) * s

    def gat_params():
        return dict(
            w_lin=w((node_f, gat_heads * gat_out)),
            w_edge=w((gat_out, gat_heads * gat_out)),
            att_src=w((gat_heads, gat_out)),
            att_dst=w((gat_heads, gat_out)),
            att_edge=w((gat_heads, gat_out)),
            bias=w((gat_out,)),
        )

    d_ff = 4 * d_model
    tr = dict(
        pos=w((seq_len, d_model)),
        wq=w((d_model, d_model)), bq=w((d_model,)),
        wk=w((d_model, d_model)), bk=w((d_model,)),
        wv=w((d_model, d_model)), bv=w((d_model,)),
        wo=w((d_model, d_model)), bo=w((d_model,)),
        g1=jnp.ones((d_model,), jnp.float32), be1=jnp.zeros((d_model,), jnp.float32),
        w_ff1=w((d_model, d_ff)), b_ff1=w((d_ff,)),
        w_ff2=w((d_ff, d_model)), b_ff2=w((d_model,)),
        g2=jnp.ones((d_model,), jnp.float32), be2=jnp.zeros((d_model,), jnp.float32),
        w_out=w((d_model, 1)), b_out=w((1,)),
    )
    return dict(
        w_ea=w((edge_dim, gat_out)), b_ea=w((gat_out,)),
        gat1=gat_params(), gat2=gat_params(), tr=tr,
    )


# --------------------------------------------------------------------------
if __name__ == "__main__":
    NODE_F, SEQ_F, SEQ_LEN = 8, 6, 8
    GAT_OUT, GAT_HEADS, EDGE_DIM = 8, 2, 4
    N_NODES, N_EDGES, BATCH, NHEAD = 12, 24, 2, 2
    D_MODEL = SEQ_F + 2 * GAT_OUT

    key = jax.random.PRNGKey(0)
    keys = jax.random.split(key, 8)
    sequences = jax.random.normal(keys[0], (BATCH, SEQ_LEN, SEQ_F), jnp.float32)
    node_features = jax.random.normal(keys[1], (N_NODES, NODE_F), jnp.float32)
    edge_attr = jax.random.normal(keys[2], (N_EDGES, EDGE_DIM), jnp.float32)
    src = jax.random.randint(keys[3], (N_EDGES,), 0, N_NODES)
    off = jax.random.randint(keys[4], (N_EDGES,), 1, N_NODES)
    dst = (src + off) % N_NODES                       # no self-loops in the raw graph
    edge_index = jnp.stack([src, dst]).astype(jnp.int32)
    node_indices = jax.random.randint(keys[5], (BATCH,), 0, N_NODES).astype(jnp.int32)

    params = init_params(keys[6], NODE_F, GAT_OUT, GAT_HEADS, EDGE_DIM, SEQ_LEN, D_MODEL)

    out = gat_transformer_forward(
        params, sequences, edge_index, edge_attr, node_features, node_indices,
        heads=GAT_HEADS, out_ch=GAT_OUT, nhead=NHEAD)
    jax.block_until_ready(out)
    assert out.shape == (BATCH, 1)
    print("KERNEL_OK")
</pallas_src>

<mosaic_0001>
module attributes {stable_mosaic.version = 11 : i64} {
  func.func @_gat_layer_kernel(%arg0: i32, %arg1: memref<12x8xf32, #tpu.memory_space<vmem>>, %arg2: memref<24x4xf32, #tpu.memory_space<vmem>>, %arg3: memref<2x24xi32, #tpu.memory_space<vmem>>, %arg4: memref<24x2xi32, #tpu.memory_space<vmem>>, %arg5: memref<2x1xi32, #tpu.memory_space<vmem>>, %arg6: memref<4x8xf32, #tpu.memory_space<vmem>>, %arg7: memref<1x8xf32, #tpu.memory_space<vmem>>, %arg8: memref<1x8x16xf32, #tpu.memory_space<vmem>>, %arg9: memref<1x8x16xf32, #tpu.memory_space<vmem>>, %arg10: memref<1x16x2xf32, #tpu.memory_space<vmem>>, %arg11: memref<1x16x2xf32, #tpu.memory_space<vmem>>, %arg12: memref<1x16x2xf32, #tpu.memory_space<vmem>>, %arg13: memref<1x1x8xf32, #tpu.memory_space<vmem>>, %arg14: memref<2x16xf32, #tpu.memory_space<vmem>>, %arg15: memref<16x8xf32, #tpu.memory_space<vmem>>, %arg16: memref<1x2x8xf32, #tpu.memory_space<vmem>>) attributes {dimension_semantics = [#tpu.dimension_semantics<parallel>], iteration_bounds = array<i64: 2>, scalar_prefetch = 0 : i64, scratch_operands = 0 : i64, tpu.core_type = #tpu.core_type<tc>, window_params = [{pipeline_mode = #tpu.pipeline_mode<synchronous>, transform_indices = @transform_0, window_bounds = array<i64: 12, 8>}, {pipeline_mode = #tpu.pipeline_mode<synchronous>, transform_indices = @transform_1, window_bounds = array<i64: 24, 4>}, {pipeline_mode = #tpu.pipeline_mode<synchronous>, transform_indices = @transform_2, window_bounds = array<i64: 2, 24>}, {pipeline_mode = #tpu.pipeline_mode<synchronous>, transform_indices = @transform_3, window_bounds = array<i64: 24, 2>}, {pipeline_mode = #tpu.pipeline_mode<synchronous>, transform_indices = @transform_4, window_bounds = array<i64: 2, 1>}, {pipeline_mode = #tpu.pipeline_mode<synchronous>, transform_indices = @transform_5, window_bounds = array<i64: 4, 8>}, {pipeline_mode = #tpu.pipeline_mode<synchronous>, transform_indices = @transform_6, window_bounds = array<i64: 1, 8>}, {transform_indices = @transform_7, window_bounds = array<i64: 1, 8, 16>}, {transform_indices = @transform_8, window_bounds = array<i64: 1, 8, 16>}, {transform_indices = @transform_9, window_bounds = array<i64: 1, 16, 2>}, {transform_indices = @transform_10, window_bounds = array<i64: 1, 16, 2>}, {transform_indices = @transform_11, window_bounds = array<i64: 1, 16, 2>}, {transform_indices = @transform_12, window_bounds = array<i64: 1, 1, 8>}, {pipeline_mode = #tpu.pipeline_mode<synchronous>, transform_indices = @transform_13, window_bounds = array<i64: 2, 16>}, {pipeline_mode = #tpu.pipeline_mode<synchronous>, transform_indices = @transform_14, window_bounds = array<i64: 16, 8>}, {transform_indices = @transform_15, window_bounds = array<i64: 1, 2, 8>}]} {
    %c0 = arith.constant 0 : index
    %c0_0 = arith.constant 0 : index
    %0 = vector.load %arg1[%c0, %c0_0] : memref<12x8xf32, #tpu.memory_space<vmem>>, vector<12x8xf32>
    %1 = tpu.iota {dimensions = array<i32: 1>} : vector<24x12xi32>
    %c0_1 = arith.constant 0 : index
    %c0_2 = arith.constant 0 : index
    %2 = vector.load %arg4[%c0_1, %c0_2] : memref<24x2xi32, #tpu.memory_space<vmem>>, vector<24x1xi32>
    %3 = vector.broadcast %2 : vector<24x1xi32> to vector<24x12xi32>
    %4 = arith.cmpi eq, %3, %1 : vector<24x12xi32>
    %5 = arith.extui %4 : vector<24x12xi1> to vector<24x12xi32>
    %6 = arith.sitofp %5 : vector<24x12xi32> to vector<24x12xf32>
    %c0_3 = arith.constant 0 : index
    %c1 = arith.constant 1 : index
    %7 = vector.load %arg4[%c0_3, %c1] : memref<24x2xi32, #tpu.memory_space<vmem>>, vector<24x1xi32>
    %8 = vector.broadcast %7 : vector<24x1xi32> to vector<24x12xi32>
    %9 = arith.cmpi eq, %8, %1 : vector<24x12xi32>
    %10 = arith.extui %9 : vector<24x12xi1> to vector<24x12xi32>
    %11 = arith.sitofp %10 : vector<24x12xi32> to vector<24x12xf32>
    %12 = tpu.iota {dimensions = array<i32: 0>} : vector<12x24xi32>
    %c1_4 = arith.constant 1 : index
    %c0_5 = arith.constant 0 : index
    %13 = vector.load %arg3[%c1_4, %c0_5] : memref<2x24xi32, #tpu.memory_space<vmem>>, vector<1x24xi32>
    %14 = vector.broadcast %13 : vector<1x24xi32> to vector<12x24xi32>
    %15 = arith.cmpi eq, %12, %14 : vector<12x24xi32>
    %16 = arith.extui %15 : vector<12x24xi1> to vector<12x24xi32>
    %17 = arith.sitofp %16 : vector<12x24xi32> to vector<12x24xf32>
    %cst = arith.constant 0.000000e+00 : f32
    %18 = vector.broadcast %cst : f32 to vector<12x24xf32>
    %19 = arith.cmpf ogt, %17, %18 : vector<12x24xf32>
    %20 = tpu.iota {dimensions = array<i32: 1>} : vector<2x12xi32>
    %c0_6 = arith.constant 0 : index
    %c0_7 = arith.constant 0 : index
    %21 = vector.load %arg5[%c0_6, %c0_7] : memref<2x1xi32, #tpu.memory_space<vmem>>, vector<2x1xi32>
    %22 = vector.broadcast %21 : vector<2x1xi32> to vector<2x12xi32>
    %23 = arith.cmpi eq, %22, %20 : vector<2x12xi32>
    %24 = arith.extui %23 : vector<2x12xi1> to vector<2x12xi32>
    %25 = arith.sitofp %24 : vector<2x12xi32> to vector<2x12xf32>
    %c0_8 = arith.constant 0 : index
    %c0_9 = arith.constant 0 : index
    %26 = vector.load %arg14[%c0_8, %c0_9] : memref<2x16xf32, #tpu.memory_space<vmem>>, vector<2x16xf32>
    %c0_10 = arith.constant 0 : index
    %c0_11 = arith.constant 0 : index
    %27 = vector.load %arg15[%c0_10, %c0_11] : memref<16x8xf32, #tpu.memory_space<vmem>>, vector<16x8xf32>
    %c0_12 = arith.constant 0 : index
    %c0_13 = arith.constant 0 : index
    %28 = vector.load %arg2[%c0_12, %c0_13] : memref<24x4xf32, #tpu.memory_space<vmem>>, vector<24x4xf32>
    %c0_14 = arith.constant 0 : index
    %c0_15 = arith.constant 0 : index
    %29 = vector.load %arg6[%c0_14, %c0_15] : memref<4x8xf32, #tpu.memory_space<vmem>>, vector<4x8xf32>
    %cst_16 = arith.constant dense<0.000000e+00> : vector<24x8xf32>
    %30 = tpu.matmul %28, %29, %cst_16 {dimension_numbers = #tpu.dot_dimension_numbers<[1], [0], [0], [1], [0, 0, 1, 1], [], []>} : vector<24x4xf32>, vector<4x8xf32>, vector<24x8xf32> -> vector<24x8xf32>
    %c0_17 = arith.constant 0 : index
    %c0_18 = arith.constant 0 : index
    %31 = vector.load %arg7[%c0_17, %c0_18] : memref<1x8xf32, #tpu.memory_space<vmem>>, vector<1x8xf32>
    %32 = vector.broadcast %31 : vector<1x8xf32> to vector<24x8xf32>
    %33 = arith.addf %30, %32 : vector<24x8xf32>
    %cst_19 = arith.constant dense<0.000000e+00> : vector<12xf32>
    %34 = vector.multi_reduction <add>, %17, %cst_19 [1] : vector<12x24xf32> to vector<12xf32>
    %35 = vector.shape_cast %34 : vector<12xf32> to vector<12x1xf32>
    %cst_20 = arith.constant dense<0.000000e+00> : vector<12x8xf32>
    %36 = tpu.matmul %17, %33, %cst_20 {dimension_numbers = #tpu.dot_dimension_numbers<[1], [0], [0], [1], [0, 0, 1, 1], [], []>} : vector<12x24xf32>, vector<24x8xf32>, vector<12x8xf32> -> vector<12x8xf32>
    %cst_21 = arith.constant 1.000000e+00 : f32
    %37 = vector.broadcast %cst_21 : f32 to vector<12x1xf32>
    %38 = arith.maximumf %35, %37 : vector<12x1xf32>
    %39 = vector.broadcast %38 : vector<12x1xf32> to vector<12x8xf32>
    %40 = arith.divf %36, %39 : vector<12x8xf32>
    %c0_22 = arith.constant 0 : index
    %c0_23 = arith.constant 0 : index
    %c0_24 = arith.constant 0 : index
    %41 = vector.load %arg8[%c0_22, %c0_23, %c0_24] : memref<1x8x16xf32, #tpu.memory_space<vmem>>, vector<1x8x16xf32>
    %42 = vector.shape_cast %41 : vector<1x8x16xf32> to vector<8x16xf32>
    %c0_25 = arith.constant 0 : index
    %c0_26 = arith.constant 0 : index
    %c0_27 = arith.constant 0 : index
    %43 = vector.load %arg9[%c0_25, %c0_26, %c0_27] : memref<1x8x16xf32, #tpu.memory_space<vmem>>, vector<1x8x16xf32>
    %44 = vector.shape_cast %43 : vector<1x8x16xf32> to vector<8x16xf32>
    %cst_28 = arith.constant dense<0.000000e+00> : vector<12x16xf32>
    %45 = tpu.matmul %0, %42, %cst_28 {dimension_numbers = #tpu.dot_dimension_numbers<[1], [0], [0], [1], [0, 0, 1, 1], [], []>} : vector<12x8xf32>, vector<8x16xf32>, vector<12x16xf32> -> vector<12x16xf32>
    %cst_29 = arith.constant dense<0.000000e+00> : vector<24x16xf32>
    %46 = tpu.matmul %33, %44, %cst_29 {dimension_numbers = #tpu.dot_dimension_numbers<[1], [0], [0], [1], [0, 0, 1, 1], [], []>} : vector<24x8xf32>, vector<8x16xf32>, vector<24x16xf32> -> vector<24x16xf32>
    %cst_30 = arith.constant dense<0.000000e+00> : vector<12x16xf32>
    %47 = tpu.matmul %40, %44, %cst_30 {dimension_numbers = #tpu.dot_dimension_numbers<[1], [0], [0], [1], [0, 0, 1, 1], [], []>} : vector<12x8xf32>, vector<8x16xf32>, vector<12x16xf32> -> vector<12x16xf32>
    %c0_31 = arith.constant 0 : index
    %c0_32 = arith.constant 0 : index
    %c0_33 = arith.constant 0 : index
    %48 = vector.load %arg10[%c0_31, %c0_32, %c0_33] : memref<1x16x2xf32, #tpu.memory_space<vmem>>, vector<1x16x2xf32>
    %49 = vector.shape_cast %48 : vector<1x16x2xf32> to vector<16x2xf32>
    %cst_34 = arith.constant dense<0.000000e+00> : vector<12x2xf32>
    %50 = tpu.matmul %45, %49, %cst_34 {dimension_numbers = #tpu.dot_dimension_numbers<[1], [0], [0], [1], [0, 0, 1, 1], [], []>} : vector<12x16xf32>, vector<16x2xf32>, vector<12x2xf32> -> vector<12x2xf32>
    %c0_35 = arith.constant 0 : index
    %c0_36 = arith.constant 0 : index
    %c0_37 = arith.constant 0 : index
    %51 = vector.load %arg11[%c0_35, %c0_36, %c0_37] : memref<1x16x2xf32, #tpu.memory_space<vmem>>, vector<1x16x2xf32>
    %52 = vector.shape_cast %51 : vector<1x16x2xf32> to vector<16x2xf32>
    %cst_38 = arith.constant dense<0.000000e+00> : vector<12x2xf32>
    %53 = tpu.matmul %45, %52, %cst_38 {dimension_numbers = #tpu.dot_dimension_numbers<[1], [0], [0], [1], [0, 0, 1, 1], [], []>} : vector<12x16xf32>, vector<16x2xf32>, vector<12x2xf32> -> vector<12x2xf32>
    %c0_39 = arith.constant 0 : index
    %c0_40 = arith.constant 0 : index
    %c0_41 = arith.constant 0 : index
    %54 = vector.load %arg12[%c0_39, %c0_40, %c0_41] : memref<1x16x2xf32, #tpu.memory_space<vmem>>, vector<1x16x2xf32>
    %55 = vector.shape_cast %54 : vector<1x16x2xf32> to vector<16x2xf32>
    %cst_42 = arith.constant dense<0.000000e+00> : vector<24x2xf32>
    %56 = tpu.matmul %46, %55, %cst_42 {dimension_numbers = #tpu.dot_dimension_numbers<[1], [0], [0], [1], [0, 0, 1, 1], [], []>} : vector<24x16xf32>, vector<16x2xf32>, vector<24x2xf32> -> vector<24x2xf32>
    %c0_43 = arith.constant 0 : index
    %c0_44 = arith.constant 0 : index
    %c0_45 = arith.constant 0 : index
    %57 = vector.load %arg12[%c0_43, %c0_44, %c0_45] : memref<1x16x2xf32, #tpu.memory_space<vmem>>, vector<1x16x2xf32>
    %58 = vector.shape_cast %57 : vector<1x16x2xf32> to vector<16x2xf32>
    %cst_46 = arith.constant dense<0.000000e+00> : vector<12x2xf32>
    %59 = tpu.matmul %47, %58, %cst_46 {dimension_numbers = #tpu.dot_dimension_numbers<[1], [0], [0], [1], [0, 0, 1, 1], [], []>} : vector<12x16xf32>, vector<16x2xf32>, vector<12x2xf32> -> vector<12x2xf32>
    %cst_47 = arith.constant dense<0.000000e+00> : vector<24x2xf32>
    %60 = tpu.matmul %6, %50, %cst_47 {dimension_numbers = #tpu.dot_dimension_numbers<[1], [0], [0], [1], [0, 0, 1, 1], [], []>} : vector<24x12xf32>, vector<12x2xf32>, vector<24x2xf32> -> vector<24x2xf32>
    %cst_48 = arith.constant dense<0.000000e+00> : vector<24x2xf32>
    %61 = tpu.matmul %11, %53, %cst_48 {dimension_numbers = #tpu.dot_dimension_numbers<[1], [0], [0], [1], [0, 0, 1, 1], [], []>} : vector<24x12xf32>, vector<12x2xf32>, vector<24x2xf32> -> vector<24x2xf32>
    %62 = arith.addf %60, %61 : vector<24x2xf32>
    %63 = arith.addf %62, %56 : vector<24x2xf32>
    %cst_49 = arith.constant 0.000000e+00 : f32
    %64 = vector.broadcast %cst_49 : f32 to vector<24x2xf32>
    %65 = arith.cmpf ogt, %63, %64 : vector<24x2xf32>
    %cst_50 = arith.constant 2.000000e-01 : f32
    %66 = vector.broadcast %cst_50 : f32 to vector<24x2xf32>
    %67 = arith.mulf %66, %63 : vector<24x2xf32>
    %68 = arith.select %65, %63, %67 : vector<24x2xi1>, vector<24x2xf32>
    %69 = arith.addf %50, %53 : vector<12x2xf32>
    %70 = arith.addf %69, %59 : vector<12x2xf32>
    %cst_51 = arith.constant 0.000000e+00 : f32
    %71 = vector.broadcast %cst_51 : f32 to vector<12x2xf32>
    %72 = arith.cmpf ogt, %70, %71 : vector<12x2xf32>
    %cst_52 = arith.constant 2.000000e-01 : f32
    %73 = vector.broadcast %cst_52 : f32 to vector<12x2xf32>
    %74 = arith.mulf %73, %70 : vector<12x2xf32>
    %75 = arith.select %72, %70, %74 : vector<12x2xi1>, vector<12x2xf32>
    %76 = vector.extract_strided_slice %68 {offsets = [0, 0], sizes = [24, 1], strides = [1, 1]} : vector<24x2xf32> to vector<24x1xf32>
    %77 = tpu.transpose %76, [1, 0] : vector<24x1xf32> -> vector<1x24xf32>
    %cst_53 = arith.constant -1.000000e+30 : f32
    %78 = vector.shape_cast %77 : vector<1x24xf32> to vector<1x24xf32>
    %79 = vector.broadcast %78 : vector<1x24xf32> to vector<12x24xf32>
    %80 = vector.broadcast %cst_53 : f32 to vector<12x24xf32>
    %81 = arith.select %19, %79, %80 : vector<12x24xi1>, vector<12x24xf32>
    %cst_54 = arith.constant dense<0xFF800000> : vector<12xf32>
    %82 = vector.multi_reduction <maximumf>, %81, %cst_54 [1] : vector<12x24xf32> to vector<12xf32>
    %83 = vector.shape_cast %82 : vector<12xf32> to vector<12x1xf32>
    %84 = vector.extract_strided_slice %68 {offsets = [0, 1], sizes = [24, 1], strides = [1, 1]} : vector<24x2xf32> to vector<24x1xf32>
    %85 = tpu.transpose %84, [1, 0] : vector<24x1xf32> -> vector<1x24xf32>
    %cst_55 = arith.constant -1.000000e+30 : f32
    %86 = vector.shape_cast %85 : vector<1x24xf32> to vector<1x24xf32>
    %87 = vector.broadcast %86 : vector<1x24xf32> to vector<12x24xf32>
    %88 = vector.broadcast %cst_55 : f32 to vector<12x24xf32>
    %89 = arith.select %19, %87, %88 : vector<12x24xi1>, vector<12x24xf32>
    %cst_56 = arith.constant dense<0xFF800000> : vector<12xf32>
    %90 = vector.multi_reduction <maximumf>, %89, %cst_56 [1] : vector<12x24xf32> to vector<12xf32>
    %91 = vector.shape_cast %90 : vector<12xf32> to vector<12x1xf32>
    %92 = tpu.concatenate %83, %91 in 1 : vector<12x1xf32>, vector<12x1xf32> -> vector<12x2xf32>
    %93 = arith.maximumf %92, %75 : vector<12x2xf32>
    %cst_57 = arith.constant dense<0.000000e+00> : vector<24x2xf32>
    %94 = tpu.matmul %11, %93, %cst_57 {dimension_numbers = #tpu.dot_dimension_numbers<[1], [0], [0], [1], [0, 0, 1, 1], [], []>} : vector<24x12xf32>, vector<12x2xf32>, vector<24x2xf32> -> vector<24x2xf32>
    %95 = arith.subf %68, %94 : vector<24x2xf32>
    %96 = math.exp %95 : vector<24x2xf32>
    %97 = arith.subf %75, %93 : vector<12x2xf32>
    %98 = math.exp %97 : vector<12x2xf32>
    %cst_58 = arith.constant dense<0.000000e+00> : vector<24x16xf32>
    %99 = tpu.matmul %6, %45, %cst_58 {dimension_numbers = #tpu.dot_dimension_numbers<[1], [0], [0], [1], [0, 0, 1, 1], [], []>} : vector<24x12xf32>, vector<12x16xf32>, vector<24x16xf32> -> vector<24x16xf32>
    %cst_59 = arith.constant dense<0.000000e+00> : vector<24x16xf32>
    %100 = tpu.matmul %96, %26, %cst_59 {dimension_numbers = #tpu.dot_dimension_numbers<[1], [0], [0], [1], [0, 0, 1, 1], [], []>} : vector<24x2xf32>, vector<2x16xf32>, vector<24x16xf32> -> vector<24x16xf32>
    %101 = arith.mulf %99, %100 : vector<24x16xf32>
    %cst_60 = arith.constant dense<0.000000e+00> : vector<12x2xf32>
    %102 = tpu.matmul %17, %96, %cst_60 {dimension_numbers = #tpu.dot_dimension_numbers<[1], [0], [0], [1], [0, 0, 1, 1], [], []>} : vector<12x24xf32>, vector<24x2xf32>, vector<12x2xf32> -> vector<12x2xf32>
    %103 = arith.addf %102, %98 : vector<12x2xf32>
    %104 = tpu.reciprocal %103 {approx = true} : vector<12x2xf32> -> vector<12x2xf32>
    %cst_61 = arith.constant dense<0.000000e+00> : vector<12x16xf32>
    %105 = tpu.matmul %17, %101, %cst_61 {dimension_numbers = #tpu.dot_dimension_numbers<[1], [0], [0], [1], [0, 0, 1, 1], [], []>} : vector<12x24xf32>, vector<24x16xf32>, vector<12x16xf32> -> vector<12x16xf32>
    %cst_62 = arith.constant dense<0.000000e+00> : vector<12x16xf32>
    %106 = tpu.matmul %98, %26, %cst_62 {dimension_numbers = #tpu.dot_dimension_numbers<[1], [0], [0], [1], [0, 0, 1, 1], [], []>} : vector<12x2xf32>, vector<2x16xf32>, vector<12x16xf32> -> vector<12x16xf32>
    %107 = arith.mulf %106, %45 : vector<12x16xf32>
    %108 = arith.addf %105, %107 : vector<12x16xf32>
    %cst_63 = arith.constant dense<0.000000e+00> : vector<12x16xf32>
    %109 = tpu.matmul %104, %26, %cst_63 {dimension_numbers = #tpu.dot_dimension_numbers<[1], [0], [0], [1], [0, 0, 1, 1], [], []>} : vector<12x2xf32>, vector<2x16xf32>, vector<12x16xf32> -> vector<12x16xf32>
    %110 = arith.mulf %108, %109 : vector<12x16xf32>
    %cst_64 = arith.constant dense<0.000000e+00> : vector<12x8xf32>
    %111 = tpu.matmul %110, %27, %cst_64 {dimension_numbers = #tpu.dot_dimension_numbers<[1], [0], [0], [1], [0, 0, 1, 1], [], []>} : vector<12x16xf32>, vector<16x8xf32>, vector<12x8xf32> -> vector<12x8xf32>
    %cst_65 = arith.constant 5.000000e-01 : f32
    %112 = vector.broadcast %cst_65 : f32 to vector<12x8xf32>
    %113 = arith.mulf %111, %112 : vector<12x8xf32>
    %c0_66 = arith.constant 0 : index
    %c0_67 = arith.constant 0 : index
    %c0_68 = arith.constant 0 : index
    %114 = vector.load %arg13[%c0_66, %c0_67, %c0_68] : memref<1x1x8xf32, #tpu.memory_space<vmem>>, vector<1x1x8xf32>
    %115 = vector.shape_cast %114 : vector<1x1x8xf32> to vector<1x8xf32>
    %116 = vector.broadcast %115 : vector<1x8xf32> to vector<12x8xf32>
    %117 = arith.addf %113, %116 : vector<12x8xf32>
    %cst_69 = arith.constant 0.000000e+00 : f32
    %118 = vector.broadcast %cst_69 : f32 to vector<12x8xf32>
    %119 = arith.maximumf %117, %118 : vector<12x8xf32>
    %cst_70 = arith.constant dense<0.000000e+00> : vector<2x8xf32>
    %120 = tpu.matmul %25, %119, %cst_70 {dimension_numbers = #tpu.dot_dimension_numbers<[1], [0], [0], [1], [0, 0, 1, 1], [], []>} : vector<2x12xf32>, vector<12x8xf32>, vector<2x8xf32> -> vector<2x8xf32>
    %c0_71 = arith.constant 0 : index
    %c0_72 = arith.constant 0 : index
    %c0_73 = arith.constant 0 : index
    %121 = vector.load %arg16[%c0_71, %c0_72, %c0_73] : memref<1x2x8xf32, #tpu.memory_space<vmem>>, vector<1x2x8xf32>
    %122 = vector.shape_cast %121 : vector<1x2x8xf32> to vector<2x8xf32>
    %123 = vector.shape_cast %120 : vector<2x8xf32> to vector<1x2x8xf32>
    tpu.vector_store %arg16[%c0_71, %c0_72, %c0_73], %123 {strides = array<i32>} : memref<1x2x8xf32, #tpu.memory_space<vmem>>, vector<1x2x8xf32>,
    return
  }
  func.func @transform_0(%arg0: i32) -> (i32, i32) {
    %c0_i32 = arith.constant 0 : i32
    %c0_i32_0 = arith.constant 0 : i32
    %c0_i32_1 = arith.constant 0 : i32
    return %c0_i32, %c0_i32_0 : i32, i32
  }
  func.func @transform_1(%arg0: i32) -> (i32, i32) {
    %c0_i32 = arith.constant 0 : i32
    %c0_i32_0 = arith.constant 0 : i32
    %c0_i32_1 = arith.constant 0 : i32
    return %c0_i32, %c0_i32_0 : i32, i32
  }
  func.func @transform_2(%arg0: i32) -> (i32, i32) {
    %c0_i32 = arith.constant 0 : i32
    %c0_i32_0 = arith.constant 0 : i32
    %c0_i32_1 = arith.constant 0 : i32
    return %c0_i32, %c0_i32_0 : i32, i32
  }
  func.func @transform_3(%arg0: i32) -> (i32, i32) {
    %c0_i32 = arith.constant 0 : i32
    %c0_i32_0 = arith.constant 0 : i32
    %c0_i32_1 = arith.constant 0 : i32
    return %c0_i32, %c0_i32_0 : i32, i32
  }
  func.func @transform_4(%arg0: i32) -> (i32, i32) {
    %c0_i32 = arith.constant 0 : i32
    %c0_i32_0 = arith.constant 0 : i32
    %c0_i32_1 = arith.constant 0 : i32
    return %c0_i32, %c0_i32_0 : i32, i32
  }
  func.func @transform_5(%arg0: i32) -> (i32, i32) {
    %c0_i32 = arith.constant 0 : i32
    %c0_i32_0 = arith.constant 0 : i32
    %c0_i32_1 = arith.constant 0 : i32
    return %c0_i32, %c0_i32_0 : i32, i32
  }
  func.func @transform_6(%arg0: i32) -> (i32, i32) {
    %c0_i32 = arith.constant 0 : i32
    %c0_i32_0 = arith.constant 0 : i32
    %c0_i32_1 = arith.constant 0 : i32
    return %c0_i32, %c0_i32_0 : i32, i32
  }
  func.func @transform_7(%arg0: i32) -> (i32, i32, i32) {
    %c0_i32 = arith.constant 0 : i32
    %c0_i32_0 = arith.constant 0 : i32
    %c0_i32_1 = arith.constant 0 : i32
    return %arg0, %c0_i32, %c0_i32_0 : i32, i32, i32
  }
  func.func @transform_8(%arg0: i32) -> (i32, i32, i32) {
    %c0_i32 = arith.constant 0 : i32
    %c0_i32_0 = arith.constant 0 : i32
    %c0_i32_1 = arith.constant 0 : i32
    return %arg0, %c0_i32, %c0_i32_0 : i32, i32, i32
  }
  func.func @transform_9(%arg0: i32) -> (i32, i32, i32) {
    %c0_i32 = arith.constant 0 : i32
    %c0_i32_0 = arith.constant 0 : i32
    %c0_i32_1 = arith.constant 0 : i32
    return %arg0, %c0_i32, %c0_i32_0 : i32, i32, i32
  }
  func.func @transform_10(%arg0: i32) -> (i32, i32, i32) {
    %c0_i32 = arith.constant 0 : i32
    %c0_i32_0 = arith.constant 0 : i32
    %c0_i32_1 = arith.constant 0 : i32
    return %arg0, %c0_i32, %c0_i32_0 : i32, i32, i32
  }
  func.func @transform_11(%arg0: i32) -> (i32, i32, i32) {
    %c0_i32 = arith.constant 0 : i32
    %c0_i32_0 = arith.constant 0 : i32
    %c0_i32_1 = arith.constant 0 : i32
    return %arg0, %c0_i32, %c0_i32_0 : i32, i32, i32
  }
  func.func @transform_12(%arg0: i32) -> (i32, i32, i32) {
    %c0_i32 = arith.constant 0 : i32
    %c0_i32_0 = arith.constant 0 : i32
    %c0_i32_1 = arith.constant 0 : i32
    return %arg0, %c0_i32, %c0_i32_0 : i32, i32, i32
  }
  func.func @transform_13(%arg0: i32) -> (i32, i32) {
    %c0_i32 = arith.constant 0 : i32
    %c0_i32_0 = arith.constant 0 : i32
    %c0_i32_1 = arith.constant 0 : i32
    return %c0_i32, %c0_i32_0 : i32, i32
  }
  func.func @transform_14(%arg0: i32) -> (i32, i32) {
    %c0_i32 = arith.constant 0 : i32
    %c0_i32_0 = arith.constant 0 : i32
    %c0_i32_1 = arith.constant 0 : i32
    return %c0_i32, %c0_i32_0 : i32, i32
  }
  func.func @transform_15(%arg0: i32) -> (i32, i32, i32) {
    %c0_i32 = arith.constant 0 : i32
    %c0_i32_0 = arith.constant 0 : i32
    %c0_i32_1 = arith.constant 0 : i32
    return %arg0, %c0_i32, %c0_i32_0 : i32, i32, i32
  }
}

module attributes {stable_mosaic.version = 11 : i64} {
  func.func @_encoder_kernel(%arg0: i32, %arg1: memref<2x8x128xf32, #tpu.memory_space<vmem>>, %arg2: memref<8x128xf32, #tpu.memory_space<vmem>>, %arg3: memref<1x128xf32, #tpu.memory_space<vmem>>, %arg4: memref<128x96xf32, #tpu.memory_space<vmem>>, %arg5: memref<1x96xf32, #tpu.memory_space<vmem>>, %arg6: memref<2x16x128xf32, #tpu.memory_space<vmem>>, %arg7: memref<1x128xf32, #tpu.memory_space<vmem>>, %arg8: memref<1x128xf32, #tpu.memory_space<vmem>>, %arg9: memref<1x128xf32, #tpu.memory_space<vmem>>, %arg10: memref<128x128xf32, #tpu.memory_space<vmem>>, %arg11: memref<1x128xf32, #tpu.memory_space<vmem>>, %arg12: memref<128x128xf32, #tpu.memory_space<vmem>>, %arg13: memref<1x128xf32, #tpu.memory_space<vmem>>, %arg14: memref<1x128xf32, #tpu.memory_space<vmem>>, %arg15: memref<1x128xf32, #tpu.memory_space<vmem>>, %arg16: memref<128x1xf32, #tpu.memory_space<vmem>>, %arg17: memref<1x1xf32, #tpu.memory_space<vmem>>, %arg18: memref<2x1xf32, #tpu.memory_space<vmem>>) attributes {dimension_semantics = [#tpu.dimension_semantics<parallel>], iteration_bounds = array<i64: 1>, scalar_prefetch = 0 : i64, scratch_operands = 0 : i64, tpu.core_type = #tpu.core_type<tc>, window_params = [{transform_indices = @transform_0, window_bounds = array<i64: 2, 8, 128>}, {pipeline_mode = #tpu.pipeline_mode<synchronous>, transform_indices = @transform_1, window_bounds = array<i64: 8, 128>}, {pipeline_mode = #tpu.pipeline_mode<synchronous>, transform_indices = @transform_2, window_bounds = array<i64: 1, 128>}, {pipeline_mode = #tpu.pipeline_mode<synchronous>, transform_indices = @transform_3, window_bounds = array<i64: 128, 96>}, {pipeline_mode = #tpu.pipeline_mode<synchronous>, transform_indices = @transform_4, window_bounds = array<i64: 1, 96>}, {pipeline_mode = #tpu.pipeline_mode<synchronous>, transform_indices = @transform_5, window_bounds = array<i64: 2, 16, 128>}, {pipeline_mode = #tpu.pipeline_mode<synchronous>, transform_indices = @transform_6, window_bounds = array<i64: 1, 128>}, {pipeline_mode = #tpu.pipeline_mode<synchronous>, transform_indices = @transform_7, window_bounds = array<i64: 1, 128>}, {pipeline_mode = #tpu.pipeline_mode<synchronous>, transform_indices = @transform_8, window_bounds = array<i64: 1, 128>}, {pipeline_mode = #tpu.pipeline_mode<synchronous>, transform_indices = @transform_9, window_bounds = array<i64: 128, 128>}, {pipeline_mode = #tpu.pipeline_mode<synchronous>, transform_indices = @transform_10, window_bounds = array<i64: 1, 128>}, {pipeline_mode = #tpu.pipeline_mode<synchronous>, transform_indices = @transform_11, window_bounds = array<i64: 128, 128>}, {pipeline_mode = #tpu.pipeline_mode<synchronous>, transform_indices = @transform_12, window_bounds = array<i64: 1, 128>}, {pipeline_mode = #tpu.pipeline_mode<synchronous>, transform_indices = @transform_13, window_bounds = array<i64: 1, 128>}, {pipeline_mode = #tpu.pipeline_mode<synchronous>, transform_indices = @transform_14, window_bounds = array<i64: 1, 128>}, {pipeline_mode = #tpu.pipeline_mode<synchronous>, transform_indices = @transform_15, window_bounds = array<i64: 128, 1>}, {pipeline_mode = #tpu.pipeline_mode<synchronous>, transform_indices = @transform_16, window_bounds = array<i64: 1, 1>}, {transform_indices = @transform_17, window_bounds = array<i64: 2, 1>}]} {
    %c0 = arith.constant 0 : index
    %c0_0 = arith.constant 0 : index
    %c0_1 = arith.constant 0 : index
    %0 = vector.load %arg1[%c0, %c0_0, %c0_1] : memref<2x8x128xf32, #tpu.memory_space<vmem>>, vector<2x8x128xf32>
    %c0_2 = arith.constant 0 : index
    %c0_3 = arith.constant 0 : index
    %1 = vector.load %arg2[%c0_2, %c0_3] : memref<8x128xf32, #tpu.memory_space<vmem>>, vector<8x128xf32>
    %2 = vector.shape_cast %1 : vector<8x128xf32> to vector<1x8x128xf32>
    %3 = vector.broadcast %2 : vector<1x8x128xf32> to vector<2x8x128xf32>
    %4 = arith.addf %0, %3 : vector<2x8x128xf32>
    %5 = vector.shape_cast %4 : vector<2x8x128xf32> to vector<16x128xf32>
    %c0_4 = arith.constant 0 : index
    %c0_5 = arith.constant 0 : index
    %6 = vector.load %arg3[%c0_4, %c0_5] : memref<1x128xf32, #tpu.memory_space<vmem>>, vector<1x128xf32>
    %c0_6 = arith.constant 0 : index
    %c0_7 = arith.constant 0 : index
    %7 = vector.load %arg4[%c0_6, %c0_7] : memref<128x96xf32, #tpu.memory_space<vmem>>, vector<128x96xf32>
    %cst = arith.constant dense<0.000000e+00> : vector<16x96xf32>
    %8 = tpu.matmul %5, %7, %cst {dimension_numbers = #tpu.dot_dimension_numbers<[1], [0], [0], [1], [0, 0, 1, 1], [], []>} : vector<16x128xf32>, vector<128x96xf32>, vector<16x96xf32> -> vector<16x96xf32>
    %c0_8 = arith.constant 0 : index
    %c0_9 = arith.constant 0 : index
    %9 = vector.load %arg5[%c0_8, %c0_9] : memref<1x96xf32, #tpu.memory_space<vmem>>, vector<1x96xf32>
    %10 = vector.broadcast %9 : vector<1x96xf32> to vector<16x96xf32>
    %11 = arith.addf %8, %10 : vector<16x96xf32>
    %cst_10 = arith.constant 0.000000e+00 : f32
    %12 = vector.broadcast %cst_10 : f32 to vector<16x128xf32>
    %13 = vector.extract_strided_slice %11 {offsets = [0, 0], sizes = [16, 16], strides = [1, 1]} : vector<16x96xf32> to vector<16x16xf32>
    %14 = vector.shape_cast %13 : vector<16x16xf32> to vector<2x8x16xf32>
    %15 = vector.extract_strided_slice %11 {offsets = [0, 32], sizes = [16, 16], strides = [1, 1]} : vector<16x96xf32> to vector<16x16xf32>
    %16 = vector.shape_cast %15 : vector<16x16xf32> to vector<2x8x16xf32>
    %17 = vector.extract_strided_slice %11 {offsets = [0, 64], sizes = [16, 16], strides = [1, 1]} : vector<16x96xf32> to vector<16x16xf32>
    %18 = vector.shape_cast %17 : vector<16x16xf32> to vector<2x8x16xf32>
    "tpu.trace_start"() <{level = 10 : i32, message = "bqd,bkd->bqk"}> : () -> ()
    %cst_11 = arith.constant dense<0.000000e+00> : vector<2x8x8xf32>
    %19 = tpu.matmul %14, %16, %cst_11 {dimension_numbers = #tpu.dot_dimension_numbers<[2], [2], [1], [1], [0, 0, 0, 1, 1, 1], [0], [0]>} : vector<2x8x16xf32>, vector<2x8x16xf32>, vector<2x8x8xf32> -> vector<2x8x8xf32>
    "tpu.trace_stop"() : () -> ()
    %cst_12 = arith.constant 0.301511347 : f32
    %20 = vector.broadcast %cst_12 : f32 to vector<2x8x8xf32>
    %21 = arith.mulf %19, %20 : vector<2x8x8xf32>
    %cst_13 = arith.constant dense<0xFF800000> : vector<2x8xf32>
    %22 = vector.multi_reduction <maximumf>, %21, %cst_13 [2] : vector<2x8x8xf32> to vector<2x8xf32>
    %23 = vector.shape_cast %22 : vector<2x8xf32> to vector<2x8x1xf32>
    %24 = vector.broadcast %23 : vector<2x8x1xf32> to vector<2x8x8xf32>
    %25 = arith.subf %21, %24 : vector<2x8x8xf32>
    %26 = math.exp %25 : vector<2x8x8xf32>
    %cst_14 = arith.constant dense<0.000000e+00> : vector<2x8xf32>
    %27 = vector.multi_reduction <add>, %26, %cst_14 [2] : vector<2x8x8xf32> to vector<2x8xf32>
    %28 = vector.shape_cast %27 : vector<2x8xf32> to vector<2x8x1xf32>
    %29 = tpu.reciprocal %28 {approx = true} : vector<2x8x1xf32> -> vector<2x8x1xf32>
    %30 = vector.broadcast %29 : vector<2x8x1xf32> to vector<2x8x8xf32>
    %31 = arith.mulf %26, %30 : vector<2x8x8xf32>
    "tpu.trace_start"() <{level = 10 : i32, message = "bqk,bkd->bqd"}> : () -> ()
    %cst_15 = arith.constant dense<0.000000e+00> : vector<2x8x16xf32>
    %32 = tpu.matmul %31, %18, %cst_15 {dimension_numbers = #tpu.dot_dimension_numbers<[2], [1], [1], [2], [0, 0, 0, 1, 1, 2], [0], [0]>} : vector<2x8x8xf32>, vector<2x8x16xf32>, vector<2x8x16xf32> -> vector<2x8x16xf32>
    "tpu.trace_stop"() : () -> ()
    %33 = vector.shape_cast %32 : vector<2x8x16xf32> to vector<16x16xf32>
    %c0_16 = arith.constant 0 : index
    %c0_17 = arith.constant 0 : index
    %c0_18 = arith.constant 0 : index
    %34 = vector.load %arg6[%c0_16, %c0_17, %c0_18] : memref<2x16x128xf32, #tpu.memory_space<vmem>>, vector<1x16x128xf32>
    %35 = vector.shape_cast %34 : vector<1x16x128xf32> to vector<16x128xf32>
    %cst_19 = arith.constant dense<0.000000e+00> : vector<16x128xf32>
    %36 = tpu.matmul %33, %35, %cst_19 {dimension_numbers = #tpu.dot_dimension_numbers<[1], [0], [0], [1], [0, 0, 1, 1], [], []>} : vector<16x16xf32>, vector<16x128xf32>, vector<16x128xf32> -> vector<16x128xf32>
    %37 = arith.addf %12, %36 : vector<16x128xf32>
    %38 = vector.extract_strided_slice %11 {offsets = [0, 16], sizes = [16, 16], strides = [1, 1]} : vector<16x96xf32> to vector<16x16xf32>
    %39 = vector.shape_cast %38 : vector<16x16xf32> to vector<2x8x16xf32>
    %40 = vector.extract_strided_slice %11 {offsets = [0, 48], sizes = [16, 16], strides = [1, 1]} : vector<16x96xf32> to vector<16x16xf32>
    %41 = vector.shape_cast %40 : vector<16x16xf32> to vector<2x8x16xf32>
    %42 = vector.extract_strided_slice %11 {offsets = [0, 80], sizes = [16, 16], strides = [1, 1]} : vector<16x96xf32> to vector<16x16xf32>
    %43 = vector.shape_cast %42 : vector<16x16xf32> to vector<2x8x16xf32>
    "tpu.trace_start"() <{level = 10 : i32, message = "bqd,bkd->bqk"}> : () -> ()
    %cst_20 = arith.constant dense<0.000000e+00> : vector<2x8x8xf32>
    %44 = tpu.matmul %39, %41, %cst_20 {dimension_numbers = #tpu.dot_dimension_numbers<[2], [2], [1], [1], [0, 0, 0, 1, 1, 1], [0], [0]>} : vector<2x8x16xf32>, vector<2x8x16xf32>, vector<2x8x8xf32> -> vector<2x8x8xf32>
    "tpu.trace_stop"() : () -> ()
    %cst_21 = arith.constant 0.301511347 : f32
    %45 = vector.broadcast %cst_21 : f32 to vector<2x8x8xf32>
    %46 = arith.mulf %44, %45 : vector<2x8x8xf32>
    %cst_22 = arith.constant dense<0xFF800000> : vector<2x8xf32>
    %47 = vector.multi_reduction <maximumf>, %46, %cst_22 [2] : vector<2x8x8xf32> to vector<2x8xf32>
    %48 = vector.shape_cast %47 : vector<2x8xf32> to vector<2x8x1xf32>
    %49 = vector.broadcast %48 : vector<2x8x1xf32> to vector<2x8x8xf32>
    %50 = arith.subf %46, %49 : vector<2x8x8xf32>
    %51 = math.exp %50 : vector<2x8x8xf32>
    %cst_23 = arith.constant dense<0.000000e+00> : vector<2x8xf32>
    %52 = vector.multi_reduction <add>, %51, %cst_23 [2] : vector<2x8x8xf32> to vector<2x8xf32>
    %53 = vector.shape_cast %52 : vector<2x8xf32> to vector<2x8x1xf32>
    %54 = tpu.reciprocal %53 {approx = true} : vector<2x8x1xf32> -> vector<2x8x1xf32>
    %55 = vector.broadcast %54 : vector<2x8x1xf32> to vector<2x8x8xf32>
    %56 = arith.mulf %51, %55 : vector<2x8x8xf32>
    "tpu.trace_start"() <{level = 10 : i32, message = "bqk,bkd->bqd"}> : () -> ()
    %cst_24 = arith.constant dense<0.000000e+00> : vector<2x8x16xf32>
    %57 = tpu.matmul %56, %43, %cst_24 {dimension_numbers = #tpu.dot_dimension_numbers<[2], [1], [1], [2], [0, 0, 0, 1, 1, 2], [0], [0]>} : vector<2x8x8xf32>, vector<2x8x16xf32>, vector<2x8x16xf32> -> vector<2x8x16xf32>
    "tpu.trace_stop"() : () -> ()
    %58 = vector.shape_cast %57 : vector<2x8x16xf32> to vector<16x16xf32>
    %c1 = arith.constant 1 : index
    %c0_25 = arith.constant 0 : index
    %c0_26 = arith.constant 0 : index
    %59 = vector.load %arg6[%c1, %c0_25, %c0_26] : memref<2x16x128xf32, #tpu.memory_space<vmem>>, vector<1x16x128xf32>
    %60 = vector.shape_cast %59 : vector<1x16x128xf32> to vector<16x128xf32>
    %cst_27 = arith.constant dense<0.000000e+00> : vector<16x128xf32>
    %61 = tpu.matmul %58, %60, %cst_27 {dimension_numbers = #tpu.dot_dimension_numbers<[1], [0], [0], [1], [0, 0, 1, 1], [], []>} : vector<16x16xf32>, vector<16x128xf32>, vector<16x128xf32> -> vector<16x128xf32>
    %62 = arith.addf %37, %61 : vector<16x128xf32>
    %c0_28 = arith.constant 0 : index
    %c0_29 = arith.constant 0 : index
    %63 = vector.load %arg7[%c0_28, %c0_29] : memref<1x128xf32, #tpu.memory_space<vmem>>, vector<1x128xf32>
    %64 = vector.broadcast %63 : vector<1x128xf32> to vector<16x128xf32>
    %65 = arith.addf %62, %64 : vector<16x128xf32>
    %66 = arith.addf %5, %65 : vector<16x128xf32>
    %c0_30 = arith.constant 0 : index
    %c0_31 = arith.constant 0 : index
    %67 = vector.load %arg8[%c0_30, %c0_31] : memref<1x128xf32, #tpu.memory_space<vmem>>, vector<1x128xf32>
    %c0_32 = arith.constant 0 : index
    %c0_33 = arith.constant 0 : index
    %68 = vector.load %arg9[%c0_32, %c0_33] : memref<1x128xf32, #tpu.memory_space<vmem>>, vector<1x128xf32>
    %cst_34 = arith.constant dense<0.000000e+00> : vector<16xf32>
    %69 = vector.multi_reduction <add>, %66, %cst_34 [1] : vector<16x128xf32> to vector<16xf32>
    %70 = vector.shape_cast %69 : vector<16xf32> to vector<16x1xf32>
    %cst_35 = arith.constant 0.0454545468 : f32
    %71 = vector.broadcast %cst_35 : f32 to vector<16x1xf32>
    %72 = arith.mulf %70, %71 : vector<16x1xf32>
    %73 = vector.broadcast %72 : vector<16x1xf32> to vector<16x128xf32>
    %74 = arith.subf %66, %73 : vector<16x128xf32>
    %75 = vector.broadcast %6 : vector<1x128xf32> to vector<16x128xf32>
    %76 = arith.mulf %74, %75 : vector<16x128xf32>
    %77 = arith.mulf %76, %76 : vector<16x128xf32>
    %cst_36 = arith.constant dense<0.000000e+00> : vector<16xf32>
    %78 = vector.multi_reduction <add>, %77, %cst_36 [1] : vector<16x128xf32> to vector<16xf32>
    %79 = vector.shape_cast %78 : vector<16xf32> to vector<16x1xf32>
    %cst_37 = arith.constant 0.0454545468 : f32
    %80 = vector.broadcast %cst_37 : f32 to vector<16x1xf32>
    %81 = arith.mulf %79, %80 : vector<16x1xf32>
    %82 = vector.broadcast %72 : vector<16x1xf32> to vector<16x128xf32>
    %83 = arith.subf %66, %82 : vector<16x128xf32>
    %cst_38 = arith.constant 9.99999974E-6 : f32
    %84 = vector.broadcast %cst_38 : f32 to vector<16x1xf32>
    %85 = arith.addf %81, %84 : vector<16x1xf32>
    %86 = math.rsqrt %85 : vector<16x1xf32>
    %87 = vector.broadcast %86 : vector<16x1xf32> to vector<16x128xf32>
    %88 = arith.mulf %83, %87 : vector<16x128xf32>
    %89 = vector.broadcast %67 : vector<1x128xf32> to vector<16x128xf32>
    %90 = arith.mulf %88, %89 : vector<16x128xf32>
    %91 = vector.broadcast %68 : vector<1x128xf32> to vector<16x128xf32>
    %92 = arith.addf %90, %91 : vector<16x128xf32>
    %c0_39 = arith.constant 0 : index
    %c0_40 = arith.constant 0 : index
    %93 = vector.load %arg10[%c0_39, %c0_40] : memref<128x128xf32, #tpu.memory_space<vmem>>, vector<128x128xf32>
    %cst_41 = arith.constant dense<0.000000e+00> : vector<16x128xf32>
    %94 = tpu.matmul %92, %93, %cst_41 {dimension_numbers = #tpu.dot_dimension_numbers<[1], [0], [0], [1], [0, 0, 1, 1], [], []>} : vector<16x128xf32>, vector<128x128xf32>, vector<16x128xf32> -> vector<16x128xf32>
    %c0_42 = arith.constant 0 : index
    %c0_43 = arith.constant 0 : index
    %95 = vector.load %arg11[%c0_42, %c0_43] : memref<1x128xf32, #tpu.memory_space<vmem>>, vector<1x128xf32>
    %96 = vector.broadcast %95 : vector<1x128xf32> to vector<16x128xf32>
    %97 = arith.addf %94, %96 : vector<16x128xf32>
    %cst_44 = arith.constant 0.000000e+00 : f32
    %98 = vector.broadcast %cst_44 : f32 to vector<16x128xf32>
    %99 = arith.maximumf %97, %98 : vector<16x128xf32>
    %c0_45 = arith.constant 0 : index
    %c0_46 = arith.constant 0 : index
    %100 = vector.load %arg12[%c0_45, %c0_46] : memref<128x128xf32, #tpu.memory_space<vmem>>, vector<128x128xf32>
    %cst_47 = arith.constant dense<0.000000e+00> : vector<16x128xf32>
    %101 = tpu.matmul %99, %100, %cst_47 {dimension_numbers = #tpu.dot_dimension_numbers<[1], [0], [0], [1], [0, 0, 1, 1], [], []>} : vector<16x128xf32>, vector<128x128xf32>, vector<16x128xf32> -> vector<16x128xf32>
    %c0_48 = arith.constant 0 : index
    %c0_49 = arith.constant 0 : index
    %102 = vector.load %arg13[%c0_48, %c0_49] : memref<1x128xf32, #tpu.memory_space<vmem>>, vector<1x128xf32>
    %103 = vector.broadcast %102 : vector<1x128xf32> to vector<16x128xf32>
    %104 = arith.addf %101, %103 : vector<16x128xf32>
    %105 = arith.addf %92, %104 : vector<16x128xf32>
    %c0_50 = arith.constant 0 : index
    %c0_51 = arith.constant 0 : index
    %106 = vector.load %arg14[%c0_50, %c0_51] : memref<1x128xf32, #tpu.memory_space<vmem>>, vector<1x128xf32>
    %c0_52 = arith.constant 0 : index
    %c0_53 = arith.constant 0 : index
    %107 = vector.load %arg15[%c0_52, %c0_53] : memref<1x128xf32, #tpu.memory_space<vmem>>, vector<1x128xf32>
    %cst_54 = arith.constant dense<0.000000e+00> : vector<16xf32>
    %108 = vector.multi_reduction <add>, %105, %cst_54 [1] : vector<16x128xf32> to vector<16xf32>
    %109 = vector.shape_cast %108 : vector<16xf32> to vector<16x1xf32>
    %cst_55 = arith.constant 0.0454545468 : f32
    %110 = vector.broadcast %cst_55 : f32 to vector<16x1xf32>
    %111 = arith.mulf %109, %110 : vector<16x1xf32>
    %112 = vector.broadcast %111 : vector<16x1xf32> to vector<16x128xf32>
    %113 = arith.subf %105, %112 : vector<16x128xf32>
    %114 = vector.broadcast %6 : vector<1x128xf32> to vector<16x128xf32>
    %115 = arith.mulf %113, %114 : vector<16x128xf32>
    %116 = arith.mulf %115, %115 : vector<16x128xf32>
    %cst_56 = arith.constant dense<0.000000e+00> : vector<16xf32>
    %117 = vector.multi_reduction <add>, %116, %cst_56 [1] : vector<16x128xf32> to vector<16xf32>
    %118 = vector.shape_cast %117 : vector<16xf32> to vector<16x1xf32>
    %cst_57 = arith.constant 0.0454545468 : f32
    %119 = vector.broadcast %cst_57 : f32 to vector<16x1xf32>
    %120 = arith.mulf %118, %119 : vector<16x1xf32>
    %121 = vector.broadcast %111 : vector<16x1xf32> to vector<16x128xf32>
    %122 = arith.subf %105, %121 : vector<16x128xf32>
    %cst_58 = arith.constant 9.99999974E-6 : f32
    %123 = vector.broadcast %cst_58 : f32 to vector<16x1xf32>
    %124 = arith.addf %120, %123 : vector<16x1xf32>
    %125 = math.rsqrt %124 : vector<16x1xf32>
    %126 = vector.broadcast %125 : vector<16x1xf32> to vector<16x128xf32>
    %127 = arith.mulf %122, %126 : vector<16x128xf32>
    %128 = vector.broadcast %106 : vector<1x128xf32> to vector<16x128xf32>
    %129 = arith.mulf %127, %128 : vector<16x128xf32>
    %130 = vector.broadcast %107 : vector<1x128xf32> to vector<16x128xf32>
    %131 = arith.addf %129, %130 : vector<16x128xf32>
    %132 = vector.shape_cast %131 : vector<16x128xf32> to vector<2x8x128xf32>
    %133 = vector.extract_strided_slice %132 {offsets = [0, 7, 0], sizes = [2, 1, 128], strides = [1, 1, 1]} : vector<2x8x128xf32> to vector<2x1x128xf32>
    %134 = vector.shape_cast %133 : vector<2x1x128xf32> to vector<2x128xf32>
    %c0_59 = arith.constant 0 : index
    %c0_60 = arith.constant 0 : index
    %135 = vector.load %arg16[%c0_59, %c0_60] : memref<128x1xf32, #tpu.memory_space<vmem>>, vector<128x1xf32>
    %cst_61 = arith.constant dense<0.000000e+00> : vector<2x1xf32>
    %136 = tpu.matmul %134, %135, %cst_61 {dimension_numbers = #tpu.dot_dimension_numbers<[1], [0], [0], [1], [0, 0, 1, 1], [], []>} : vector<2x128xf32>, vector<128x1xf32>, vector<2x1xf32> -> vector<2x1xf32>
    %c0_62 = arith.constant 0 : index
    %c0_63 = arith.constant 0 : index
    %137 = vector.load %arg17[%c0_62, %c0_63] : memref<1x1xf32, #tpu.memory_space<vmem>>, vector<1x1xf32>
    %138 = vector.broadcast %137 : vector<1x1xf32> to vector<2x1xf32>
    %139 = arith.addf %136, %138 : vector<2x1xf32>
    %c0_64 = arith.constant 0 : index
    %c0_65 = arith.constant 0 : index
    %140 = vector.load %arg18[%c0_64, %c0_65] : memref<2x1xf32, #tpu.memory_space<vmem>>, vector<2x1xf32>
    tpu.vector_store %arg18[%c0_64, %c0_65], %139 {strides = array<i32>} : memref<2x1xf32, #tpu.memory_space<vmem>>, vector<2x1xf32>,
    return
  }
  func.func @transform_0(%arg0: i32) -> (i32, i32, i32) {
    %c0_i32 = arith.constant 0 : i32
    %c0_i32_0 = arith.constant 0 : i32
    %c0_i32_1 = arith.constant 0 : i32
    return %arg0, %c0_i32, %c0_i32_0 : i32, i32, i32
  }
  func.func @transform_1(%arg0: i32) -> (i32, i32) {
    %c0_i32 = arith.constant 0 : i32
    %c0_i32_0 = arith.constant 0 : i32
    %c0_i32_1 = arith.constant 0 : i32
    return %c0_i32, %c0_i32_0 : i32, i32
  }
  func.func @transform_2(%arg0: i32) -> (i32, i32) {
    %c0_i32 = arith.constant 0 : i32
    %c0_i32_0 = arith.constant 0 : i32
    %c0_i32_1 = arith.constant 0 : i32
    return %c0_i32, %c0_i32_0 : i32, i32
  }
  func.func @transform_3(%arg0: i32) -> (i32, i32) {
    %c0_i32 = arith.constant 0 : i32
    %c0_i32_0 = arith.constant 0 : i32
    %c0_i32_1 = arith.constant 0 : i32
    return %c0_i32, %c0_i32_0 : i32, i32
  }
  func.func @transform_4(%arg0: i32) -> (i32, i32) {
    %c0_i32 = arith.constant 0 : i32
    %c0_i32_0 = arith.constant 0 : i32
    %c0_i32_1 = arith.constant 0 : i32
    return %c0_i32, %c0_i32_0 : i32, i32
  }
  func.func @transform_5(%arg0: i32) -> (i32, i32, i32) {
    %c0_i32 = arith.constant 0 : i32
    %c0_i32_0 = arith.constant 0 : i32
    %c0_i32_1 = arith.constant 0 : i32
    %c0_i32_2 = arith.constant 0 : i32
    return %c0_i32, %c0_i32_0, %c0_i32_1 : i32, i32, i32
  }
  func.func @transform_6(%arg0: i32) -> (i32, i32) {
    %c0_i32 = arith.constant 0 : i32
    %c0_i32_0 = arith.constant 0 : i32
    %c0_i32_1 = arith.constant 0 : i32
    return %c0_i32, %c0_i32_0 : i32, i32
  }
  func.func @transform_7(%arg0: i32) -> (i32, i32) {
    %c0_i32 = arith.constant 0 : i32
    %c0_i32_0 = arith.constant 0 : i32
    %c0_i32_1 = arith.constant 0 : i32
    return %c0_i32, %c0_i32_0 : i32, i32
  }
  func.func @transform_8(%arg0: i32) -> (i32, i32) {
    %c0_i32 = arith.constant 0 : i32
    %c0_i32_0 = arith.constant 0 : i32
    %c0_i32_1 = arith.constant 0 : i32
    return %c0_i32, %c0_i32_0 : i32, i32
  }
  func.func @transform_9(%arg0: i32) -> (i32, i32) {
    %c0_i32 = arith.constant 0 : i32
    %c0_i32_0 = arith.constant 0 : i32
    %c0_i32_1 = arith.constant 0 : i32
    return %c0_i32, %c0_i32_0 : i32, i32
  }
  func.func @transform_10(%arg0: i32) -> (i32, i32) {
    %c0_i32 = arith.constant 0 : i32
    %c0_i32_0 = arith.constant 0 : i32
    %c0_i32_1 = arith.constant 0 : i32
    return %c0_i32, %c0_i32_0 : i32, i32
  }
  func.func @transform_11(%arg0: i32) -> (i32, i32) {
    %c0_i32 = arith.constant 0 : i32
    %c0_i32_0 = arith.constant 0 : i32
    %c0_i32_1 = arith.constant 0 : i32
    return %c0_i32, %c0_i32_0 : i32, i32
  }
  func.func @transform_12(%arg0: i32) -> (i32, i32) {
    %c0_i32 = arith.constant 0 : i32
    %c0_i32_0 = arith.constant 0 : i32
    %c0_i32_1 = arith.constant 0 : i32
    return %c0_i32, %c0_i32_0 : i32, i32
  }
  func.func @transform_13(%arg0: i32) -> (i32, i32) {
    %c0_i32 = arith.constant 0 : i32
    %c0_i32_0 = arith.constant 0 : i32
    %c0_i32_1 = arith.constant 0 : i32
    return %c0_i32, %c0_i32_0 : i32, i32
  }
  func.func @transform_14(%arg0: i32) -> (i32, i32) {
    %c0_i32 = arith.constant 0 : i32
    %c0_i32_0 = arith.constant 0 : i32
    %c0_i32_1 = arith.constant 0 : i32
    return %c0_i32, %c0_i32_0 : i32, i32
  }
  func.func @transform_15(%arg0: i32) -> (i32, i32) {
    %c0_i32 = arith.constant 0 : i32
    %c0_i32_0 = arith.constant 0 : i32
    %c0_i32_1 = arith.constant 0 : i32
    return %c0_i32, %c0_i32_0 : i32, i32
  }
  func.func @transform_16(%arg0: i32) -> (i32, i32) {
    %c0_i32 = arith.constant 0 : i32
    %c0_i32_0 = arith.constant 0 : i32
    %c0_i32_1 = arith.constant 0 : i32
    return %c0_i32, %c0_i32_0 : i32, i32
  }
  func.func @transform_17(%arg0: i32) -> (i32, i32) {
    %c0_i32 = arith.constant 0 : i32
    %c0_i32_0 = arith.constant 0 : i32
    return %arg0, %c0_i32 : i32, i32
  }
}

</mosaic_0001>

<llo_original>
// kernel: gat_transformer_forward.2
$region0: #{gat_transformer_forward.2}
  #allocation0 [shape = 'u32[]', space=smem, size = 0x4, offset = 0x4, fixed_abs, tag = 'smem constant byte address 0x4 - core index']
  #allocation1 [shape = 'u32[72,128]{1,0:T(1,128)}', space=vmem, size = 0x9000, scoped, tag = 'internal scratch']
  %s0 = inlined_call_operand.vmem [shape: f32[12,8], index: 0, kind: input, shape index: {}]
  %s1 = inlined_call_operand.vmem [shape: f32[24,4], index: 1, kind: input, shape index: {}]
  %s2 = inlined_call_operand.vmem [shape: s32[2,24], index: 2, kind: input, shape index: {}]
  %s3 = inlined_call_operand.vmem [shape: s32[24,2], index: 3, kind: input, shape index: {}]
  %s4 = inlined_call_operand.vmem [shape: s32[2,1], index: 4, kind: input, shape index: {}]
  %s5 = inlined_call_operand.vmem [shape: f32[4,8], index: 5, kind: input, shape index: {}]
  %s6 = inlined_call_operand.vmem [shape: f32[1,8], index: 6, kind: input, shape index: {}]
  %s7 = inlined_call_operand.vmem [shape: f32[2,8,16], index: 7, kind: input, shape index: {}]
  %s8 = inlined_call_operand.vmem [shape: f32[2,8,16], index: 8, kind: input, shape index: {}]
  %s9 = inlined_call_operand.vmem [shape: f32[2,16,2], index: 9, kind: input, shape index: {}]
  %s10 = inlined_call_operand.vmem [shape: f32[2,16,2], index: 10, kind: input, shape index: {}]
  %s11 = inlined_call_operand.vmem [shape: f32[2,16,2], index: 11, kind: input, shape index: {}]
  %s12 = inlined_call_operand.vmem [shape: f32[2,1,8], index: 12, kind: input, shape index: {}]
  %s13 = inlined_call_operand.vmem [shape: f32[2,16], index: 13, kind: input, shape index: {}]
  %s14 = inlined_call_operand.vmem [shape: f32[16,8], index: 14, kind: input, shape index: {}]
  %s15 = inlined_call_operand.vmem [shape: f32[2,2,8], index: 15, kind: output, shape index: {}]
  %s16 = sld [smem:[#allocation0]]
  $region93: #{gat_transformer_forward.2} parent=0
    _
  %s18 = ssub.s32 1, %s16
  %s19 = scalar_select 0, %s18, %s16
  loop: start=0, step=1, limit=4
  $region2: #{gat_transformer_forward.2} parent=0 // loop_pre_header
    _
  $region3: #{gat_transformer_forward.2} parent=0 // loop_header
    %s21 = sphi 0, %s25
    %p22 = scmp.ge.s32.totalorder %s21, 4
    %s29 = sphi 0, %s29
    %s31 = sphi 0, %s29
    %s32 = sphi 0, %s31
    %s46 = sphi 0, %s32
    %s50 = sphi 0, %s50
    %s52 = sphi 0, %s50
    %s53 = sphi 0, %s52
    %s67 = sphi 0, %s53
    %s71 = sphi 0, %s71
    %s73 = sphi 0, %s71
    %s74 = sphi 0, %s73
    %s88 = sphi 0, %s74
    %s92 = sphi 0, %s92
    %s94 = sphi 0, %s92
    %s95 = sphi 0, %s94
    %s109 = sphi 0, %s95
    %s113 = sphi 0, %s113
    %s115 = sphi 0, %s113
    %s116 = sphi 0, %s115
    %s130 = sphi 0, %s116
    %s134 = sphi 0, %s134
    %s136 = sphi 0, %s134
    %s137 = sphi 0, %s136
    %s151 = sphi 0, %s137
    %s155 = sphi 0, %s155
    %s157 = sphi 0, %s155
    %s158 = sphi 0, %s157
    %s172 = sphi 0, %s158
    %s178 = sphi 0, %s180
    %s181 = sphi 0, %s178
    %s182 = sphi 0, %s181
    %s198 = sphi 0, %s182
    %s204 = sphi 0, %s206
    %s207 = sphi 0, %s204
    %s208 = sphi 0, %s207
    %s224 = sphi 0, %s208
    %s230 = sphi 0, %s232
    %s233 = sphi 0, %s230
    %s234 = sphi 0, %s233
    %s250 = sphi 0, %s234
    %s256 = sphi 0, %s258
    %s259 = sphi 0, %s256
    %s260 = sphi 0, %s259
    %s276 = sphi 0, %s260
    %s282 = sphi 0, %s284
    %s285 = sphi 0, %s282
    %s286 = sphi 0, %s285
    %s302 = sphi 0, %s286
    %s308 = sphi 0, %s310
    %s311 = sphi 0, %s308
    %s312 = sphi 0, %s311
    %s328 = sphi 0, %s312
    %s332 = sphi 0, %s332
    %s334 = sphi 0, %s332
    %s335 = sphi 0, %s334
    %s349 = sphi 0, %s335
    %s353 = sphi 0, %s353
    %s355 = sphi 0, %s353
    %s356 = sphi 0, %s355
    %s370 = sphi 0, %s356
    %s376 = sphi 0, %s378
    %s379 = sphi 0, %s376
    %s380 = sphi 0, %s379
    %s396 = sphi 0, %s380
  $region4: #{gat_transformer_forward.2} parent=0 // loop_header_branch
    %24 = sbr.rel (%p22) target = $region8
  $region5: #{gat_transformer_forward.2} parent=0 // loop_body
    %s26 = ssub.s32 %s21, 1
    %s27 = ssub.s32 %s21, 2
    %s28 = sadd.s32 %s21, 1
    %s30 = sadd.s32 %s29, 1
    %p33 = scmp.eq.s32.totalorder %s21, 1
    %p34 = scmp.ne.s32.totalorder %s29, %s31
    %p35 = scmp.eq.s32.totalorder %s21, 0
    %p36 = por %p34, %p35
    %p37 = scmp.ne.s32.totalorder %s29, %s31
    %p38 = scmp.eq.s32.totalorder %s26, 1
    %p39 = por %p37, %p38
    %p40 = scmp.ne.s32.totalorder %s31, %s32
    %p41 = scmp.eq.s32.totalorder %s26, 0
    %p42 = por %p40, %p41
    %p43 = scmp.ne.s32.totalorder %s31, %s32
    %p44 = scmp.eq.s32.totalorder %s27, 1
    %p45 = por %p43, %p44
    %p47 = scmp.ne.s32.totalorder %s32, %s46
    %p48 = scmp.eq.s32.totalorder %s27, 0
    %p49 = por %p47, %p48
    %s51 = sadd.s32 %s50, 1
    %p54 = scmp.eq.s32.totalorder %s21, 1
    %p55 = scmp.ne.s32.totalorder %s50, %s52
    %p56 = scmp.eq.s32.totalorder %s21, 0
    %p57 = por %p55, %p56
    %p58 = scmp.ne.s32.totalorder %s50, %s52
    %p59 = scmp.eq.s32.totalorder %s26, 1
    %p60 = por %p58, %p59
    %p61 = scmp.ne.s32.totalorder %s52, %s53
    %p62 = scmp.eq.s32.totalorder %s26, 0
    %p63 = por %p61, %p62
    %p64 = scmp.ne.s32.totalorder %s52, %s53
    %p65 = scmp.eq.s32.totalorder %s27, 1
    %p66 = por %p64, %p65
    %p68 = scmp.ne.s32.totalorder %s53, %s67
    %p69 = scmp.eq.s32.totalorder %s27, 0
    %p70 = por %p68, %p69
    %s72 = sadd.s32 %s71, 1
    %p75 = scmp.eq.s32.totalorder %s21, 1
    %p76 = scmp.ne.s32.totalorder %s71, %s73
    %p77 = scmp.eq.s32.totalorder %s21, 0
    %p78 = por %p76, %p77
    %p79 = scmp.ne.s32.totalorder %s71, %s73
    %p80 = scmp.eq.s32.totalorder %s26, 1
    %p81 = por %p79, %p80
    %p82 = scmp.ne.s32.totalorder %s73, %s74
    %p83 = scmp.eq.s32.totalorder %s26, 0
    %p84 = por %p82, %p83
    %p85 = scmp.ne.s32.totalorder %s73, %s74
    %p86 = scmp.eq.s32.totalorder %s27, 1
    %p87 = por %p85, %p86
    %p89 = scmp.ne.s32.totalorder %s74, %s88
    %p90 = scmp.eq.s32.totalorder %s27, 0
    %p91 = por %p89, %p90
    %s93 = sadd.s32 %s92, 1
    %p96 = scmp.eq.s32.totalorder %s21, 1
    %p97 = scmp.ne.s32.totalorder %s92, %s94
    %p98 = scmp.eq.s32.totalorder %s21, 0
    %p99 = por %p97, %p98
    %p100 = scmp.ne.s32.totalorder %s92, %s94
    %p101 = scmp.eq.s32.totalorder %s26, 1
    %p102 = por %p100, %p101
    %p103 = scmp.ne.s32.totalorder %s94, %s95
    %p104 = scmp.eq.s32.totalorder %s26, 0
    %p105 = por %p103, %p104
    %p106 = scmp.ne.s32.totalorder %s94, %s95
    %p107 = scmp.eq.s32.totalorder %s27, 1
    %p108 = por %p106, %p107
    %p110 = scmp.ne.s32.totalorder %s95, %s109
    %p111 = scmp.eq.s32.totalorder %s27, 0
    %p112 = por %p110, %p111
    %s114 = sadd.s32 %s113, 1
    %p117 = scmp.eq.s32.totalorder %s21, 1
    %p118 = scmp.ne.s32.totalorder %s113, %s115
    %p119 = scmp.eq.s32.totalorder %s21, 0
    %p120 = por %p118, %p119
    %p121 = scmp.ne.s32.totalorder %s113, %s115
    %p122 = scmp.eq.s32.totalorder %s26, 1
    %p123 = por %p121, %p122
    %p124 = scmp.ne.s32.totalorder %s115, %s116
    %p125 = scmp.eq.s32.totalorder %s26, 0
    %p126 = por %p124, %p125
    %p127 = scmp.ne.s32.totalorder %s115, %s116
    %p128 = scmp.eq.s32.totalorder %s27, 1
    %p129 = por %p127, %p128
    %p131 = scmp.ne.s32.totalorder %s116, %s130
    %p132 = scmp.eq.s32.totalorder %s27, 0
    %p133 = por %p131, %p132
    %s135 = sadd.s32 %s134, 1
    %p138 = scmp.eq.s32.totalorder %s21, 1
    %p139 = scmp.ne.s32.totalorder %s134, %s136
    %p140 = scmp.eq.s32.totalorder %s21, 0
    %p141 = por %p139, %p140
    %p142 = scmp.ne.s32.totalorder %s134, %s136
    %p143 = scmp.eq.s32.totalorder %s26, 1
    %p144 = por %p142, %p143
    %p145 = scmp.ne.s32.totalorder %s136, %s137
    %p146 = scmp.eq.s32.totalorder %s26, 0
    %p147 = por %p145, %p146
    %p148 = scmp.ne.s32.totalorder %s136, %s137
    %p149 = scmp.eq.s32.totalorder %s27, 1
    %p150 = por %p148, %p149
    %p152 = scmp.ne.s32.totalorder %s137, %s151
    %p153 = scmp.eq.s32.totalorder %s27, 0
    %p154 = por %p152, %p153
    %s156 = sadd.s32 %s155, 1
    %p159 = scmp.eq.s32.totalorder %s21, 1
    %p160 = scmp.ne.s32.totalorder %s155, %s157
    %p161 = scmp.eq.s32.totalorder %s21, 0
    %p162 = por %p160, %p161
    %p163 = scmp.ne.s32.totalorder %s155, %s157
    %p164 = scmp.eq.s32.totalorder %s26, 1
    %p165 = por %p163, %p164
    %p166 = scmp.ne.s32.totalorder %s157, %s158
    %p167 = scmp.eq.s32.totalorder %s26, 0
    %p168 = por %p166, %p167
    %p169 = scmp.ne.s32.totalorder %s157, %s158
    %p170 = scmp.eq.s32.totalorder %s27, 1
    %p171 = por %p169, %p170
    %p173 = scmp.ne.s32.totalorder %s158, %s172
    %p174 = scmp.eq.s32.totalorder %s27, 0
    %p175 = por %p173, %p174
    %s176 = ssub.s32 %s21, %s28
    %p177 = scmp.eq.s32.totalorder %s176, 0
    %s179 = sadd.s32 %s178, 1
    %s180 = scalar_select %p177, %s178, %s179
    %p183 = pneg %p177
    %p184 = scmp.eq.s32.totalorder %s21, 1
    %p185 = por %p183, %p184
    %p186 = scmp.ne.s32.totalorder %s178, %s181
    %p187 = scmp.eq.s32.totalorder %s21, 0
    %p188 = por %p186, %p187
    %p189 = scmp.ne.s32.totalorder %s178, %s181
    %p190 = scmp.eq.s32.totalorder %s26, 1
    %p191 = por %p189, %p190
    %p192 = scmp.ne.s32.totalorder %s181, %s182
    %p193 = scmp.eq.s32.totalorder %s26, 0
    %p194 = por %p192, %p193
    %p195 = scmp.ne.s32.totalorder %s181, %s182
    %p196 = scmp.eq.s32.totalorder %s27, 1
    %p197 = por %p195, %p196
    %p199 = scmp.ne.s32.totalorder %s182, %s198
    %p200 = scmp.eq.s32.totalorder %s27, 0
    %p201 = por %p199, %p200
    %s202 = ssub.s32 %s21, %s28
    %p203 = scmp.eq.s32.totalorder %s202, 0
    %s205 = sadd.s32 %s204, 1
    %s206 = scalar_select %p203, %s204, %s205
    %p209 = pneg %p203
    %p210 = scmp.eq.s32.totalorder %s21, 1
    %p211 = por %p209, %p210
    %p212 = scmp.ne.s32.totalorder %s204, %s207
    %p213 = scmp.eq.s32.totalorder %s21, 0
    %p214 = por %p212, %p213
    %p215 = scmp.ne.s32.totalorder %s204, %s207
    %p216 = scmp.eq.s32.totalorder %s26, 1
    %p217 = por %p215, %p216
    %p218 = scmp.ne.s32.totalorder %s207, %s208
    %p219 = scmp.eq.s32.totalorder %s26, 0
    %p220 = por %p218, %p219
    %p221 = scmp.ne.s32.totalorder %s207, %s208
    %p222 = scmp.eq.s32.totalorder %s27, 1
    %p223 = por %p221, %p222
    %p225 = scmp.ne.s32.totalorder %s208, %s224
    %p226 = scmp.eq.s32.totalorder %s27, 0
    %p227 = por %p225, %p226
    %s228 = ssub.s32 %s21, %s28
    %p229 = scmp.eq.s32.totalorder %s228, 0
    %s231 = sadd.s32 %s230, 1
    %s232 = scalar_select %p229, %s230, %s231
    %p235 = pneg %p229
    %p236 = scmp.eq.s32.totalorder %s21, 1
    %p237 = por %p235, %p236
    %p238 = scmp.ne.s32.totalorder %s230, %s233
    %p239 = scmp.eq.s32.totalorder %s21, 0
    %p240 = por %p238, %p239
    %p241 = scmp.ne.s32.totalorder %s230, %s233
    %p242 = scmp.eq.s32.totalorder %s26, 1
    %p243 = por %p241, %p242
    %p244 = scmp.ne.s32.totalorder %s233, %s234
    %p245 = scmp.eq.s32.totalorder %s26, 0
    %p246 = por %p244, %p245
    %p247 = scmp.ne.s32.totalorder %s233, %s234
    %p248 = scmp.eq.s32.totalorder %s27, 1
    %p249 = por %p247, %p248
    %p251 = scmp.ne.s32.totalorder %s234, %s250
    %p252 = scmp.eq.s32.totalorder %s27, 0
    %p253 = por %p251, %p252
    %s254 = ssub.s32 %s21, %s28
    %p255 = scmp.eq.s32.totalorder %s254, 0
    %s257 = sadd.s32 %s256, 1
    %s258 = scalar_select %p255, %s256, %s257
    %p261 = pneg %p255
    %p262 = scmp.eq.s32.totalorder %s21, 1
    %p263 = por %p261, %p262
    %p264 = scmp.ne.s32.totalorder %s256, %s259
    %p265 = scmp.eq.s32.totalorder %s21, 0
    %p266 = por %p264, %p265
    %p267 = scmp.ne.s32.totalorder %s256, %s259
    %p268 = scmp.eq.s32.totalorder %s26, 1
    %p269 = por %p267, %p268
    %p270 = scmp.ne.s32.totalorder %s259, %s260
    %p271 = scmp.eq.s32.totalorder %s26, 0
    %p272 = por %p270, %p271
    %p273 = scmp.ne.s32.totalorder %s259, %s260
    %p274 = scmp.eq.s32.totalorder %s27, 1
    %p275 = por %p273, %p274
    %p277 = scmp.ne.s32.totalorder %s260, %s276
    %p278 = scmp.eq.s32.totalorder %s27, 0
    %p279 = por %p277, %p278
    %s280 = ssub.s32 %s21, %s28
    %p281 = scmp.eq.s32.totalorder %s280, 0
    %s283 = sadd.s32 %s282, 1
    %s284 = scalar_select %p281, %s282, %s283
    %p287 = pneg %p281
    %p288 = scmp.eq.s32.totalorder %s21, 1
    %p289 = por %p287, %p288
    %p290 = scmp.ne.s32.totalorder %s282, %s285
    %p291 = scmp.eq.s32.totalorder %s21, 0
    %p292 = por %p290, %p291
    %p293 = scmp.ne.s32.totalorder %s282, %s285
    %p294 = scmp.eq.s32.totalorder %s26, 1
    %p295 = por %p293, %p294
    %p296 = scmp.ne.s32.totalorder %s285, %s286
    %p297 = scmp.eq.s32.totalorder %s26, 0
    %p298 = por %p296, %p297
    %p299 = scmp.ne.s32.totalorder %s285, %s286
    %p300 = scmp.eq.s32.totalorder %s27, 1
    %p301 = por %p299, %p300
    %p303 = scmp.ne.s32.totalorder %s286, %s302
    %p304 = scmp.eq.s32.totalorder %s27, 0
    %p305 = por %p303, %p304
    %s306 = ssub.s32 %s21, %s28
    %p307 = scmp.eq.s32.totalorder %s306, 0
    %s309 = sadd.s32 %s308, 1
    %s310 = scalar_select %p307, %s308, %s309
    %p313 = pneg %p307
    %p314 = scmp.eq.s32.totalorder %s21, 1
    %p315 = por %p313, %p314
    %p316 = scmp.ne.s32.totalorder %s308, %s311
    %p317 = scmp.eq.s32.totalorder %s21, 0
    %p318 = por %p316, %p317
    %p319 = scmp.ne.s32.totalorder %s308, %s311
    %p320 = scmp.eq.s32.totalorder %s26, 1
    %p321 = por %p319, %p320
    %p322 = scmp.ne.s32.totalorder %s311, %s312
    %p323 = scmp.eq.s32.totalorder %s26, 0
    %p324 = por %p322, %p323
    %p325 = scmp.ne.s32.totalorder %s311, %s312
    %p326 = scmp.eq.s32.totalorder %s27, 1
    %p327 = por %p325, %p326
    %p329 = scmp.ne.s32.totalorder %s312, %s328
    %p330 = scmp.eq.s32.totalorder %s27, 0
    %p331 = por %p329, %p330
    %s333 = sadd.s32 %s332, 1
    %p336 = scmp.eq.s32.totalorder %s21, 1
    %p337 = scmp.ne.s32.totalorder %s332, %s334
    %p338 = scmp.eq.s32.totalorder %s21, 0
    %p339 = por %p337, %p338
    %p340 = scmp.ne.s32.totalorder %s332, %s334
    %p341 = scmp.eq.s32.totalorder %s26, 1
    %p342 = por %p340, %p341
    %p343 = scmp.ne.s32.totalorder %s334, %s335
    %p344 = scmp.eq.s32.totalorder %s26, 0
    %p345 = por %p343, %p344
    %p346 = scmp.ne.s32.totalorder %s334, %s335
    %p347 = scmp.eq.s32.totalorder %s27, 1
    %p348 = por %p346, %p347
    %p350 = scmp.ne.s32.totalorder %s335, %s349
    %p351 = scmp.eq.s32.totalorder %s27, 0
    %p352 = por %p350, %p351
    %s354 = sadd.s32 %s353, 1
    %p357 = scmp.eq.s32.totalorder %s21, 1
    %p358 = scmp.ne.s32.totalorder %s353, %s355
    %p359 = scmp.eq.s32.totalorder %s21, 0
    %p360 = por %p358, %p359
    %p361 = scmp.ne.s32.totalorder %s353, %s355
    %p362 = scmp.eq.s32.totalorder %s26, 1
    %p363 = por %p361, %p362
    %p364 = scmp.ne.s32.totalorder %s355, %s356
    %p365 = scmp.eq.s32.totalorder %s26, 0
    %p366 = por %p364, %p365
    %p367 = scmp.ne.s32.totalorder %s355, %s356
    %p368 = scmp.eq.s32.totalorder %s27, 1
    %p369 = por %p367, %p368
    %p371 = scmp.ne.s32.totalorder %s356, %s370
    %p372 = scmp.eq.s32.totalorder %s27, 0
    %p373 = por %p371, %p372
    %s374 = ssub.s32 %s21, %s28
    %p375 = scmp.eq.s32.totalorder %s374, 0
    %s377 = sadd.s32 %s376, 1
    %s378 = scalar_select %p375, %s376, %s377
    %p381 = pneg %p375
    %p382 = scmp.eq.s32.totalorder %s21, 1
    %p383 = por %p381, %p382
    %p384 = scmp.ne.s32.totalorder %s376, %s379
    %p385 = scmp.eq.s32.totalorder %s21, 0
    %p386 = por %p384, %p385
    %p387 = scmp.ne.s32.totalorder %s376, %s379
    %p388 = scmp.eq.s32.totalorder %s26, 1
    %p389 = por %p387, %p388
    %p390 = scmp.ne.s32.totalorder %s379, %s380
    %p391 = scmp.eq.s32.totalorder %s26, 0
    %p392 = por %p390, %p391
    %p393 = scmp.ne.s32.totalorder %s379, %s380
    %p394 = scmp.eq.s32.totalorder %s27, 1
    %p395 = por %p393, %p394
    %p397 = scmp.ne.s32.totalorder %s380, %s396
    %p398 = scmp.eq.s32.totalorder %s27, 0
    %p399 = por %p397, %p398
    %p400 = scmp.le.s32.totalorder 1, %s21
    %p401 = scmp.lt.s32.totalorder %s21, 3
    %p402 = pnand %p400, %p401
    %p403 = pneg %p402
    // Predicated region
    $region9: #{gat_transformer_forward.2} parent=5 // pred_check
      _
    $region10: #{gat_transformer_forward.2} parent=5 // pred_check_branch
      %405 = sbr.rel (%p402) target = $region12
    $region11: #{gat_transformer_forward.2} parent=5 // pred_region
      %s406 = ssub.s32 %s21, 1
      // Predicated region
      $region13: #{gat_transformer_forward.2} parent=11 // pred_check
        %p407 = pneg %p42
      $region14: #{gat_transformer_forward.2} parent=11 // pred_check_branch
        %409 = sbr.rel (%p407) target = $region16
      $region15: #{gat_transformer_forward.2} parent=11 // pred_region
        _
      $region16: #{gat_transformer_forward.2} parent=11 // pred_fallthru
        _
      // Predicated region
      $region17: #{gat_transformer_forward.2} parent=11 // pred_check
        %p410 = pneg %p63
      $region18: #{gat_transformer_forward.2} parent=11 // pred_check_branch
        %412 = sbr.rel (%p410) target = $region20
      $region19: #{gat_transformer_forward.2} parent=11 // pred_region
        _
      $region20: #{gat_transformer_forward.2} parent=11 // pred_fallthru
        _
      // Predicated region
      $region21: #{gat_transformer_forward.2} parent=11 // pred_check
        %p413 = pneg %p84
      $region22: #{gat_transformer_forward.2} parent=11 // pred_check_branch
        %415 = sbr.rel (%p413) target = $region24
      $region23: #{gat_transformer_forward.2} parent=11 // pred_region
        _
      $region24: #{gat_transformer_forward.2} parent=11 // pred_fallthru
        _
      // Predicated region
      $region25: #{gat_transformer_forward.2} parent=11 // pred_check
        %p416 = pneg %p105
      $region26: #{gat_transformer_forward.2} parent=11 // pred_check_branch
        %418 = sbr.rel (%p416) target = $region28
      $region27: #{gat_transformer_forward.2} parent=11 // pred_region
        _
      $region28: #{gat_transformer_forward.2} parent=11 // pred_fallthru
        _
      // Predicated region
      $region29: #{gat_transformer_forward.2} parent=11 // pred_check
        %p419 = pneg %p126
      $region30: #{gat_transformer_forward.2} parent=11 // pred_check_branch
        %421 = sbr.rel (%p419) target = $region32
      $region31: #{gat_transformer_forward.2} parent=11 // pred_region
        _
      $region32: #{gat_transformer_forward.2} parent=11 // pred_fallthru
        _
      // Predicated region
      $region33: #{gat_transformer_forward.2} parent=11 // pred_check
        %p422 = pneg %p147
      $region34: #{gat_transformer_forward.2} parent=11 // pred_check_branch
        %424 = sbr.rel (%p422) target = $region36
      $region35: #{gat_transformer_forward.2} parent=11 // pred_region
        _
      $region36: #{gat_transformer_forward.2} parent=11 // pred_fallthru
        _
      // Predicated region
      $region37: #{gat_transformer_forward.2} parent=11 // pred_check
        %p425 = pneg %p168
      $region38: #{gat_transformer_forward.2} parent=11 // pred_check_branch
        %427 = sbr.rel (%p425) target = $region40
      $region39: #{gat_transformer_forward.2} parent=11 // pred_region
        _
      $region40: #{gat_transformer_forward.2} parent=11 // pred_fallthru
        _
      // Predicated region
      $region41: #{gat_transformer_forward.2} parent=11 // pred_check
        %p428 = pneg %p345
      $region42: #{gat_transformer_forward.2} parent=11 // pred_check_branch
        %430 = sbr.rel (%p428) target = $region44
      $region43: #{gat_transformer_forward.2} parent=11 // pred_region
        _
      $region44: #{gat_transformer_forward.2} parent=11 // pred_fallthru
        _
      // Predicated region
      $region45: #{gat_transformer_forward.2} parent=11 // pred_check
        %p431 = pneg %p366
      $region46: #{gat_transformer_forward.2} parent=11 // pred_check_branch
        %433 = sbr.rel (%p431) target = $region48
      $region47: #{gat_transformer_forward.2} parent=11 // pred_region
        _
      $region48: #{gat_transformer_forward.2} parent=11 // pred_fallthru
        _
    $region12: #{gat_transformer_forward.2} parent=5 // pred_fallthru
      _
    %p434 = scmp.lt.s32.totalorder %s21, 2
    // Predicated region
    $region49: #{gat_transformer_forward.2} parent=5 // pred_check
      %p435 = pneg %p434
    $region50: #{gat_transformer_forward.2} parent=5 // pred_check_branch
      %437 = sbr.rel (%p435) target = $region52
    $region51: #{gat_transformer_forward.2} parent=5 // pred_region
      // Predicated region
      $region53: #{gat_transformer_forward.2} parent=51 // pred_check
        %p438 = pneg %p188
      $region54: #{gat_transformer_forward.2} parent=51 // pred_check_branch
        %440 = sbr.rel (%p438) target = $region56
      $region55: #{gat_transformer_forward.2} parent=51 // pred_region
        %p441 = scmp.lt.s32.totalorder %s21, 1
        %s442 = scalar_select %p441, %s21, 1
        %s443 = smul.addr %s442, 8
        %s444 = scalar_lea.vmem %s7, %s443
      $region56: #{gat_transformer_forward.2} parent=51 // pred_fallthru
        _
      // Predicated region
      $region57: #{gat_transformer_forward.2} parent=51 // pred_check
        %p445 = pneg %p214
      $region58: #{gat_transformer_forward.2} parent=51 // pred_check_branch
        %447 = sbr.rel (%p445) target = $region60
      $region59: #{gat_transformer_forward.2} parent=51 // pred_region
        %p448 = scmp.lt.s32.totalorder %s21, 1
        %s449 = scalar_select %p448, %s21, 1
        %s450 = smul.addr %s449, 8
        %s451 = scalar_lea.vmem %s8, %s450
      $region60: #{gat_transformer_forward.2} parent=51 // pred_fallthru
        _
      // Predicated region
      $region61: #{gat_transformer_forward.2} parent=51 // pred_check
        %p452 = pneg %p240
      $region62: #{gat_transformer_forward.2} parent=51 // pred_check_branch
        %454 = sbr.rel (%p452) target = $region64
      $region63: #{gat_transformer_forward.2} parent=51 // pred_region
        %p455 = scmp.lt.s32.totalorder %s21, 1
        %s456 = scalar_select %p455, %s21, 1
        %s457 = smul.addr %s456, 2
        %s458 = smul.addr %s457, 8
        %s459 = scalar_lea.vmem %s9, %s458
      $region64: #{gat_transformer_forward.2} parent=51 // pred_fallthru
        _
      // Predicated region
      $region65: #{gat_transformer_forward.2} parent=51 // pred_check
        %p460 = pneg %p266
      $region66: #{gat_transformer_forward.2} parent=51 // pred_check_branch
        %462 = sbr.rel (%p460) target = $region68
      $region67: #{gat_transformer_forward.2} parent=51 // pred_region
        %p463 = scmp.lt.s32.totalorder %s21, 1
        %s464 = scalar_select %p463, %s21, 1
        %s465 = smul.addr %s464, 2
        %s466 = smul.addr %s465, 8
        %s467 = scalar_lea.vmem %s10, %s466
      $region68: #{gat_transformer_forward.2} parent=51 // pred_fallthru
        _
      // Predicated region
      $region69: #{gat_transformer_forward.2} parent=51 // pred_check
        %p468 = pneg %p292
      $region70: #{gat_transformer_forward.2} parent=51 // pred_check_branch
        %470 = sbr.rel (%p468) target = $region72
      $region71: #{gat_transformer_forward.2} parent=51 // pred_region
        %p471 = scmp.lt.s32.totalorder %s21, 1
        %s472 = scalar_select %p471, %s21, 1
        %s473 = smul.addr %s472, 2
        %s474 = smul.addr %s473, 8
        %s475 = scalar_lea.vmem %s11, %s474
      $region72: #{gat_transformer_forward.2} parent=51 // pred_fallthru
        _
      // Predicated region
      $region73: #{gat_transformer_forward.2} parent=51 // pred_check
        %p476 = pneg %p318
      $region74: #{gat_transformer_forward.2} parent=51 // pred_check_branch
        %478 = sbr.rel (%p476) target = $region76
      $region75: #{gat_transformer_forward.2} parent=51 // pred_region
        %p479 = scmp.lt.s32.totalorder %s21, 1
        %s480 = scalar_select %p479, %s21, 1
        %s481 = scalar_lea.vmem %s12, %s480
      $region76: #{gat_transformer_forward.2} parent=51 // pred_fallthru
        _
    $region52: #{gat_transformer_forward.2} parent=5 // pred_fallthru
      _
    %p482 = scmp.le.s32.totalorder 1, %s21
    %p483 = scmp.lt.s32.totalorder %s21, 3
    %p484 = pnand %p482, %p483
    %p485 = pneg %p484
    // Predicated region
    $region77: #{gat_transformer_forward.2} parent=5 // pred_check
      _
    $region78: #{gat_transformer_forward.2} parent=5 // pred_check_branch
      %487 = sbr.rel (%p484) target = $region80
    $region79: #{gat_transformer_forward.2} parent=5 // pred_region
      %s488 = ssub.s32 %s21, 1
      %p489 = pneg %p42
      %p490 = pneg %p39
      %p491 = pneg %p63
      %p492 = pneg %p60
      %p493 = pneg %p84
      %p494 = pneg %p81
      %p495 = pneg %p105
      %p496 = pneg %p102
      %p497 = pneg %p126
      %p498 = pneg %p123
      %p499 = pneg %p147
      %p500 = pneg %p144
      %p501 = pneg %p168
      %p502 = pneg %p165
      %p503 = scmp.lt.s32.totalorder %s26, 1
      %s504 = scalar_select %p503, %s26, 1
      %s505 = smul.addr %s504, 8
      %s506 = scalar_lea.vmem %s7, %s505
      %p507 = pneg %p194
      %p508 = pneg %p191
      %p509 = scmp.lt.s32.totalorder %s26, 1
      %s510 = scalar_select %p509, %s26, 1
      %s511 = smul.addr %s510, 8
      %s512 = scalar_lea.vmem %s8, %s511
      %p513 = pneg %p220
      %p514 = pneg %p217
      %p515 = scmp.lt.s32.totalorder %s26, 1
      %s516 = scalar_select %p515, %s26, 1
      %s517 = smul.addr %s516, 2
      %s518 = smul.addr %s517, 8
      %s519 = scalar_lea.vmem %s9, %s518
      %p520 = pneg %p246
      %p521 = pneg %p243
      %p522 = scmp.lt.s32.totalorder %s26, 1
      %s523 = scalar_select %p522, %s26, 1
      %s524 = smul.addr %s523, 2
      %s525 = smul.addr %s524, 8
      %s526 = scalar_lea.vmem %s10, %s525
      %p527 = pneg %p272
      %p528 = pneg %p269
      %p529 = scmp.lt.s32.totalorder %s26, 1
      %s530 = scalar_select %p529, %s26, 1
      %s531 = smul.addr %s530, 2
      %s532 = smul.addr %s531, 8
      %s533 = scalar_lea.vmem %s11, %s532
      %p534 = pneg %p298
      %p535 = pneg %p295
      %p536 = scmp.lt.s32.totalorder %s26, 1
      %s537 = scalar_select %p536, %s26, 1
      %s538 = scalar_lea.vmem %s12, %s537
      %p539 = pneg %p324
      %p540 = pneg %p321
      %p541 = pneg %p345
      %p542 = pneg %p342
      %p543 = pneg %p366
      %p544 = pneg %p363
      %p545 = pneg %p392
      %p546 = pneg %p389
      %p547 = scmp.lt.s32.totalorder %s26, 1
      %s548 = scalar_select %p547, %s26, 1
      %s549 = smul.addr %s548, 2
      %s550 = scalar_lea.vmem %s15, %s549
      %p551 = scmp.lt.s32.totalorder %s26, 1
      %s552 = scalar_select %p551, %s26, 1
      %s553 = smul.addr %s552, 8
      %s554 = scalar_lea.vmem %s7, %s553
      %p555 = scmp.lt.s32.totalorder %s26, 1
      %s556 = scalar_select %p555, %s26, 1
      %s557 = smul.addr %s556, 8
      %s558 = scalar_lea.vmem %s8, %s557
      %p559 = scmp.lt.s32.totalorder %s26, 1
      %s560 = scalar_select %p559, %s26, 1
      %s561 = smul.addr %s560, 2
      %s562 = smul.addr %s561, 8
      %s563 = scalar_lea.vmem %s9, %s562
      %p564 = scmp.lt.s32.totalorder %s26, 1
      %s565 = scalar_select %p564, %s26, 1
      %s566 = smul.addr %s565, 2
      %s567 = smul.addr %s566, 8
      %s568 = scalar_lea.vmem %s10, %s567
      %p569 = scmp.lt.s32.totalorder %s26, 1
      %s570 = scalar_select %p569, %s26, 1
      %s571 = smul.addr %s570, 2
      %s572 = smul.addr %s571, 8
      %s573 = scalar_lea.vmem %s11, %s572
      %p574 = scmp.lt.s32.totalorder %s26, 1
      %s575 = scalar_select %p574, %s26, 1
      %s576 = scalar_lea.vmem %s12, %s575
      %p577 = scmp.lt.s32.totalorder %s26, 1
      %s578 = scalar_select %p577, %s26, 1
      %s579 = smul.addr %s578, 2
      %s580 = scalar_lea.vmem %s15, %s579
      %v581 = vld [vmem:[%s0] sm:$0xff]
      %v582 = vld [vmem:[%s0 + $0x8] sm:$0xf]
      %v583 = vlaneseq
      %v584 = vand.u32 %v583, 127
      %v585 = vld [vmem:[%s3] sm:$0xff]
      %v586 = vld [vmem:[%s3 + $0x8] sm:$0xff]
      %v587 = vld [vmem:[%s3 + $0x10] sm:$0xff]
      %588 = vset.pattern.permute.xlu0 0
      %589 = vperm.xlu0 %588, %v585
      %v590 = vpop.permute.xlu0 %589
      %591 = vset.pattern.permute.xlu0 0
      %592 = vperm.xlu0 %591, %v586
      %v593 = vpop.permute.xlu0 %592
      %594 = vset.pattern.permute.xlu0 0
      %595 = vperm.xlu0 %594, %v587
      %v596 = vpop.permute.xlu0 %595
      %vm597 = vcmp.eq.s32.totalorder %v590, %v584
      %vm598 = vcmp.eq.s32.totalorder %v593, %v584
      %vm599 = vcmp.eq.s32.totalorder %v596, %v584
      %v600 = vsel %vm597, 1, 0
      %v601 = vsel %vm598, 1, 0
      %v602 = vsel %vm599, 1, 0
      %v603 = vcvt.s32.f32 %v600
      %v604 = vcvt.s32.f32 %v601
      %v605 = vcvt.s32.f32 %v602
      %606 = vset.pattern.permute.xlu0 1
      %607 = vperm.xlu0 %606, %v585
      %v608 = vpop.permute.xlu0 %607
      %609 = vset.pattern.permute.xlu0 1
      %610 = vperm.xlu0 %609, %v586
      %v611 = vpop.permute.xlu0 %610
      %612 = vset.pattern.permute.xlu0 1
      %613 = vperm.xlu0 %612, %v587
      %v614 = vpop.permute.xlu0 %613
      %vm615 = vcmp.eq.s32.totalorder %v608, %v584
      %vm616 = vcmp.eq.s32.totalorder %v611, %v584
      %vm617 = vcmp.eq.s32.totalorder %v614, %v584
      %v618 = vsel %vm615, 1, 0
      %v619 = vsel %vm616, 1, 0
      %v620 = vsel %vm617, 1, 0
      %v621 = vcvt.s32.f32 %v618
      %v622 = vcvt.s32.f32 %v619
      %v623 = vcvt.s32.f32 %v620
      %v624 = vlaneseq
      %v625 = vshrl.u32 %v624, 7
      %v626 = vadd.s32 %v625, 8
      %v627 = vld [vmem:[%s2 + $0x1] sm:$0x1]
      %v628 = vperm.slane %v627, 0
      %vm629 = vcmp.eq.s32.totalorder %v625, %v628
      %vm630 = vcmp.eq.s32.totalorder %v626, %v628
      %v631 = vsel %vm629, 1, 0
      %v632 = vsel %vm630, 1, 0
      %v633 = vcvt.s32.f32 %v631
      %v634 = vcvt.s32.f32 %v632
      %vm635 = vcmp.gt.f32.partialorder %v633, 0.0
      %vm636 = vcmp.gt.f32.partialorder %v634, 0.0
      %v637 = vld [vmem:[%s4] sm:$0x3]
      %638 = vset.pattern.permute.xlu0 0
      %639 = vperm.xlu0 %638, %v637
      %v640 = vpop.permute.xlu0 %639
      %vm641 = vcmp.eq.s32.totalorder %v640, %v584
      %v642 = vsel %vm641, 1, 0
      %v643 = vcvt.s32.f32 %v642
      %v644 = vld [vmem:[%s13] sm:$0x3]
      %v645 = vld [vmem:[%s14] sm:$0xff]
      %v646 = vld [vmem:[%s14 + $0x8] sm:$0xff]
      %v647 = vld [vmem:[%s1] sm:$0xff]
      %v648 = vld [vmem:[%s1 + $0x8] sm:$0xff]
      %v649 = vld [vmem:[%s1 + $0x10] sm:$0xff]
      %v650 = vld [vmem:[%s5] sm:$0xf]
      %v651 = vld [vmem:[%s6] sm:$0x1]
      %v653 = vperm.slane %v651, 0
      %vm655 = vcmask 31744
      %v657 = vsel %vm655, %v647, 0
      %v660 = vsel %vm655, %v648, 0
      %v663 = vsel %vm655, %v649, 0
      %vm665 = vcmask 1043456
      %v667 = vsel %vm665, %v650, 0
      %669 = vmatpush.msra.mxu0 0.0
      %670 = vmatpush.msra.mxu0 0.0
      %671 = vmatpush.msra.mxu0 0.0
      %672 = vmatpush.msra.mxu0 0.0
      %673 = vmatpush.msra.mxu0 0.0
      %674 = vmatpush.msra.mxu0 0.0
      %675 = vmatpush.msra.mxu0 0.0
      %676 = vmatpush.msra.mxu0 0.0
      %677 = vmatpush.msra.mxu0 0.0
      %678 = vmatpush.msra.mxu0 0.0
      %679 = vmatpush.msra.mxu0 0.0
      %680 = vmatpush.msra.mxu0 0.0
      %681 = vmatpush.msra.mxu0 0.0
      %682 = vmatpush.msra.mxu0 0.0
      %683 = vmatpush.msra.mxu0 0.0
      %684 = vmatpush.msra.mxu0 %v667
      %685 = vmatmul.f32.gmra.mxu0 %v657
      %v686 = vpop.f32.mrf.mxu0
      %v687 = vadd.f32 %v653, %v686
      %688 = vmatmul.f32.gmra.mxu0 %v660
      %v689 = vpop.f32.mrf.mxu0
      %v690 = vadd.f32 %v653, %v689
      %691 = vmatmul.f32.gmra.mxu0 %v663
      %v692 = vpop.f32.mrf.mxu0
      %v693 = vadd.f32 %v653, %v692
      %694 = vdwg.mxu0
      %vm695 = vcmask 195584
      %v696 = vsel %vm695, %v633, 0.0
      %697 = vadd.xlane.f32.xlu0 %v696
      %v698 = vpop.xlane.xlu0 %697
      %vm699 = vcmask 191488
      %v700 = vsel %vm699, %v634, 0.0
      %701 = vadd.xlane.f32.xlu0 %v700
      %v702 = vpop.xlane.xlu0 %701
      %v704 = vsel %vm695, %v633, 0
      %v707 = vsel %vm695, %v634, 0
      %709 = vmatpush.msra.mxu0 0.0
      %710 = vmatpush.msra.mxu0 0.0
      %711 = vmatpush.msra.mxu0 0.0
      %712 = vmatpush.msra.mxu0 0.0
      %713 = vmatpush.msra.mxu0 0.0
      %714 = vmatpush.msra.mxu0 0.0
      %715 = vmatpush.msra.mxu0 0.0
      %716 = vmatpush.msra.mxu0 0.0
      %717 = vmatpush.msra.mxu0 0.0
      %718 = vmatpush.msra.mxu0 0.0
      %719 = vmatpush.msra.mxu0 0.0
      %720 = vmatpush.msra.mxu0 0.0
      %721 = vmatpush.msra.mxu0 0.0
      %722 = vmatpush.msra.mxu0 %v693
      %723 = vmatpush.msra.mxu0 %v690
      %724 = vmatpush.msra.mxu0 %v687
      %725 = vmatmul.f32.gmra.mxu0 %v704
      %v726 = vpop.f32.mrf.mxu0
      %v727 = vadd.f32 0.0, %v726
      %728 = vmatmul.f32.gmra.mxu0 %v707
      %v729 = vpop.f32.mrf.mxu0
      %v730 = vadd.f32 0.0, %v729
      %731 = vdwg.mxu0
      %v732 = vmax.f32 %v698, 1.0
      %v733 = vmax.f32 %v702, 1.0
      %v734 = vrcp.pop %v732
      %v735 = vmul.f32 %v732, %v734
      %v736 = vsub.f32 1.0, %v735
      %v737 = vmul.f32 %v734, %v736
      %v738 = vadd.f32 %v734, %v737
      %vm739 = vweird.f32 %v732
      %vm740 = vweird.f32 %v734
      %vm741 = vmor %vm739, %vm740
      %v742 = vsel %vm741, %v734, %v738
      %v743 = vand.u32 2147483647, %v732
      %vm744 = vcmp.eq.f32.partialorder %v743, 8.507059e+37
      %v745 = vand.u32 %v732, 2147483648
      %v746 = vor.u32 1.1754944e-38, %v745
      %v747 = vsel %vm744, %v746, %v742
      %v748 = vmul.f32 %v727, %v747
      %v749 = vrcp.pop %v733
      %v750 = vmul.f32 %v733, %v749
      %v751 = vsub.f32 1.0, %v750
      %v752 = vmul.f32 %v749, %v751
      %v753 = vadd.f32 %v749, %v752
      %vm754 = vweird.f32 %v733
      %vm755 = vweird.f32 %v749
      %vm756 = vmor %vm754, %vm755
      %v757 = vsel %vm756, %v749, %v753
      %v758 = vand.u32 2147483647, %v733
      %vm759 = vcmp.eq.f32.partialorder %v758, 8.507059e+37
      %v760 = vand.u32 %v733, 2147483648
      %v761 = vor.u32 1.1754944e-38, %v760
      %v762 = vsel %vm759, %v761, %v757
      %v763 = vmul.f32 %v730, %v762
      %v764 = vld [vmem:[%s554] sm:$0xff]
      %v765 = vld [vmem:[%s558] sm:$0xff]
      %vm766 = vcmask 64512
      %v768 = vsel %vm766, %v581, 0
      %v771 = vsel %vm766, %v582, 0
      %773 = vmatpush.msra.mxu0 0.0
      %774 = vmatpush.msra.mxu0 0.0
      %775 = vmatpush.msra.mxu0 0.0
      %776 = vmatpush.msra.mxu0 0.0
      %777 = vmatpush.msra.mxu0 0.0
      %778 = vmatpush.msra.mxu0 0.0
      %779 = vmatpush.msra.mxu0 0.0
      %780 = vmatpush.msra.mxu0 0.0
      %781 = vmatpush.msra.mxu0 0.0
      %782 = vmatpush.msra.mxu0 0.0
      %783 = vmatpush.msra.mxu0 0.0
      %784 = vmatpush.msra.mxu0 0.0
      %785 = vmatpush.msra.mxu0 0.0
      %786 = vmatpush.msra.mxu0 0.0
      %787 = vmatpush.msra.mxu0 0.0
      %788 = vmatpush.msra.mxu0 %v764
      %789 = vmatmul.f32.gmra.mxu0 %v768
      %v790 = vpop.f32.mrf.mxu0
      %v791 = vadd.f32 0.0, %v790
      %792 = vmatmul.f32.gmra.mxu0 %v771
      %v793 = vpop.f32.mrf.mxu0
      %v794 = vadd.f32 0.0, %v793
      %795 = vdwg.mxu0
      %v797 = vsel %vm766, %v687, 0
      %v800 = vsel %vm766, %v690, 0
      %v803 = vsel %vm766, %v693, 0
      %805 = vmatpush.msra.mxu0 0.0
      %806 = vmatpush.msra.mxu0 0.0
      %807 = vmatpush.msra.mxu0 0.0
      %808 = vmatpush.msra.mxu0 0.0
      %809 = vmatpush.msra.mxu0 0.0
      %810 = vmatpush.msra.mxu0 0.0
      %811 = vmatpush.msra.mxu0 0.0
      %812 = vmatpush.msra.mxu0 0.0
      %813 = vmatpush.msra.mxu0 0.0
      %814 = vmatpush.msra.mxu0 0.0
      %815 = vmatpush.msra.mxu0 0.0
      %816 = vmatpush.msra.mxu0 0.0
      %817 = vmatpush.msra.mxu0 0.0
      %818 = vmatpush.msra.mxu0 0.0
      %819 = vmatpush.msra.mxu0 0.0
      %820 = vmatpush.msra.mxu0 %v765
      %821 = vmatmul.f32.gmra.mxu0 %v797
      %v822 = vpop.f32.mrf.mxu0
      %v823 = vadd.f32 0.0, %v822
      %824 = vmatmul.f32.gmra.mxu0 %v800
      %v825 = vpop.f32.mrf.mxu0
      %v826 = vadd.f32 0.0, %v825
      %827 = vmatmul.f32.gmra.mxu0 %v803
      %v828 = vpop.f32.mrf.mxu0
      %v829 = vadd.f32 0.0, %v828
      %830 = vdwg.mxu0
      %v832 = vsel %vm766, %v748, 0
      %v835 = vsel %vm766, %v763, 0
      %837 = vmatpush.msra.mxu0 0.0
      %838 = vmatpush.msra.mxu0 0.0
      %839 = vmatpush.msra.mxu0 0.0
      %840 = vmatpush.msra.mxu0 0.0
      %841 = vmatpush.msra.mxu0 0.0
      %842 = vmatpush.msra.mxu0 0.0
      %843 = vmatpush.msra.mxu0 0.0
      %844 = vmatpush.msra.mxu0 0.0
      %845 = vmatpush.msra.mxu0 0.0
      %846 = vmatpush.msra.mxu0 0.0
      %847 = vmatpush.msra.mxu0 0.0
      %848 = vmatpush.msra.mxu0 0.0
      %849 = vmatpush.msra.mxu0 0.0
      %850 = vmatpush.msra.mxu0 0.0
      %851 = vmatpush.msra.mxu0 0.0
      %852 = vmatpush.msra.mxu0 %v765
      %853 = vmatmul.f32.gmra.mxu0 %v832
      %v854 = vpop.f32.mrf.mxu0
      %v855 = vadd.f32 0.0, %v854
      %856 = vmatmul.f32.gmra.mxu0 %v835
      %v857 = vpop.f32.mrf.mxu0
      %v858 = vadd.f32 0.0, %v857
      %859 = vdwg.mxu0
      %v860 = vld [vmem:[%s563] sm:$0xff]
      %v861 = vld [vmem:[%s563 + $0x8] sm:$0xff]
      %vm862 = vcmask 130048
      %v864 = vsel %vm862, %v791, 0
      %v867 = vsel %vm862, %v794, 0
      %869 = vmatpush.msra.mxu0 0.0
      %870 = vmatpush.msra.mxu0 0.0
      %871 = vmatpush.msra.mxu0 0.0
      %872 = vmatpush.msra.mxu0 0.0
      %873 = vmatpush.msra.mxu0 0.0
      %874 = vmatpush.msra.mxu0 0.0
      %875 = vmatpush.msra.mxu0 0.0
      %876 = vmatpush.msra.mxu0 0.0
      %877 = vmatpush.msra.mxu0 0.0
      %878 = vmatpush.msra.mxu0 0.0
      %879 = vmatpush.msra.mxu0 0.0
      %880 = vmatpush.msra.mxu0 0.0
      %881 = vmatpush.msra.mxu0 0.0
      %882 = vmatpush.msra.mxu0 0.0
      %883 = vmatpush.msra.mxu0 %v861
      %884 = vmatpush.msra.mxu0 %v860
      %885 = vmatmul.f32.gmra.mxu0 %v864
      %v886 = vpop.f32.mrf.mxu0
      %v887 = vadd.f32 0.0, %v886
      %888 = vmatmul.f32.gmra.mxu0 %v867
      %v889 = vpop.f32.mrf.mxu0
      %v890 = vadd.f32 0.0, %v889
      %891 = vdwg.mxu0
      %v892 = vld [vmem:[%s568] sm:$0xff]
      %v893 = vld [vmem:[%s568 + $0x8] sm:$0xff]
      %894 = vmatpush.msra.mxu0 0.0
      %895 = vmatpush.msra.mxu0 0.0
      %896 = vmatpush.msra.mxu0 0.0
      %897 = vmatpush.msra.mxu0 0.0
      %898 = vmatpush.msra.mxu0 0.0
      %899 = vmatpush.msra.mxu0 0.0
      %900 = vmatpush.msra.mxu0 0.0
      %901 = vmatpush.msra.mxu0 0.0
      %902 = vmatpush.msra.mxu0 0.0
      %903 = vmatpush.msra.mxu0 0.0
      %904 = vmatpush.msra.mxu0 0.0
      %905 = vmatpush.msra.mxu0 0.0
      %906 = vmatpush.msra.mxu0 0.0
      %907 = vmatpush.msra.mxu0 0.0
      %908 = vmatpush.msra.mxu0 %v893
      %909 = vmatpush.msra.mxu0 %v892
      %910 = vmatmul.f32.gmra.mxu0 %v864
      %v911 = vpop.f32.mrf.mxu0
      %v912 = vadd.f32 0.0, %v911
      %913 = vmatmul.f32.gmra.mxu0 %v867
      %v914 = vpop.f32.mrf.mxu0
      %v915 = vadd.f32 0.0, %v914
      %916 = vdwg.mxu0
      %v917 = vld [vmem:[%s573] sm:$0xff]
      %v918 = vld [vmem:[%s573 + $0x8] sm:$0xff]
      %v920 = vsel %vm862, %v823, 0
      %v923 = vsel %vm862, %v826, 0
      %v926 = vsel %vm862, %v829, 0
      %928 = vmatpush.msra.mxu0 0.0
      %929 = vmatpush.msra.mxu0 0.0
      %930 = vmatpush.msra.mxu0 0.0
      %931 = vmatpush.msra.mxu0 0.0
      %932 = vmatpush.msra.mxu0 0.0
      %933 = vmatpush.msra.mxu0 0.0
      %934 = vmatpush.msra.mxu0 0.0
      %935 = vmatpush.msra.mxu0 0.0
      %936 = vmatpush.msra.mxu0 0.0
      %937 = vmatpush.msra.mxu0 0.0
      %938 = vmatpush.msra.mxu0 0.0
      %939 = vmatpush.msra.mxu0 0.0
      %940 = vmatpush.msra.mxu0 0.0
      %941 = vmatpush.msra.mxu0 0.0
      %942 = vmatpush.msra.mxu0 %v918
      %943 = vmatpush.msra.mxu0 %v917
      %944 = vmatmul.f32.gmra.mxu0 %v920
      %v945 = vpop.f32.mrf.mxu0
      %v946 = vadd.f32 0.0, %v945
      %947 = vmatmul.f32.gmra.mxu0 %v923
      %v948 = vpop.f32.mrf.mxu0
      %v949 = vadd.f32 0.0, %v948
      %950 = vmatmul.f32.gmra.mxu0 %v926
      %v951 = vpop.f32.mrf.mxu0
      %v952 = vadd.f32 0.0, %v951
      %953 = vdwg.mxu0
      %v955 = vsel %vm862, %v855, 0
      %v958 = vsel %vm862, %v858, 0
      %960 = vmatpush.msra.mxu0 0.0
      %961 = vmatpush.msra.mxu0 0.0
      %962 = vmatpush.msra.mxu0 0.0
      %963 = vmatpush.msra.mxu0 0.0
      %964 = vmatpush.msra.mxu0 0.0
      %965 = vmatpush.msra.mxu0 0.0
      %966 = vmatpush.msra.mxu0 0.0
      %967 = vmatpush.msra.mxu0 0.0
      %968 = vmatpush.msra.mxu0 0.0
      %969 = vmatpush.msra.mxu0 0.0
      %970 = vmatpush.msra.mxu0 0.0
      %971 = vmatpush.msra.mxu0 0.0
      %972 = vmatpush.msra.mxu0 0.0
      %973 = vmatpush.msra.mxu0 0.0
      %974 = vmatpush.msra.mxu0 %v918
      %975 = vmatpush.msra.mxu0 %v917
      %976 = vmatmul.f32.gmra.mxu0 %v955
      %v977 = vpop.f32.mrf.mxu0
      %v978 = vadd.f32 0.0, %v977
      %979 = vmatmul.f32.gmra.mxu0 %v958
      %v980 = vpop.f32.mrf.mxu0
      %v981 = vadd.f32 0.0, %v980
      %982 = vdwg.mxu0
      %vm983 = vcmask 97280
      %v985 = vsel %vm983, %v621, 0
      %v988 = vsel %vm983, %v622, 0
      %v991 = vsel %vm983, %v623, 0
      %v994 = vsel %vm665, %v915, 0
      %996 = vmatpush.msra.mxu0 0.0
      %997 = vmatpush.msra.mxu0 0.0
      %998 = vmatpush.msra.mxu0 0.0
      %999 = vmatpush.msra.mxu0 0.0
      %1000 = vmatpush.msra.mxu0 0.0
      %1001 = vmatpush.msra.mxu0 0.0
      %1002 = vmatpush.msra.mxu0 0.0
      %1003 = vmatpush.msra.mxu0 0.0
      %1004 = vmatpush.msra.mxu0 0.0
      %1005 = vmatpush.msra.mxu0 0.0
      %1006 = vmatpush.msra.mxu0 0.0
      %1007 = vmatpush.msra.mxu0 0.0
      %1008 = vmatpush.msra.mxu0 0.0
      %1009 = vmatpush.msra.mxu0 0.0
      %1010 = vmatpush.msra.mxu0 %v994
      %1011 = vmatpush.msra.mxu0 %v912
      %1012 = vmatmul.f32.gmra.mxu0 %v985
      %v1013 = vpop.f32.mrf.mxu0
      %v1014 = vadd.f32 0.0, %v1013
      %1015 = vmatmul.f32.gmra.mxu0 %v988
      %v1016 = vpop.f32.mrf.mxu0
      %v1017 = vadd.f32 0.0, %v1016
      %1018 = vmatmul.f32.gmra.mxu0 %v991
      %v1019 = vpop.f32.mrf.mxu0
      %v1020 = vadd.f32 0.0, %v1019
      %1021 = vdwg.mxu0
      %v1023 = vsel %vm983, %v603, 0
      %v1026 = vsel %vm983, %v604, 0
      %v1029 = vsel %vm983, %v605, 0
      %v1032 = vsel %vm665, %v890, 0
      %1034 = vmatpush.msra.mxu0 0.0
      %1035 = vmatpush.msra.mxu0 0.0
      %1036 = vmatpush.msra.mxu0 0.0
      %1037 = vmatpush.msra.mxu0 0.0
      %1038 = vmatpush.msra.mxu0 0.0
      %1039 = vmatpush.msra.mxu0 0.0
      %1040 = vmatpush.msra.mxu0 0.0
      %1041 = vmatpush.msra.mxu0 0.0
      %1042 = vmatpush.msra.mxu0 0.0
      %1043 = vmatpush.msra.mxu0 0.0
      %1044 = vmatpush.msra.mxu0 0.0
      %1045 = vmatpush.msra.mxu0 0.0
      %1046 = vmatpush.msra.mxu0 0.0
      %1047 = vmatpush.msra.mxu0 0.0
      %1048 = vmatpush.msra.mxu0 %v1032
      %1049 = vmatpush.msra.mxu0 %v887
      %1050 = vmatmul.f32.gmra.mxu0 %v1023
      %v1051 = vpop.f32.mrf.mxu0
      %v1052 = vadd.f32 %v1014, %v1051
      %1053 = vmatmul.f32.gmra.mxu0 %v1026
      %v1054 = vpop.f32.mrf.mxu0
      %v1055 = vadd.f32 %v1017, %v1054
      %1056 = vmatmul.f32.gmra.mxu0 %v1029
      %v1057 = vpop.f32.mrf.mxu0
      %v1058 = vadd.f32 %v1020, %v1057
      %1059 = vdwg.mxu0
      %v1060 = vadd.f32 %v1052, %v946
      %v1061 = vadd.f32 %v1055, %v949
      %v1062 = vadd.f32 %v1058, %v952
      %vm1063 = vcmp.gt.f32.partialorder %v1060, 0.0
      %vm1064 = vcmp.gt.f32.partialorder %v1061, 0.0
      %vm1065 = vcmp.gt.f32.partialorder %v1062, 0.0
      %v1066 = vmul.f32 %v1060, 0.2
      %v1067 = vmul.f32 %v1061, 0.2
      %v1068 = vmul.f32 %v1062, 0.2
      %v1069 = vsel %vm1063, %v1060, %v1066
      %v1070 = vsel %vm1064, %v1061, %v1067
      %v1071 = vsel %vm1065, %v1062, %v1068
      %v1072 = vadd.f32 %v887, %v912
      %v1073 = vadd.f32 %v890, %v915
      %v1074 = vadd.f32 %v1072, %v978
      %v1075 = vadd.f32 %v1073, %v981
      %vm1076 = vcmp.gt.f32.partialorder %v1074, 0.0
      %vm1077 = vcmp.gt.f32.partialorder %v1075, 0.0
      %v1078 = vmul.f32 %v1074, 0.2
      %v1079 = vmul.f32 %v1075, 0.2
      %v1080 = vsel %vm1076, %v1074, %v1078
      %v1081 = vsel %vm1077, %v1075, %v1079
      %1082 = vxpose.xlu0.b32.start [1/16] %v1069, 128
      %1083 = vxpose.xlu0.b32.cont [2/16] %v1070, 128
      %1084 = vxpose.xlu0.b32.cont [3/16] %v1071, 128
      %1085 = vxpose.xlu0.b32.cont [4/16] 0.0, 128
      %1086 = vxpose.xlu0.b32.cont [5/16] 0.0, 128
      %1087 = vxpose.xlu0.b32.cont [6/16] 0.0, 128
      %1088 = vxpose.xlu0.b32.cont [7/16] 0.0, 128
      %1089 = vxpose.xlu0.b32.cont [8/16] 0.0, 128
      %1090 = vxpose.xlu0.b32.cont [9/16] 0.0, 128
      %1091 = vxpose.xlu0.b32.cont [10/16] 0.0, 128
      %1092 = vxpose.xlu0.b32.cont [11/16] 0.0, 128
      %1093 = vxpose.xlu0.b32.cont [12/16] 0.0, 128
      %1094 = vxpose.xlu0.b32.cont [13/16] 0.0, 128
      %1095 = vxpose.xlu0.b32.cont [14/16] 0.0, 128
      %1096 = vxpose.xlu0.b32.cont [15/16] 0.0, 128
      %1097 = vxpose.xlu0.b32.end [16/16] 0.0, 128
      %v1098 = vpop.trf.xlu0
      %v1099 = vpop.trf.xlu0
      %v1100 = vpop.trf.xlu0
      %v1101 = vpop.trf.xlu0
      %v1102 = vpop.trf.xlu0
      %v1103 = vpop.trf.xlu0
      %v1104 = vpop.trf.xlu0
      %v1105 = vpop.trf.xlu0
      %v1106 = vpop.trf.xlu0
      %v1107 = vpop.trf.xlu0
      %v1108 = vpop.trf.xlu0
      %v1109 = vpop.trf.xlu0
      %v1110 = vpop.trf.xlu0
      %v1111 = vpop.trf.xlu0
      %v1112 = vpop.trf.xlu0
      %v1113 = vpop.trf.xlu0
      %v1114 = vperm.slane %v1098, 0
      %v1115 = vsel %vm635, %v1114, -1e+30
      %v1116 = vsel %vm636, %v1114, -1e+30
      %v1117 = vsel %vm695, %v1115, -inf
      %1118 = vmax.xlane.f32.xlu0 %v1117
      %v1119 = vpop.xlane.xlu0 %1118
      %v1120 = vsel %vm699, %v1116, -inf
      %1121 = vmax.xlane.f32.xlu0 %v1120
      %v1122 = vpop.xlane.xlu0 %1121
      %1126 = vrot.lane.b32.xlu0 %v1069, 127
      %v1127 = vpop.permute.xlu0 %1126
      %1128 = vrot.lane.b32.xlu0 %v1070, 127
      %v1129 = vpop.permute.xlu0 %1128
      %1130 = vrot.lane.b32.xlu0 %v1071, 127
      %v1131 = vpop.permute.xlu0 %1130
      %1135 = vxpose.xlu0.b32.start [1/16] %v1127, 128
      %1136 = vxpose.xlu0.b32.cont [2/16] %v1129, 128
      %1137 = vxpose.xlu0.b32.cont [3/16] %v1131, 128
      %1138 = vxpose.xlu0.b32.cont [4/16] 0.0, 128
      %1139 = vxpose.xlu0.b32.cont [5/16] 0.0, 128
      %1140 = vxpose.xlu0.b32.cont [6/16] 0.0, 128
      %1141 = vxpose.xlu0.b32.cont [7/16] 0.0, 128
      %1142 = vxpose.xlu0.b32.cont [8/16] 0.0, 128
      %1143 = vxpose.xlu0.b32.cont [9/16] 0.0, 128
      %1144 = vxpose.xlu0.b32.cont [10/16] 0.0, 128
      %1145 = vxpose.xlu0.b32.cont [11/16] 0.0, 128
      %1146 = vxpose.xlu0.b32.cont [12/16] 0.0, 128
      %1147 = vxpose.xlu0.b32.cont [13/16] 0.0, 128
      %1148 = vxpose.xlu0.b32.cont [14/16] 0.0, 128
      %1149 = vxpose.xlu0.b32.cont [15/16] 0.0, 128
      %1150 = vxpose.xlu0.b32.end [16/16] 0.0, 128
      %v1151 = vpop.trf.xlu0
      %v1152 = vpop.trf.xlu0
      %v1153 = vpop.trf.xlu0
      %v1154 = vpop.trf.xlu0
      %v1155 = vpop.trf.xlu0
      %v1156 = vpop.trf.xlu0
      %v1157 = vpop.trf.xlu0
      %v1158 = vpop.trf.xlu0
      %v1159 = vpop.trf.xlu0
      %v1160 = vpop.trf.xlu0
      %v1161 = vpop.trf.xlu0
      %v1162 = vpop.trf.xlu0
      %v1163 = vpop.trf.xlu0
      %v1164 = vpop.trf.xlu0
      %v1165 = vpop.trf.xlu0
      %v1166 = vpop.trf.xlu0
      %v1167 = vperm.slane %v1151, 0
      %v1168 = vsel %vm635, %v1167, -1e+30
      %v1169 = vsel %vm636, %v1167, -1e+30
      %v1170 = vsel %vm695, %v1168, -inf
      %1171 = vmax.xlane.f32.xlu0 %v1170
      %v1172 = vpop.xlane.xlu0 %1171
      %v1173 = vsel %vm699, %v1169, -inf
      %1174 = vmax.xlane.f32.xlu0 %v1173
      %v1175 = vpop.xlane.xlu0 %1174
      %vm1176 = vcmask 7168
      %v1177 = vsel %vm1176, %v1119, %v1172
      %v1178 = vsel %vm1176, %v1122, %v1175
      %v1179 = vmax.f32 %v1177, %v1080
      %v1180 = vmax.f32 %v1178, %v1081
      %v1182 = vsel %vm665, %v1180, 0
      %1184 = vmatpush.msra.mxu0 0.0
      %1185 = vmatpush.msra.mxu0 0.0
      %1186 = vmatpush.msra.mxu0 0.0
      %1187 = vmatpush.msra.mxu0 0.0
      %1188 = vmatpush.msra.mxu0 0.0
      %1189 = vmatpush.msra.mxu0 0.0
      %1190 = vmatpush.msra.mxu0 0.0
      %1191 = vmatpush.msra.mxu0 0.0
      %1192 = vmatpush.msra.mxu0 0.0
      %1193 = vmatpush.msra.mxu0 0.0
      %1194 = vmatpush.msra.mxu0 0.0
      %1195 = vmatpush.msra.mxu0 0.0
      %1196 = vmatpush.msra.mxu0 0.0
      %1197 = vmatpush.msra.mxu0 0.0
      %1198 = vmatpush.msra.mxu0 %v1182
      %1199 = vmatpush.msra.mxu0 %v1179
      %1200 = vmatmul.f32.gmra.mxu0 %v985
      %v1201 = vpop.f32.mrf.mxu0
      %v1202 = vadd.f32 0.0, %v1201
      %1203 = vmatmul.f32.gmra.mxu0 %v988
      %v1204 = vpop.f32.mrf.mxu0
      %v1205 = vadd.f32 0.0, %v1204
      %1206 = vmatmul.f32.gmra.mxu0 %v991
      %v1207 = vpop.f32.mrf.mxu0
      %v1208 = vadd.f32 0.0, %v1207
      %1209 = vdwg.mxu0
      %v1210 = vsub.f32 %v1069, %v1202
      %v1211 = vsub.f32 %v1070, %v1205
      %v1212 = vsub.f32 %v1071, %v1208
      %v1213 = vmul.f32 %v1210, 1.442695
      %v1214 = vpow.pop %v1213
      %v1215 = vmul.f32 %v1211, 1.442695
      %v1216 = vpow.pop %v1215
      %v1217 = vmul.f32 %v1212, 1.442695
      %v1218 = vpow.pop %v1217
      %v1219 = vsub.f32 %v1080, %v1179
      %v1220 = vsub.f32 %v1081, %v1180
      %v1221 = vmul.f32 %v1219, 1.442695
      %v1222 = vpow.pop %v1221
      %v1223 = vmul.f32 %v1220, 1.442695
      %v1224 = vpow.pop %v1223
      %v1225 = vsel %vm665, %v794, 0
      %1227 = vmatpush.msra.mxu0 0.0
      %1228 = vmatpush.msra.mxu0 0.0
      %1229 = vmatpush.msra.mxu0 0.0
      %1230 = vmatpush.msra.mxu0 0.0
      %1231 = vmatpush.msra.mxu0 0.0
      %1232 = vmatpush.msra.mxu0 0.0
      %1233 = vmatpush.msra.mxu0 0.0
      %1234 = vmatpush.msra.mxu0 0.0
      %1235 = vmatpush.msra.mxu0 0.0
      %1236 = vmatpush.msra.mxu0 0.0
      %1237 = vmatpush.msra.mxu0 0.0
      %1238 = vmatpush.msra.mxu0 0.0
      %1239 = vmatpush.msra.mxu0 0.0
      %1240 = vmatpush.msra.mxu0 0.0
      %1241 = vmatpush.msra.mxu0 %v1225
      %1242 = vmatpush.msra.mxu0 %v791
      %1243 = vmatmul.f32.gmra.mxu0 %v1023
      %v1244 = vpop.f32.mrf.mxu0
      %v1245 = vadd.f32 0.0, %v1244
      %1246 = vmatmul.f32.gmra.mxu0 %v1026
      %v1247 = vpop.f32.mrf.mxu0
      %v1248 = vadd.f32 0.0, %v1247
      %1249 = vmatmul.f32.gmra.mxu0 %v1029
      %v1250 = vpop.f32.mrf.mxu0
      %v1251 = vadd.f32 0.0, %v1250
      %1252 = vdwg.mxu0
      %vm1253 = vcmask 15360
      %v1255 = vsel %vm1253, %v1214, 0
      %v1258 = vsel %vm1253, %v1216, 0
      %v1261 = vsel %vm1253, %v1218, 0
      %vm1263 = vcmask 1041408
      %v1265 = vsel %vm1263, %v644, 0
      %1267 = vmatpush.msra.mxu0 0.0
      %1268 = vmatpush.msra.mxu0 0.0
      %1269 = vmatpush.msra.mxu0 0.0
      %1270 = vmatpush.msra.mxu0 0.0
      %1271 = vmatpush.msra.mxu0 0.0
      %1272 = vmatpush.msra.mxu0 0.0
      %1273 = vmatpush.msra.mxu0 0.0
      %1274 = vmatpush.msra.mxu0 0.0
      %1275 = vmatpush.msra.mxu0 0.0
      %1276 = vmatpush.msra.mxu0 0.0
      %1277 = vmatpush.msra.mxu0 0.0
      %1278 = vmatpush.msra.mxu0 0.0
      %1279 = vmatpush.msra.mxu0 0.0
      %1280 = vmatpush.msra.mxu0 0.0
      %1281 = vmatpush.msra.mxu0 0.0
      %1282 = vmatpush.msra.mxu0 %v1265
      %1283 = vmatmul.f32.gmra.mxu0 %v1255
      %v1284 = vpop.f32.mrf.mxu0
      %v1285 = vadd.f32 0.0, %v1284
      %1286 = vmatmul.f32.gmra.mxu0 %v1258
      %v1287 = vpop.f32.mrf.mxu0
      %v1288 = vadd.f32 0.0, %v1287
      %1289 = vmatmul.f32.gmra.mxu0 %v1261
      %v1290 = vpop.f32.mrf.mxu0
      %v1291 = vadd.f32 0.0, %v1290
      %1292 = vdwg.mxu0
      %v1293 = vmul.f32 %v1245, %v1285
      %v1294 = vmul.f32 %v1248, %v1288
      %v1295 = vmul.f32 %v1251, %v1291
      %1296 = vmatpush.msra.mxu0 0.0
      %1297 = vmatpush.msra.mxu0 0.0
      %1298 = vmatpush.msra.mxu0 0.0
      %1299 = vmatpush.msra.mxu0 0.0
      %1300 = vmatpush.msra.mxu0 0.0
      %1301 = vmatpush.msra.mxu0 0.0
      %1302 = vmatpush.msra.mxu0 0.0
      %1303 = vmatpush.msra.mxu0 0.0
      %1304 = vmatpush.msra.mxu0 0.0
      %1305 = vmatpush.msra.mxu0 0.0
      %1306 = vmatpush.msra.mxu0 0.0
      %1307 = vmatpush.msra.mxu0 0.0
      %1308 = vmatpush.msra.mxu0 0.0
      %1309 = vmatpush.msra.mxu0 %v1218
      %1310 = vmatpush.msra.mxu0 %v1216
      %1311 = vmatpush.msra.mxu0 %v1214
      %1312 = vmatmul.f32.gmra.mxu0 %v704
      %v1313 = vpop.f32.mrf.mxu0
      %v1314 = vadd.f32 %v1222, %v1313
      %1315 = vmatmul.f32.gmra.mxu0 %v707
      %v1316 = vpop.f32.mrf.mxu0
      %v1317 = vadd.f32 %v1224, %v1316
      %1318 = vdwg.mxu0
      %v1319 = vrcp.pop %v1314
      %v1320 = vrcp.pop %v1317
      %v1322 = vsel %vm1253, %v1222, 0
      %v1325 = vsel %vm1253, %v1224, 0
      %1327 = vmatpush.msra.mxu0 0.0
      %1328 = vmatpush.msra.mxu0 0.0
      %1329 = vmatpush.msra.mxu0 0.0
      %1330 = vmatpush.msra.mxu0 0.0
      %1331 = vmatpush.msra.mxu0 0.0
      %1332 = vmatpush.msra.mxu0 0.0
      %1333 = vmatpush.msra.mxu0 0.0
      %1334 = vmatpush.msra.mxu0 0.0
      %1335 = vmatpush.msra.mxu0 0.0
      %1336 = vmatpush.msra.mxu0 0.0
      %1337 = vmatpush.msra.mxu0 0.0
      %1338 = vmatpush.msra.mxu0 0.0
      %1339 = vmatpush.msra.mxu0 0.0
      %1340 = vmatpush.msra.mxu0 0.0
      %1341 = vmatpush.msra.mxu0 0.0
      %1342 = vmatpush.msra.mxu0 %v1265
      %1343 = vmatmul.f32.gmra.mxu0 %v1322
      %v1344 = vpop.f32.mrf.mxu0
      %v1345 = vadd.f32 0.0, %v1344
      %1346 = vmatmul.f32.gmra.mxu0 %v1325
      %v1347 = vpop.f32.mrf.mxu0
      %v1348 = vadd.f32 0.0, %v1347
      %1349 = vdwg.mxu0
      %v1350 = vmul.f32 %v1345, %v791
      %v1351 = vmul.f32 %v1348, %v794
      %1352 = vmatpush.msra.mxu0 0.0
      %1353 = vmatpush.msra.mxu0 0.0
      %1354 = vmatpush.msra.mxu0 0.0
      %1355 = vmatpush.msra.mxu0 0.0
      %1356 = vmatpush.msra.mxu0 0.0
      %1357 = vmatpush.msra.mxu0 0.0
      %1358 = vmatpush.msra.mxu0 0.0
      %1359 = vmatpush.msra.mxu0 0.0
      %1360 = vmatpush.msra.mxu0 0.0
      %1361 = vmatpush.msra.mxu0 0.0
      %1362 = vmatpush.msra.mxu0 0.0
      %1363 = vmatpush.msra.mxu0 0.0
      %1364 = vmatpush.msra.mxu0 0.0
      %1365 = vmatpush.msra.mxu0 %v1295
      %1366 = vmatpush.msra.mxu0 %v1294
      %1367 = vmatpush.msra.mxu0 %v1293
      %1368 = vmatmul.f32.gmra.mxu0 %v704
      %v1369 = vpop.f32.mrf.mxu0
      %v1370 = vadd.f32 %v1350, %v1369
      %1371 = vmatmul.f32.gmra.mxu0 %v707
      %v1372 = vpop.f32.mrf.mxu0
      %v1373 = vadd.f32 %v1351, %v1372
      %1374 = vdwg.mxu0
      %v1376 = vsel %vm1253, %v1319, 0
      %v1379 = vsel %vm1253, %v1320, 0
      %1381 = vmatpush.msra.mxu0 0.0
      %1382 = vmatpush.msra.mxu0 0.0
      %1383 = vmatpush.msra.mxu0 0.0
      %1384 = vmatpush.msra.mxu0 0.0
      %1385 = vmatpush.msra.mxu0 0.0
      %1386 = vmatpush.msra.mxu0 0.0
      %1387 = vmatpush.msra.mxu0 0.0
      %1388 = vmatpush.msra.mxu0 0.0
      %1389 = vmatpush.msra.mxu0 0.0
      %1390 = vmatpush.msra.mxu0 0.0
      %1391 = vmatpush.msra.mxu0 0.0
      %1392 = vmatpush.msra.mxu0 0.0
      %1393 = vmatpush.msra.mxu0 0.0
      %1394 = vmatpush.msra.mxu0 0.0
      %1395 = vmatpush.msra.mxu0 0.0
      %1396 = vmatpush.msra.mxu0 %v1265
      %1397 = vmatmul.f32.gmra.mxu0 %v1376
      %v1398 = vpop.f32.mrf.mxu0
      %v1399 = vadd.f32 0.0, %v1398
      %1400 = vmatmul.f32.gmra.mxu0 %v1379
      %v1401 = vpop.f32.mrf.mxu0
      %v1402 = vadd.f32 0.0, %v1401
      %1403 = vdwg.mxu0
      %v1404 = vmul.f32 %v1370, %v1399
      %v1405 = vmul.f32 %v1373, %v1402
      %v1407 = vsel %vm862, %v1404, 0
      %v1410 = vsel %vm862, %v1405, 0
      %1412 = vmatpush.msra.mxu0 0.0
      %1413 = vmatpush.msra.mxu0 0.0
      %1414 = vmatpush.msra.mxu0 0.0
      %1415 = vmatpush.msra.mxu0 0.0
      %1416 = vmatpush.msra.mxu0 0.0
      %1417 = vmatpush.msra.mxu0 0.0
      %1418 = vmatpush.msra.mxu0 0.0
      %1419 = vmatpush.msra.mxu0 0.0
      %1420 = vmatpush.msra.mxu0 0.0
      %1421 = vmatpush.msra.mxu0 0.0
      %1422 = vmatpush.msra.mxu0 0.0
      %1423 = vmatpush.msra.mxu0 0.0
      %1424 = vmatpush.msra.mxu0 0.0
      %1425 = vmatpush.msra.mxu0 0.0
      %1426 = vmatpush.msra.mxu0 %v646
      %1427 = vmatpush.msra.mxu0 %v645
      %1428 = vmatmul.f32.gmra.mxu0 %v1407
      %v1429 = vpop.f32.mrf.mxu0
      %v1430 = vadd.f32 0.0, %v1429
      %1431 = vmatmul.f32.gmra.mxu0 %v1410
      %v1432 = vpop.f32.mrf.mxu0
      %v1433 = vadd.f32 0.0, %v1432
      %1434 = vdwg.mxu0
      %v1435 = vmul.f32 %v1430, 0.5
      %v1436 = vmul.f32 %v1433, 0.5
      %v1437 = vld [vmem:[%s576] sm:$0x1]
      %v1439 = vperm.slane %v1437, 0
      %v1441 = vadd.f32 %v1435, %v1439
      %v1442 = vadd.f32 %v1436, %v1439
      %v1443 = vmax.f32 %v1441, 0.0
      %v1444 = vmax.f32 %v1442, 0.0
      %v1446 = vsel %vm983, %v643, 0
      %v1449 = vsel %vm665, %v1444, 0
      %1451 = vmatpush.msra.mxu0 0.0
      %1452 = vmatpush.msra.mxu0 0.0
      %1453 = vmatpush.msra.mxu0 0.0
      %1454 = vmatpush.msra.mxu0 0.0
      %1455 = vmatpush.msra.mxu0 0.0
      %1456 = vmatpush.msra.mxu0 0.0
      %1457 = vmatpush.msra.mxu0 0.0
      %1458 = vmatpush.msra.mxu0 0.0
      %1459 = vmatpush.msra.mxu0 0.0
      %1460 = vmatpush.msra.mxu0 0.0
      %1461 = vmatpush.msra.mxu0 0.0
      %1462 = vmatpush.msra.mxu0 0.0
      %1463 = vmatpush.msra.mxu0 0.0
      %1464 = vmatpush.msra.mxu0 0.0
      %1465 = vmatpush.msra.mxu0 %v1449
      %1466 = vmatpush.msra.mxu0 %v1443
      %1467 = vmatmul.f32.gmra.mxu0 %v1446
      %v1468 = vpop.f32.mrf.mxu0
      %v1469 = vadd.f32 0.0, %v1468
      %1470 = vdwg.mxu0
      %vm1471 = vcmask 58368
      %1472 = vst.msk [vmem:[%s580] sm:$0x3] %vm1471, %v1469
      %p1473 = scmp.lt.s32.totalorder %s26, 1
      %s1474 = scalar_select %p1473, %s26, 1
      %s1475 = smul.addr %s1474, 2
      %s1476 = scalar_lea.vmem %s15, %s1475
      // Predicated region
      $region81: #{gat_transformer_forward.2} parent=79 // pred_check
        %p1477 = pneg %p389
      $region82: #{gat_transformer_forward.2} parent=79 // pred_check_branch
        %1479 = sbr.rel (%p1477) target = $region84
      $region83: #{gat_transformer_forward.2} parent=79 // pred_region
        _
      $region84: #{gat_transformer_forward.2} parent=79 // pred_fallthru
        _
    $region80: #{gat_transformer_forward.2} parent=5 // pred_fallthru
      _
    %p1480 = scmp.le.s32.totalorder 2, %s21
    // Predicated region
    $region85: #{gat_transformer_forward.2} parent=5 // pred_check
      %p1481 = pneg %p1480
    $region86: #{gat_transformer_forward.2} parent=5 // pred_check_branch
      %1483 = sbr.rel (%p1481) target = $region88
    $region87: #{gat_transformer_forward.2} parent=5 // pred_region
      %s1484 = ssub.s32 %s21, 2
      // Predicated region
      $region89: #{gat_transformer_forward.2} parent=87 // pred_check
        %p1485 = pneg %p395
      $region90: #{gat_transformer_forward.2} parent=87 // pred_check_branch
        %1487 = sbr.rel (%p1485) target = $region92
      $region91: #{gat_transformer_forward.2} parent=87 // pred_region
        %p1488 = scmp.lt.s32.totalorder %s27, 1
        %s1489 = scalar_select %p1488, %s27, 1
        %s1490 = smul.addr %s1489, 2
        %s1491 = scalar_lea.vmem %s15, %s1490
      $region92: #{gat_transformer_forward.2} parent=87 // pred_fallthru
        _
    $region88: #{gat_transformer_forward.2} parent=5 // pred_fallthru
      _
  $region6: #{gat_transformer_forward.2} parent=0 // loop_footer
    %s25 = sadd.s32 1, %s21
  $region7: #{gat_transformer_forward.2} parent=0 // loop_footer_branch
    %20 = sbr.rel target = $region3
  $region8: #{gat_transformer_forward.2} parent=0 // loop_exit
    _

// kernel: gat_transformer_forward.3
$region0: #{gat_transformer_forward.3}
  #allocation0 [shape = 'u32[]', space=smem, size = 0x4, offset = 0x4, fixed_abs, tag = 'smem constant byte address 0x4 - core index']
  #allocation1 [shape = 'u32[72,128]{1,0:T(1,128)}', space=vmem, size = 0x9000, scoped, tag = 'internal scratch']
  #allocation2 [shape = 'f32[1,1]{1,0:T(1,128)S(1)}', space=vmem, size = 0x200, scoped, tag = 'scoped memory for gat_transformer_forward.3']
  %s0 = inlined_call_operand.vmem [shape: f32[2,8,128], index: 0, kind: input, shape index: {}]
  %s1 = inlined_call_operand.vmem [shape: f32[8,128], index: 1, kind: input, shape index: {}]
  %s2 = inlined_call_operand.vmem [shape: f32[1,128], index: 2, kind: input, shape index: {}]
  %s3 = inlined_call_operand.vmem [shape: f32[128,96], index: 3, kind: input, shape index: {}]
  %s4 = inlined_call_operand.vmem [shape: f32[1,96], index: 4, kind: input, shape index: {}]
  %s5 = inlined_call_operand.vmem [shape: f32[2,16,128], index: 5, kind: input, shape index: {}]
  %s6 = inlined_call_operand.vmem [shape: f32[1,128], index: 6, kind: input, shape index: {}]
  %s7 = inlined_call_operand.vmem [shape: f32[1,128], index: 7, kind: input, shape index: {}]
  %s8 = inlined_call_operand.vmem [shape: f32[1,128], index: 8, kind: input, shape index: {}]
  %s9 = inlined_call_operand.vmem [shape: f32[128,128], index: 9, kind: input, shape index: {}]
  %s10 = inlined_call_operand.vmem [shape: f32[1,128], index: 10, kind: input, shape index: {}]
  %s11 = inlined_call_operand.vmem [shape: f32[128,128], index: 11, kind: input, shape index: {}]
  %s12 = inlined_call_operand.vmem [shape: f32[1,128], index: 12, kind: input, shape index: {}]
  %s13 = inlined_call_operand.vmem [shape: f32[1,128], index: 13, kind: input, shape index: {}]
  %s14 = inlined_call_operand.vmem [shape: f32[1,128], index: 14, kind: input, shape index: {}]
  %s15 = inlined_call_operand.vmem [shape: f32[128,1], index: 15, kind: input, shape index: {}]
  %s16 = inlined_call_operand.<no memory space> [shape: f32[1,1], index: 16, kind: input, shape index: {}]
  %s17 = inlined_call_operand.vmem [shape: f32[2,1], index: 17, kind: output, shape index: {}]
  %s18 = sld [smem:[#allocation0]]
  $region78: #{gat_transformer_forward.3} parent=0
    _
  %s20 = ssub.s32 1, %s18
  %s21 = scalar_select 0, %s20, %s18
  %v22 = vstv %s16
  %23 = vst [vmem:[#allocation2] sm:$0x1] %v22
  // Predicated region
  $region2: #{gat_transformer_forward.3} parent=0 // pred_check
    _
  $region3: #{gat_transformer_forward.3} parent=0 // pred_check_branch
    %25 = sbr.rel (0) target = $region5
  $region4: #{gat_transformer_forward.3} parent=0 // pred_region
    _
  $region5: #{gat_transformer_forward.3} parent=0 // pred_fallthru
    _
  // Predicated region
  $region6: #{gat_transformer_forward.3} parent=0 // pred_check
    _
  $region7: #{gat_transformer_forward.3} parent=0 // pred_check_branch
    %27 = sbr.rel (0) target = $region9
  $region8: #{gat_transformer_forward.3} parent=0 // pred_region
    _
  $region9: #{gat_transformer_forward.3} parent=0 // pred_fallthru
    _
  // Predicated region
  $region10: #{gat_transformer_forward.3} parent=0 // pred_check
    _
  $region11: #{gat_transformer_forward.3} parent=0 // pred_check_branch
    %29 = sbr.rel (0) target = $region13
  $region12: #{gat_transformer_forward.3} parent=0 // pred_region
    _
  $region13: #{gat_transformer_forward.3} parent=0 // pred_fallthru
    _
  // Predicated region
  $region14: #{gat_transformer_forward.3} parent=0 // pred_check
    _
  $region15: #{gat_transformer_forward.3} parent=0 // pred_check_branch
    %31 = sbr.rel (0) target = $region17
  $region16: #{gat_transformer_forward.3} parent=0 // pred_region
    _
  $region17: #{gat_transformer_forward.3} parent=0 // pred_fallthru
    _
  // Predicated region
  $region18: #{gat_transformer_forward.3} parent=0 // pred_check
    _
  $region19: #{gat_transformer_forward.3} parent=0 // pred_check_branch
    %33 = sbr.rel (0) target = $region21
  $region20: #{gat_transformer_forward.3} parent=0 // pred_region
    _
  $region21: #{gat_transformer_forward.3} parent=0 // pred_fallthru
    _
  // Predicated region
  $region22: #{gat_transformer_forward.3} parent=0 // pred_check
    _
  $region23: #{gat_transformer_forward.3} parent=0 // pred_check_branch
    %35 = sbr.rel (0) target = $region25
  $region24: #{gat_transformer_forward.3} parent=0 // pred_region
    _
  $region25: #{gat_transformer_forward.3} parent=0 // pred_fallthru
    _
  // Predicated region
  $region26: #{gat_transformer_forward.3} parent=0 // pred_check
    _
  $region27: #{gat_transformer_forward.3} parent=0 // pred_check_branch
    %37 = sbr.rel (0) target = $region29
  $region28: #{gat_transformer_forward.3} parent=0 // pred_region
    _
  $region29: #{gat_transformer_forward.3} parent=0 // pred_fallthru
    _
  // Predicated region
  $region30: #{gat_transformer_forward.3} parent=0 // pred_check
    _
  $region31: #{gat_transformer_forward.3} parent=0 // pred_check_branch
    %39 = sbr.rel (0) target = $region33
  $region32: #{gat_transformer_forward.3} parent=0 // pred_region
    _
  $region33: #{gat_transformer_forward.3} parent=0 // pred_fallthru
    _
  // Predicated region
  $region34: #{gat_transformer_forward.3} parent=0 // pred_check
    _
  $region35: #{gat_transformer_forward.3} parent=0 // pred_check_branch
    %41 = sbr.rel (0) target = $region37
  $region36: #{gat_transformer_forward.3} parent=0 // pred_region
    _
  $region37: #{gat_transformer_forward.3} parent=0 // pred_fallthru
    _
  // Predicated region
  $region38: #{gat_transformer_forward.3} parent=0 // pred_check
    _
  $region39: #{gat_transformer_forward.3} parent=0 // pred_check_branch
    %43 = sbr.rel (0) target = $region41
  $region40: #{gat_transformer_forward.3} parent=0 // pred_region
    _
  $region41: #{gat_transformer_forward.3} parent=0 // pred_fallthru
    _
  // Predicated region
  $region42: #{gat_transformer_forward.3} parent=0 // pred_check
    _
  $region43: #{gat_transformer_forward.3} parent=0 // pred_check_branch
    %45 = sbr.rel (0) target = $region45
  $region44: #{gat_transformer_forward.3} parent=0 // pred_region
    _
  $region45: #{gat_transformer_forward.3} parent=0 // pred_fallthru
    _
  // Predicated region
  $region46: #{gat_transformer_forward.3} parent=0 // pred_check
    _
  $region47: #{gat_transformer_forward.3} parent=0 // pred_check_branch
    %47 = sbr.rel (0) target = $region49
  $region48: #{gat_transformer_forward.3} parent=0 // pred_region
    _
  $region49: #{gat_transformer_forward.3} parent=0 // pred_fallthru
    _
  // Predicated region
  $region50: #{gat_transformer_forward.3} parent=0 // pred_check
    _
  $region51: #{gat_transformer_forward.3} parent=0 // pred_check_branch
    %49 = sbr.rel (0) target = $region53
  $region52: #{gat_transformer_forward.3} parent=0 // pred_region
    _
  $region53: #{gat_transformer_forward.3} parent=0 // pred_fallthru
    _
  // Predicated region
  $region54: #{gat_transformer_forward.3} parent=0 // pred_check
    _
  $region55: #{gat_transformer_forward.3} parent=0 // pred_check_branch
    %51 = sbr.rel (0) target = $region57
  $region56: #{gat_transformer_forward.3} parent=0 // pred_region
    _
  $region57: #{gat_transformer_forward.3} parent=0 // pred_fallthru
    _
  // Predicated region
  $region58: #{gat_transformer_forward.3} parent=0 // pred_check
    _
  $region59: #{gat_transformer_forward.3} parent=0 // pred_check_branch
    %53 = sbr.rel (0) target = $region61
  $region60: #{gat_transformer_forward.3} parent=0 // pred_region
    _
  $region61: #{gat_transformer_forward.3} parent=0 // pred_fallthru
    _
  // Predicated region
  $region62: #{gat_transformer_forward.3} parent=0 // pred_check
    _
  $region63: #{gat_transformer_forward.3} parent=0 // pred_check_branch
    %55 = sbr.rel (0) target = $region65
  $region64: #{gat_transformer_forward.3} parent=0 // pred_region
    _
  $region65: #{gat_transformer_forward.3} parent=0 // pred_fallthru
    _
  // Predicated region
  $region66: #{gat_transformer_forward.3} parent=0 // pred_check
    _
  $region67: #{gat_transformer_forward.3} parent=0 // pred_check_branch
    %57 = sbr.rel (0) target = $region69
  $region68: #{gat_transformer_forward.3} parent=0 // pred_region
    _
  $region69: #{gat_transformer_forward.3} parent=0 // pred_fallthru
    _
  %v58 = vld [vmem:[%s0] sm:$0xff]
  %v59 = vld [vmem:[%s0 + $0x8] sm:$0xff]
  %v60 = vld [vmem:[%s1] sm:$0xff]
  %v61 = vadd.f32 %v58, %v60
  %v62 = vadd.f32 %v59, %v60
  %v63 = vld [vmem:[%s2] sm:$0x1]
  %v64 = vld [vmem:[%s3] sm:$0xff]
  %v65 = vld [vmem:[%s3 + $0x8] sm:$0xff]
  %v66 = vld [vmem:[%s3 + $0x10] sm:$0xff]
  %v67 = vld [vmem:[%s3 + $0x18] sm:$0xff]
  %v68 = vld [vmem:[%s3 + $0x20] sm:$0xff]
  %v69 = vld [vmem:[%s3 + $0x28] sm:$0xff]
  %v70 = vld [vmem:[%s3 + $0x30] sm:$0xff]
  %v71 = vld [vmem:[%s3 + $0x38] sm:$0xff]
  %v72 = vld [vmem:[%s3 + $0x40] sm:$0xff]
  %v73 = vld [vmem:[%s3 + $0x48] sm:$0xff]
  %v74 = vld [vmem:[%s3 + $0x50] sm:$0xff]
  %v75 = vld [vmem:[%s3 + $0x58] sm:$0xff]
  %v76 = vld [vmem:[%s3 + $0x60] sm:$0xff]
  %v77 = vld [vmem:[%s3 + $0x68] sm:$0xff]
  %v78 = vld [vmem:[%s3 + $0x70] sm:$0xff]
  %v79 = vld [vmem:[%s3 + $0x78] sm:$0xff]
  %v80 = vld [vmem:[%s4] sm:$0x1]
  %v82 = vperm.slane %v80, 0
  %84 = vmatpush.msra.mxu0 %v79
  %85 = vmatpush.msra.mxu0 %v78
  %86 = vmatpush.msra.mxu0 %v77
  %87 = vmatpush.msra.mxu0 %v76
  %88 = vmatpush.msra.mxu0 %v75
  %89 = vmatpush.msra.mxu0 %v74
  %90 = vmatpush.msra.mxu0 %v73
  %91 = vmatpush.msra.mxu0 %v72
  %92 = vmatpush.msra.mxu0 %v71
  %93 = vmatpush.msra.mxu0 %v70
  %94 = vmatpush.msra.mxu0 %v69
  %95 = vmatpush.msra.mxu0 %v68
  %96 = vmatpush.msra.mxu0 %v67
  %97 = vmatpush.msra.mxu0 %v66
  %98 = vmatpush.msra.mxu0 %v65
  %99 = vmatpush.msra.mxu0 %v64
  %100 = vmatmul.f32.gmra.mxu0 %v61
  %v101 = vpop.f32.mrf.mxu0
  %v102 = vadd.f32 %v82, %v101
  %103 = vmatmul.f32.gmra.mxu0 %v62
  %v104 = vpop.f32.mrf.mxu0
  %v105 = vadd.f32 %v82, %v104
  %106 = vdwg.mxu0
  %108 = vrot.lane.b32.xlu0 %v102, 96
  %v109 = vpop.permute.xlu0 %108
  %vm110 = vcmask 130048
  %v111 = vsel %vm110, %v102, 0
  %v113 = vsel %vm110, %v109, 0
  %115 = vmatpush.xpose.msra.mxu0 0.0
  %116 = vmatpush.xpose.msra.mxu0 0.0
  %117 = vmatpush.xpose.msra.mxu0 0.0
  %118 = vmatpush.xpose.msra.mxu0 0.0
  %119 = vmatpush.xpose.msra.mxu0 0.0
  %120 = vmatpush.xpose.msra.mxu0 0.0
  %121 = vmatpush.xpose.msra.mxu0 0.0
  %122 = vmatpush.xpose.msra.mxu0 0.0
  %123 = vmatpush.xpose.msra.mxu0 0.0
  %124 = vmatpush.xpose.msra.mxu0 0.0
  %125 = vmatpush.xpose.msra.mxu0 0.0
  %126 = vmatpush.xpose.msra.mxu0 0.0
  %127 = vmatpush.xpose.msra.mxu0 0.0
  %128 = vmatpush.xpose.msra.mxu0 0.0
  %129 = vmatpush.xpose.msra.mxu0 0.0
  %130 = vmatpush.xpose.msra.mxu0 %v113
  %131 = vmatmul.f32.gmra.mxu0 %v111
  %v132 = vpop.f32.mrf.mxu0
  %v133 = vadd.f32 0.0, %v132
  %134 = vdwg.mxu0
  %136 = vrot.lane.b32.xlu0 %v105, 96
  %v137 = vpop.permute.xlu0 %136
  %v138 = vsel %vm110, %v105, 0
  %v140 = vsel %vm110, %v137, 0
  %142 = vmatpush.xpose.msra.mxu0 0.0
  %143 = vmatpush.xpose.msra.mxu0 0.0
  %144 = vmatpush.xpose.msra.mxu0 0.0
  %145 = vmatpush.xpose.msra.mxu0 0.0
  %146 = vmatpush.xpose.msra.mxu0 0.0
  %147 = vmatpush.xpose.msra.mxu0 0.0
  %148 = vmatpush.xpose.msra.mxu0 0.0
  %149 = vmatpush.xpose.msra.mxu0 0.0
  %150 = vmatpush.xpose.msra.mxu0 0.0
  %151 = vmatpush.xpose.msra.mxu0 0.0
  %152 = vmatpush.xpose.msra.mxu0 0.0
  %153 = vmatpush.xpose.msra.mxu0 0.0
  %154 = vmatpush.xpose.msra.mxu0 0.0
  %155 = vmatpush.xpose.msra.mxu0 0.0
  %156 = vmatpush.xpose.msra.mxu0 0.0
  %157 = vmatpush.xpose.msra.mxu0 %v140
  %158 = vmatmul.f32.gmra.mxu0 %v138
  %v159 = vpop.f32.mrf.mxu0
  %v160 = vadd.f32 0.0, %v159
  %161 = vdwg.mxu0
  %v162 = vmul.f32 %v133, 0.30151135
  %v163 = vmul.f32 %v160, 0.30151135
  %vm164 = vcmask 64512
  %v165 = vsel %vm164, %v162, -inf
  %166 = vmax.xlane.f32.xlu0 %v165
  %v167 = vpop.xlane.xlu0 %166
  %v168 = vsel %vm164, %v163, -inf
  %169 = vmax.xlane.f32.xlu0 %v168
  %v170 = vpop.xlane.xlu0 %169
  %v171 = vsub.f32 %v162, %v167
  %v172 = vsub.f32 %v163, %v170
  %v173 = vmul.f32 %v171, 1.442695
  %v174 = vpow.pop %v173
  %v175 = vmul.f32 %v172, 1.442695
  %v176 = vpow.pop %v175
  %v177 = vsel %vm164, %v174, 0.0
  %178 = vadd.xlane.f32.xlu0 %v177
  %v179 = vpop.xlane.xlu0 %178
  %v180 = vsel %vm164, %v176, 0.0
  %181 = vadd.xlane.f32.xlu0 %v180
  %v182 = vpop.xlane.xlu0 %181
  %v183 = vrcp.pop %v179
  %v184 = vrcp.pop %v182
  %v185 = vmul.f32 %v174, %v183
  %v186 = vmul.f32 %v176, %v184
  %187 = vrot.lane.b32.xlu0 %v102, 64
  %v188 = vpop.permute.xlu0 %187
  %v191 = vsel %vm164, %v185, 0
  %193 = vmatpush.msra.mxu0 0.0
  %194 = vmatpush.msra.mxu0 0.0
  %195 = vmatpush.msra.mxu0 0.0
  %196 = vmatpush.msra.mxu0 0.0
  %197 = vmatpush.msra.mxu0 0.0
  %198 = vmatpush.msra.mxu0 0.0
  %199 = vmatpush.msra.mxu0 0.0
  %200 = vmatpush.msra.mxu0 0.0
  %201 = vmatpush.msra.mxu0 0.0
  %202 = vmatpush.msra.mxu0 0.0
  %203 = vmatpush.msra.mxu0 0.0
  %204 = vmatpush.msra.mxu0 0.0
  %205 = vmatpush.msra.mxu0 0.0
  %206 = vmatpush.msra.mxu0 0.0
  %207 = vmatpush.msra.mxu0 0.0
  %208 = vmatpush.msra.mxu0 %v188
  %209 = vmatmul.f32.gmra.mxu0 %v191
  %v210 = vpop.f32.mrf.mxu0
  %v211 = vadd.f32 0.0, %v210
  %212 = vdwg.mxu0
  %213 = vrot.lane.b32.xlu0 %v105, 64
  %v214 = vpop.permute.xlu0 %213
  %v217 = vsel %vm164, %v186, 0
  %219 = vmatpush.msra.mxu0 0.0
  %220 = vmatpush.msra.mxu0 0.0
  %221 = vmatpush.msra.mxu0 0.0
  %222 = vmatpush.msra.mxu0 0.0
  %223 = vmatpush.msra.mxu0 0.0
  %224 = vmatpush.msra.mxu0 0.0
  %225 = vmatpush.msra.mxu0 0.0
  %226 = vmatpush.msra.mxu0 0.0
  %227 = vmatpush.msra.mxu0 0.0
  %228 = vmatpush.msra.mxu0 0.0
  %229 = vmatpush.msra.mxu0 0.0
  %230 = vmatpush.msra.mxu0 0.0
  %231 = vmatpush.msra.mxu0 0.0
  %232 = vmatpush.msra.mxu0 0.0
  %233 = vmatpush.msra.mxu0 0.0
  %234 = vmatpush.msra.mxu0 %v214
  %235 = vmatmul.f32.gmra.mxu0 %v217
  %v236 = vpop.f32.mrf.mxu0
  %v237 = vadd.f32 0.0, %v236
  %238 = vdwg.mxu0
  %v239 = vld [vmem:[%s5] sm:$0xff]
  %v240 = vld [vmem:[%s5 + $0x8] sm:$0xff]
  %241 = vrot.lane.b32.xlu0 %v102, 112
  %v242 = vpop.permute.xlu0 %241
  %243 = vrot.lane.b32.xlu0 %v102, 80
  %v244 = vpop.permute.xlu0 %243
  %v245 = vsel %vm110, %v242, 0
  %v247 = vsel %vm110, %v244, 0
  %249 = vmatpush.xpose.msra.mxu0 0.0
  %250 = vmatpush.xpose.msra.mxu0 0.0
  %251 = vmatpush.xpose.msra.mxu0 0.0
  %252 = vmatpush.xpose.msra.mxu0 0.0
  %253 = vmatpush.xpose.msra.mxu0 0.0
  %254 = vmatpush.xpose.msra.mxu0 0.0
  %255 = vmatpush.xpose.msra.mxu0 0.0
  %256 = vmatpush.xpose.msra.mxu0 0.0
  %257 = vmatpush.xpose.msra.mxu0 0.0
  %258 = vmatpush.xpose.msra.mxu0 0.0
  %259 = vmatpush.xpose.msra.mxu0 0.0
  %260 = vmatpush.xpose.msra.mxu0 0.0
  %261 = vmatpush.xpose.msra.mxu0 0.0
  %262 = vmatpush.xpose.msra.mxu0 0.0
  %263 = vmatpush.xpose.msra.mxu0 0.0
  %264 = vmatpush.xpose.msra.mxu0 %v247
  %265 = vmatmul.f32.gmra.mxu0 %v245
  %v266 = vpop.f32.mrf.mxu0
  %v267 = vadd.f32 0.0, %v266
  %268 = vdwg.mxu0
  %269 = vrot.lane.b32.xlu0 %v105, 112
  %v270 = vpop.permute.xlu0 %269
  %271 = vrot.lane.b32.xlu0 %v105, 80
  %v272 = vpop.permute.xlu0 %271
  %v273 = vsel %vm110, %v270, 0
  %v275 = vsel %vm110, %v272, 0
  %277 = vmatpush.xpose.msra.mxu0 0.0
  %278 = vmatpush.xpose.msra.mxu0 0.0
  %279 = vmatpush.xpose.msra.mxu0 0.0
  %280 = vmatpush.xpose.msra.mxu0 0.0
  %281 = vmatpush.xpose.msra.mxu0 0.0
  %282 = vmatpush.xpose.msra.mxu0 0.0
  %283 = vmatpush.xpose.msra.mxu0 0.0
  %284 = vmatpush.xpose.msra.mxu0 0.0
  %285 = vmatpush.xpose.msra.mxu0 0.0
  %286 = vmatpush.xpose.msra.mxu0 0.0
  %287 = vmatpush.xpose.msra.mxu0 0.0
  %288 = vmatpush.xpose.msra.mxu0 0.0
  %289 = vmatpush.xpose.msra.mxu0 0.0
  %290 = vmatpush.xpose.msra.mxu0 0.0
  %291 = vmatpush.xpose.msra.mxu0 0.0
  %292 = vmatpush.xpose.msra.mxu0 %v275
  %293 = vmatmul.f32.gmra.mxu0 %v273
  %v294 = vpop.f32.mrf.mxu0
  %v295 = vadd.f32 0.0, %v294
  %296 = vdwg.mxu0
  %v297 = vmul.f32 %v267, 0.30151135
  %v298 = vmul.f32 %v295, 0.30151135
  %v299 = vsel %vm164, %v297, -inf
  %300 = vmax.xlane.f32.xlu0 %v299
  %v301 = vpop.xlane.xlu0 %300
  %v302 = vsel %vm164, %v298, -inf
  %303 = vmax.xlane.f32.xlu0 %v302
  %v304 = vpop.xlane.xlu0 %303
  %v305 = vsub.f32 %v297, %v301
  %v306 = vsub.f32 %v298, %v304
  %v307 = vmul.f32 %v305, 1.442695
  %v308 = vpow.pop %v307
  %v309 = vmul.f32 %v306, 1.442695
  %v310 = vpow.pop %v309
  %v311 = vsel %vm164, %v308, 0.0
  %312 = vadd.xlane.f32.xlu0 %v311
  %v313 = vpop.xlane.xlu0 %312
  %v314 = vsel %vm164, %v310, 0.0
  %315 = vadd.xlane.f32.xlu0 %v314
  %v316 = vpop.xlane.xlu0 %315
  %v317 = vrcp.pop %v313
  %v318 = vrcp.pop %v316
  %v319 = vmul.f32 %v308, %v317
  %v320 = vmul.f32 %v310, %v318
  %321 = vrot.lane.b32.xlu0 %v102, 48
  %v322 = vpop.permute.xlu0 %321
  %v325 = vsel %vm164, %v319, 0
  %327 = vmatpush.msra.mxu0 0.0
  %328 = vmatpush.msra.mxu0 0.0
  %329 = vmatpush.msra.mxu0 0.0
  %330 = vmatpush.msra.mxu0 0.0
  %331 = vmatpush.msra.mxu0 0.0
  %332 = vmatpush.msra.mxu0 0.0
  %333 = vmatpush.msra.mxu0 0.0
  %334 = vmatpush.msra.mxu0 0.0
  %335 = vmatpush.msra.mxu0 0.0
  %336 = vmatpush.msra.mxu0 0.0
  %337 = vmatpush.msra.mxu0 0.0
  %338 = vmatpush.msra.mxu0 0.0
  %339 = vmatpush.msra.mxu0 0.0
  %340 = vmatpush.msra.mxu0 0.0
  %341 = vmatpush.msra.mxu0 0.0
  %342 = vmatpush.msra.mxu0 %v322
  %343 = vmatmul.f32.gmra.mxu0 %v325
  %v344 = vpop.f32.mrf.mxu0
  %v345 = vadd.f32 0.0, %v344
  %346 = vdwg.mxu0
  %347 = vrot.lane.b32.xlu0 %v105, 48
  %v348 = vpop.permute.xlu0 %347
  %v351 = vsel %vm164, %v320, 0
  %353 = vmatpush.msra.mxu0 0.0
  %354 = vmatpush.msra.mxu0 0.0
  %355 = vmatpush.msra.mxu0 0.0
  %356 = vmatpush.msra.mxu0 0.0
  %357 = vmatpush.msra.mxu0 0.0
  %358 = vmatpush.msra.mxu0 0.0
  %359 = vmatpush.msra.mxu0 0.0
  %360 = vmatpush.msra.mxu0 0.0
  %361 = vmatpush.msra.mxu0 0.0
  %362 = vmatpush.msra.mxu0 0.0
  %363 = vmatpush.msra.mxu0 0.0
  %364 = vmatpush.msra.mxu0 0.0
  %365 = vmatpush.msra.mxu0 0.0
  %366 = vmatpush.msra.mxu0 0.0
  %367 = vmatpush.msra.mxu0 0.0
  %368 = vmatpush.msra.mxu0 %v348
  %369 = vmatmul.f32.gmra.mxu0 %v351
  %v370 = vpop.f32.mrf.mxu0
  %v371 = vadd.f32 0.0, %v370
  %372 = vdwg.mxu0
  %s373 = scalar_lea.vmem %s5, 16
  %v374 = vld [vmem:[%s373] sm:$0xff]
  %v375 = vld [vmem:[%s373 + $0x8] sm:$0xff]
  %v377 = vsel %vm110, %v345, 0
  %v380 = vsel %vm110, %v371, 0
  %382 = vmatpush.msra.mxu0 0.0
  %383 = vmatpush.msra.mxu0 0.0
  %384 = vmatpush.msra.mxu0 0.0
  %385 = vmatpush.msra.mxu0 0.0
  %386 = vmatpush.msra.mxu0 0.0
  %387 = vmatpush.msra.mxu0 0.0
  %388 = vmatpush.msra.mxu0 0.0
  %389 = vmatpush.msra.mxu0 0.0
  %390 = vmatpush.msra.mxu0 0.0
  %391 = vmatpush.msra.mxu0 0.0
  %392 = vmatpush.msra.mxu0 0.0
  %393 = vmatpush.msra.mxu0 0.0
  %394 = vmatpush.msra.mxu0 0.0
  %395 = vmatpush.msra.mxu0 0.0
  %396 = vmatpush.msra.mxu0 %v375
  %397 = vmatpush.msra.mxu0 %v374
  %398 = vmatmul.f32.gmra.mxu0 %v377
  %v399 = vpop.f32.mrf.mxu0
  %v400 = vadd.f32 0.0, %v399
  %401 = vmatmul.f32.gmra.mxu0 %v380
  %v402 = vpop.f32.mrf.mxu0
  %v403 = vadd.f32 0.0, %v402
  %404 = vdwg.mxu0
  %v406 = vsel %vm110, %v211, 0
  %v409 = vsel %vm110, %v237, 0
  %411 = vmatpush.msra.mxu0 0.0
  %412 = vmatpush.msra.mxu0 0.0
  %413 = vmatpush.msra.mxu0 0.0
  %414 = vmatpush.msra.mxu0 0.0
  %415 = vmatpush.msra.mxu0 0.0
  %416 = vmatpush.msra.mxu0 0.0
  %417 = vmatpush.msra.mxu0 0.0
  %418 = vmatpush.msra.mxu0 0.0
  %419 = vmatpush.msra.mxu0 0.0
  %420 = vmatpush.msra.mxu0 0.0
  %421 = vmatpush.msra.mxu0 0.0
  %422 = vmatpush.msra.mxu0 0.0
  %423 = vmatpush.msra.mxu0 0.0
  %424 = vmatpush.msra.mxu0 0.0
  %425 = vmatpush.msra.mxu0 %v240
  %426 = vmatpush.msra.mxu0 %v239
  %427 = vmatmul.f32.gmra.mxu0 %v406
  %v428 = vpop.f32.mrf.mxu0
  %v429 = vadd.f32 %v400, %v428
  %430 = vmatmul.f32.gmra.mxu0 %v409
  %v431 = vpop.f32.mrf.mxu0
  %v432 = vadd.f32 %v403, %v431
  %433 = vdwg.mxu0
  %v434 = vld [vmem:[%s6] sm:$0x1]
  %v436 = vperm.slane %v434, 0
  %v438 = vadd.f32 %v429, %v436
  %v439 = vadd.f32 %v432, %v436
  %v440 = vadd.f32 %v61, %v438
  %v441 = vadd.f32 %v62, %v439
  %v442 = vld [vmem:[%s7] sm:$0x1]
  %v443 = vld [vmem:[%s8] sm:$0x1]
  %444 = vadd.xlane.f32.xlu0 %v440
  %v445 = vpop.xlane.xlu0 %444
  %446 = vadd.xlane.f32.xlu0 %v441
  %v447 = vpop.xlane.xlu0 %446
  %v448 = vmul.f32 %v445, 0.045454547
  %v449 = vmul.f32 %v447, 0.045454547
  %v450 = vsub.f32 %v440, %v448
  %v451 = vsub.f32 %v441, %v449
  %v453 = vperm.slane %v63, 0
  %v455 = vmul.f32 %v450, %v453
  %v456 = vmul.f32 %v451, %v453
  %v457 = vmul.f32 %v455, %v455
  %v458 = vmul.f32 %v456, %v456
  %459 = vadd.xlane.f32.xlu0 %v457
  %v460 = vpop.xlane.xlu0 %459
  %461 = vadd.xlane.f32.xlu0 %v458
  %v462 = vpop.xlane.xlu0 %461
  %v463 = vmul.f32 %v460, 0.045454547
  %v464 = vmul.f32 %v462, 0.045454547
  %v465 = vadd.f32 %v463, 1e-05
  %v466 = vadd.f32 %v464, 1e-05
  %v467 = vrsqrt.pop %v465
  %v468 = vmul.f32 %v467, %v465
  %v469 = vmul.f32 %v468, %v467
  %v470 = vmul.f32 0.5, %v469
  %v471 = vsub.f32 1.5, %v470
  %v472 = vmul.f32 %v467, %v471
  %vm473 = vweird.f32 %v465
  %vm474 = vweird.f32 %v467
  %vm475 = vmor %vm473, %vm474
  %v476 = vsel %vm475, %v467, %v472
  %v477 = vrsqrt.pop %v466
  %v478 = vmul.f32 %v477, %v466
  %v479 = vmul.f32 %v478, %v477
  %v480 = vmul.f32 0.5, %v479
  %v481 = vsub.f32 1.5, %v480
  %v482 = vmul.f32 %v477, %v481
  %vm483 = vweird.f32 %v466
  %vm484 = vweird.f32 %v477
  %vm485 = vmor %vm483, %vm484
  %v486 = vsel %vm485, %v477, %v482
  %v487 = vmul.f32 %v450, %v476
  %v488 = vmul.f32 %v451, %v486
  %v490 = vperm.slane %v442, 0
  %v492 = vmul.f32 %v487, %v490
  %v493 = vmul.f32 %v488, %v490
  %v495 = vperm.slane %v443, 0
  %v497 = vadd.f32 %v492, %v495
  %v498 = vadd.f32 %v493, %v495
  %v499 = vld [vmem:[%s9] sm:$0xff]
  %v500 = vld [vmem:[%s9 + $0x8] sm:$0xff]
  %v501 = vld [vmem:[%s9 + $0x10] sm:$0xff]
  %v502 = vld [vmem:[%s9 + $0x18] sm:$0xff]
  %v503 = vld [vmem:[%s9 + $0x20] sm:$0xff]
  %v504 = vld [vmem:[%s9 + $0x28] sm:$0xff]
  %v505 = vld [vmem:[%s9 + $0x30] sm:$0xff]
  %v506 = vld [vmem:[%s9 + $0x38] sm:$0xff]
  %v507 = vld [vmem:[%s9 + $0x40] sm:$0xff]
  %v508 = vld [vmem:[%s9 + $0x48] sm:$0xff]
  %v509 = vld [vmem:[%s9 + $0x50] sm:$0xff]
  %v510 = vld [vmem:[%s9 + $0x58] sm:$0xff]
  %v511 = vld [vmem:[%s9 + $0x60] sm:$0xff]
  %v512 = vld [vmem:[%s9 + $0x68] sm:$0xff]
  %v513 = vld [vmem:[%s9 + $0x70] sm:$0xff]
  %v514 = vld [vmem:[%s9 + $0x78] sm:$0xff]
  %v515 = vld [vmem:[%s10] sm:$0x1]
  %v517 = vperm.slane %v515, 0
  %519 = vmatpush.msra.mxu0 %v514
  %520 = vmatpush.msra.mxu0 %v513
  %521 = vmatpush.msra.mxu0 %v512
  %522 = vmatpush.msra.mxu0 %v511
  %523 = vmatpush.msra.mxu0 %v510
  %524 = vmatpush.msra.mxu0 %v509
  %525 = vmatpush.msra.mxu0 %v508
  %526 = vmatpush.msra.mxu0 %v507
  %527 = vmatpush.msra.mxu0 %v506
  %528 = vmatpush.msra.mxu0 %v505
  %529 = vmatpush.msra.mxu0 %v504
  %530 = vmatpush.msra.mxu0 %v503
  %531 = vmatpush.msra.mxu0 %v502
  %532 = vmatpush.msra.mxu0 %v501
  %533 = vmatpush.msra.mxu0 %v500
  %534 = vmatpush.msra.mxu0 %v499
  %535 = vmatmul.f32.gmra.mxu0 %v497
  %v536 = vpop.f32.mrf.mxu0
  %v537 = vadd.f32 %v517, %v536
  %538 = vmatmul.f32.gmra.mxu0 %v498
  %v539 = vpop.f32.mrf.mxu0
  %v540 = vadd.f32 %v517, %v539
  %541 = vdwg.mxu0
  %v542 = vmax.f32 %v537, 0.0
  %v543 = vmax.f32 %v540, 0.0
  %v544 = vld [vmem:[%s11] sm:$0xff]
  %v545 = vld [vmem:[%s11 + $0x8] sm:$0xff]
  %v546 = vld [vmem:[%s11 + $0x10] sm:$0xff]
  %v547 = vld [vmem:[%s11 + $0x18] sm:$0xff]
  %v548 = vld [vmem:[%s11 + $0x20] sm:$0xff]
  %v549 = vld [vmem:[%s11 + $0x28] sm:$0xff]
  %v550 = vld [vmem:[%s11 + $0x30] sm:$0xff]
  %v551 = vld [vmem:[%s11 + $0x38] sm:$0xff]
  %v552 = vld [vmem:[%s11 + $0x40] sm:$0xff]
  %v553 = vld [vmem:[%s11 + $0x48] sm:$0xff]
  %v554 = vld [vmem:[%s11 + $0x50] sm:$0xff]
  %v555 = vld [vmem:[%s11 + $0x58] sm:$0xff]
  %v556 = vld [vmem:[%s11 + $0x60] sm:$0xff]
  %v557 = vld [vmem:[%s11 + $0x68] sm:$0xff]
  %v558 = vld [vmem:[%s11 + $0x70] sm:$0xff]
  %v559 = vld [vmem:[%s11 + $0x78] sm:$0xff]
  %v560 = vld [vmem:[%s12] sm:$0x1]
  %v562 = vperm.slane %v560, 0
  %564 = vmatpush.msra.mxu0 %v559
  %565 = vmatpush.msra.mxu0 %v558
  %566 = vmatpush.msra.mxu0 %v557
  %567 = vmatpush.msra.mxu0 %v556
  %568 = vmatpush.msra.mxu0 %v555
  %569 = vmatpush.msra.mxu0 %v554
  %570 = vmatpush.msra.mxu0 %v553
  %571 = vmatpush.msra.mxu0 %v552
  %572 = vmatpush.msra.mxu0 %v551
  %573 = vmatpush.msra.mxu0 %v550
  %574 = vmatpush.msra.mxu0 %v549
  %575 = vmatpush.msra.mxu0 %v548
  %576 = vmatpush.msra.mxu0 %v547
  %577 = vmatpush.msra.mxu0 %v546
  %578 = vmatpush.msra.mxu0 %v545
  %579 = vmatpush.msra.mxu0 %v544
  %580 = vmatmul.f32.gmra.mxu0 %v542
  %v581 = vpop.f32.mrf.mxu0
  %v582 = vadd.f32 %v562, %v581
  %583 = vmatmul.f32.gmra.mxu0 %v543
  %v584 = vpop.f32.mrf.mxu0
  %v585 = vadd.f32 %v562, %v584
  %586 = vdwg.mxu0
  %v587 = vadd.f32 %v497, %v582
  %v588 = vadd.f32 %v498, %v585
  %v589 = vld [vmem:[%s13] sm:$0x1]
  %v590 = vld [vmem:[%s14] sm:$0x1]
  %591 = vadd.xlane.f32.xlu0 %v587
  %v592 = vpop.xlane.xlu0 %591
  %593 = vadd.xlane.f32.xlu0 %v588
  %v594 = vpop.xlane.xlu0 %593
  %v595 = vmul.f32 %v592, 0.045454547
  %v596 = vmul.f32 %v594, 0.045454547
  %v597 = vsub.f32 %v587, %v595
  %v598 = vsub.f32 %v588, %v596
  %v599 = vmul.f32 %v597, %v453
  %v600 = vmul.f32 %v598, %v453
  %v601 = vmul.f32 %v599, %v599
  %v602 = vmul.f32 %v600, %v600
  %603 = vadd.xlane.f32.xlu0 %v601
  %v604 = vpop.xlane.xlu0 %603
  %605 = vadd.xlane.f32.xlu0 %v602
  %v606 = vpop.xlane.xlu0 %605
  %v607 = vmul.f32 %v604, 0.045454547
  %v608 = vmul.f32 %v606, 0.045454547
  %v609 = vadd.f32 %v607, 1e-05
  %v610 = vadd.f32 %v608, 1e-05
  %v611 = vrsqrt.pop %v609
  %v612 = vmul.f32 %v611, %v609
  %v613 = vmul.f32 %v612, %v611
  %v614 = vmul.f32 0.5, %v613
  %v615 = vsub.f32 1.5, %v614
  %v616 = vmul.f32 %v611, %v615
  %vm617 = vweird.f32 %v609
  %vm618 = vweird.f32 %v611
  %vm619 = vmor %vm617, %vm618
  %v620 = vsel %vm619, %v611, %v616
  %v621 = vrsqrt.pop %v610
  %v622 = vmul.f32 %v621, %v610
  %v623 = vmul.f32 %v622, %v621
  %v624 = vmul.f32 0.5, %v623
  %v625 = vsub.f32 1.5, %v624
  %v626 = vmul.f32 %v621, %v625
  %vm627 = vweird.f32 %v610
  %vm628 = vweird.f32 %v621
  %vm629 = vmor %vm627, %vm628
  %v630 = vsel %vm629, %v621, %v626
  %v631 = vmul.f32 %v597, %v620
  %v632 = vmul.f32 %v598, %v630
  %v634 = vperm.slane %v589, 0
  %v636 = vmul.f32 %v631, %v634
  %v637 = vmul.f32 %v632, %v634
  %v639 = vperm.slane %v590, 0
  %v641 = vadd.f32 %v636, %v639
  %v642 = vadd.f32 %v637, %v639
  %v643 = vld [vmem:[%s15] sm:$0xff]
  %v644 = vld [vmem:[%s15 + $0x8] sm:$0xff]
  %v645 = vld [vmem:[%s15 + $0x10] sm:$0xff]
  %v646 = vld [vmem:[%s15 + $0x18] sm:$0xff]
  %v647 = vld [vmem:[%s15 + $0x20] sm:$0xff]
  %v648 = vld [vmem:[%s15 + $0x28] sm:$0xff]
  %v649 = vld [vmem:[%s15 + $0x30] sm:$0xff]
  %v650 = vld [vmem:[%s15 + $0x38] sm:$0xff]
  %v651 = vld [vmem:[%s15 + $0x40] sm:$0xff]
  %v652 = vld [vmem:[%s15 + $0x48] sm:$0xff]
  %v653 = vld [vmem:[%s15 + $0x50] sm:$0xff]
  %v654 = vld [vmem:[%s15 + $0x58] sm:$0xff]
  %v655 = vld [vmem:[%s15 + $0x60] sm:$0xff]
  %v656 = vld [vmem:[%s15 + $0x68] sm:$0xff]
  %v657 = vld [vmem:[%s15 + $0x70] sm:$0xff]
  %v658 = vld [vmem:[%s15 + $0x78] sm:$0xff]
  %v659 = vld [vmem:[#allocation2] sm:$0x1]
  %v661 = vperm.slane %v659, 0
  %v665 = vrot.slane %v641, 7
  %v666 = vrot.slane %v642, 6
  %vm667 = vcmask 1041409
  %v668 = vsel %vm667, %v666, %v665
  %670 = vmatpush.msra.mxu0 %v658
  %671 = vmatpush.msra.mxu0 %v657
  %672 = vmatpush.msra.mxu0 %v656
  %673 = vmatpush.msra.mxu0 %v655
  %674 = vmatpush.msra.mxu0 %v654
  %675 = vmatpush.msra.mxu0 %v653
  %676 = vmatpush.msra.mxu0 %v652
  %677 = vmatpush.msra.mxu0 %v651
  %678 = vmatpush.msra.mxu0 %v650
  %679 = vmatpush.msra.mxu0 %v649
  %680 = vmatpush.msra.mxu0 %v648
  %681 = vmatpush.msra.mxu0 %v647
  %682 = vmatpush.msra.mxu0 %v646
  %683 = vmatpush.msra.mxu0 %v645
  %684 = vmatpush.msra.mxu0 %v644
  %685 = vmatpush.msra.mxu0 %v643
  %686 = vmatmul.f32.gmra.mxu0 %v668
  %v687 = vpop.f32.mrf.mxu0
  %v688 = vadd.f32 %v661, %v687
  %689 = vdwg.mxu0
  %vm690 = vcmask 1024
  %691 = vst.msk [vmem:[%s17] sm:$0x3] %vm690, %v688
  // Predicated region
  $region70: #{gat_transformer_forward.3} parent=0 // pred_check
    _
  $region71: #{gat_transformer_forward.3} parent=0 // pred_check_branch
    %693 = sbr.rel (0) target = $region73
  $region72: #{gat_transformer_forward.3} parent=0 // pred_region
    _
  $region73: #{gat_transformer_forward.3} parent=0 // pred_fallthru
    _
  // Predicated region
  $region74: #{gat_transformer_forward.3} parent=0 // pred_check
    _
  $region75: #{gat_transformer_forward.3} parent=0 // pred_check_branch
    %695 = sbr.rel (0) target = $region77
  $region76: #{gat_transformer_forward.3} parent=0 // pred_region
    _
  $region77: #{gat_transformer_forward.3} parent=0 // pred_fallthru
    _

</llo_original>
